<compile_context>
chip_gen: v6e
topology: v6e:2x2x1
jax: 0.10.0
libtpu: 0.0.40
codegen_flags: <defaults>
</compile_context>

<pallas_src>
import functools
import math

import jax
import jax.numpy as jnp
from jax import lax
from jax.experimental import pallas as pl
from jax.experimental.pallas import tpu as pltpu


# ----------------------- fused decoder-stack kernel ------------------------- #

def _decoder_stack_kernel(
    tgt_ref, mem_ref,
    wqkv_s_ref, bqkv_s_ref, wo_s_ref, bo_s_ref,
    wq_c_ref, bq_c_ref, wkv_c_ref, bkv_c_ref, wo_c_ref, bo_c_ref,
    ln1_g_ref, ln1_b_ref, ln2_g_ref, ln2_b_ref, ln3_g_ref, ln3_b_ref,
    w1_ref, b1_ref, w2_ref, b2_ref,
    fcw_ref, fcb_ref,
    o_ref,
    x_scr,
    *, nhead, eps,
):
    l = pl.program_id(1)                      # layer index (grid axis 1, "arbitrary")
    n_layers = pl.num_programs(1)
    Bt, T, D = tgt_ref.shape
    S = mem_ref.shape[1]
    H = nhead
    Dh = D // H
    R = Bt * T

    # Load the residual stream into VMEM scratch on the first layer step only.
    @pl.when(l == 0)
    def _():
        x_scr[...] = tgt_ref[...].reshape(R, D)

    x = x_scr[...]                            # (Bt*T, D) f32
    mem2d = mem_ref[...].reshape(Bt * S, D)   # (Bt*S, D) bf16 (cast in wrapper)

    def layer_norm(v, g_ref, b_ref):
        mu = jnp.mean(v, axis=-1, keepdims=True)
        vc = v - mu
        var = jnp.mean(vc * vc, axis=-1, keepdims=True)
        return vc * lax.rsqrt(var + eps) * g_ref[0] + b_ref[0]

    def mha(q2d, k2d, v2d, t_q, t_k, wo_ref, bo_ref, mask):
        """Multi-head attention with the output projection fused into the
        per-head loop:  concat_h(O_h) @ Wo == sum_h O_h @ Wo[h*Dh:(h+1)*Dh, :].
        This avoids the lane-direction concatenate of per-head outputs.
        Attention scale 1/sqrt(Dh) is pre-folded into the Q weights.
        TODO(synk): flash-style KV tiling (online softmax) for long T/S."""
        acc = None
        for h in range(H):
            sl = slice(h * Dh, (h + 1) * Dh)
            wo_h = wo_ref[0, sl, :]                          # (Dh, D) bf16, sublane ref slice
            o_rows = []
            for b in range(Bt):                              # short static per-batch loop
                qh = q2d[b * t_q:(b + 1) * t_q, sl].astype(jnp.bfloat16)
                kh = k2d[b * t_k:(b + 1) * t_k, sl].astype(jnp.bfloat16)
                vh = v2d[b * t_k:(b + 1) * t_k, sl].astype(jnp.bfloat16)
                s = lax.dot_general(qh, kh, (((1,), (1,)), ((), ())),
                                    preferred_element_type=jnp.float32)
                if mask is not None:
                    s = s + mask                             # f32 scores + -1e30 mask (safe)
                mx = jnp.max(s, axis=-1, keepdims=True)
                p = jnp.exp(s - mx)
                den = jnp.sum(p, axis=-1, keepdims=True)
                p = (p * pl.reciprocal(den, approx=True)).astype(jnp.bfloat16)
                o_rows.append(jnp.dot(p, vh, preferred_element_type=jnp.float32))
            o_h = o_rows[0] if Bt == 1 else jnp.concatenate(o_rows, axis=0)  # row concat
            part = jnp.dot(o_h.astype(jnp.bfloat16), wo_h,
                           preferred_element_type=jnp.float32)               # (Bt*t_q, D)
            acc = part if acc is None else acc + part
        return acc + bo_ref[0]

    # ------------------- self-attention (causal) + add & LN ----------------
    qkv = jnp.dot(x.astype(jnp.bfloat16), wqkv_s_ref[0],
                  preferred_element_type=jnp.float32) + bqkv_s_ref[0]
    q, k, v = qkv[:, :D], qkv[:, D:2 * D], qkv[:, 2 * D:]
    row = lax.broadcasted_iota(jnp.int32, (T, T), 0)
    col = lax.broadcasted_iota(jnp.int32, (T, T), 1)
    causal = jnp.where(row >= col, 0.0, -1e30).astype(jnp.float32)
    sa = mha(q, k, v, T, T, wo_s_ref, bo_s_ref, causal)
    h1 = layer_norm(x + sa, ln1_g_ref, ln1_b_ref)

    # ------------------- cross-attention (no mask) + add & LN --------------
    qc = jnp.dot(h1.astype(jnp.bfloat16), wq_c_ref[0],
                 preferred_element_type=jnp.float32) + bq_c_ref[0]
    kv = jnp.dot(mem2d, wkv_c_ref[0],
                 preferred_element_type=jnp.float32) + bkv_c_ref[0]
    kc, vc = kv[:, :D], kv[:, D:]
    ca = mha(qc, kc, vc, T, S, wo_c_ref, bo_c_ref, None)
    h2 = layer_norm(h1 + ca, ln2_g_ref, ln2_b_ref)

    # ------------------- feed-forward (relu) + add & LN --------------------
    f = jnp.dot(h2.astype(jnp.bfloat16), w1_ref[0],
                preferred_element_type=jnp.float32) + b1_ref[0]
    f = jnp.maximum(f, 0.0)
    ff = jnp.dot(f.astype(jnp.bfloat16), w2_ref[0],
                 preferred_element_type=jnp.float32) + b2_ref[0]
    h3 = layer_norm(h2 + ff, ln3_g_ref, ln3_b_ref)

    x_scr[...] = h3                            # carry residual stream to next layer

    # ------------------- fused classifier head on the last layer -----------
    @pl.when(l == n_layers - 1)
    def _():
        logits = jnp.dot(h3.astype(jnp.bfloat16), fcw_ref[...],
                         preferred_element_type=jnp.float32) + fcb_ref[...]
        o_ref[...] = logits.reshape(Bt, T, o_ref.shape[2])


# --------------------------------- wrapper ----------------------------------- #

def _pick_batch_tile(B, T, target_rows=256):
    """Largest divisor of B with Bt*T <= target_rows (fills the MXU M-dim),
    while keeping >=2 parallel grid steps when possible (v7x megacore)."""
    divisors = [d for d in range(1, B + 1) if B % d == 0]
    fits = [d for d in divisors if d * T <= target_rows]
    bt = max(fits) if fits else 1
    if bt == B and B > 1:
        bt = max(d for d in divisors if d < B)
    return bt


def parallel_decoder_forward(memory, tgt, params, nhead):
    """memory:(B,S,D) tgt:(B,T,D) -> logits:(B,T,num_classes)."""
    B, T, D = tgt.shape
    S = memory.shape[1]
    L = params["wqkv_s"].shape[0]
    F = params["w1"].shape[2]
    Cpad = params["fc_w"].shape[1]
    C = params["num_classes"]

    Bt = _pick_batch_tile(B, T)
    nb = B // Bt
    mem_bf16 = memory.astype(jnp.bfloat16)     # bf16 once in the wrapper

    kern = functools.partial(_decoder_stack_kernel, nhead=nhead, eps=1e-5)

    def per_layer(shape):                       # stacked per-layer block
        nd = len(shape)
        return pl.BlockSpec((1,) + shape, lambda b, l: (l,) + (0,) * nd)

    def per_batch(shape):                       # per-batch-tile block, layer-invariant
        nd = len(shape)
        return pl.BlockSpec((Bt,) + shape, lambda b, l: (b,) + (0,) * nd)

    in_specs = [
        per_batch((T, D)),                      # tgt (f32)
        per_batch((S, D)),                      # memory (bf16)
        per_layer((D, 3 * D)), per_layer((1, 3 * D)),   # wqkv_s, bqkv_s
        per_layer((D, D)), per_layer((1, D)),            # wo_s, bo_s
        per_layer((D, D)), per_layer((1, D)),            # wq_c, bq_c
        per_layer((D, 2 * D)), per_layer((1, 2 * D)),    # wkv_c, bkv_c
        per_layer((D, D)), per_layer((1, D)),            # wo_c, bo_c
        per_layer((1, D)), per_layer((1, D)),            # ln1_g, ln1_b
        per_layer((1, D)), per_layer((1, D)),            # ln2_g, ln2_b
        per_layer((1, D)), per_layer((1, D)),            # ln3_g, ln3_b
        per_layer((D, F)), per_layer((1, F)),            # w1, b1
        per_layer((F, D)), per_layer((1, D)),            # w2, b2
        pl.BlockSpec((D, Cpad), lambda b, l: (0, 0)),    # fc_w (constant)
        pl.BlockSpec((1, Cpad), lambda b, l: (0, 0)),    # fc_b (constant)
    ]
    out_specs = pl.BlockSpec((Bt, T, Cpad), lambda b, l: (b, 0, 0))

    # Explicit VMEM budget (v5e default scoped = 16 MiB; v7x physical = 64 MiB).
    # TODO(synk): tile the FFN over F with a pl.when-managed f32 accumulator for
    # configs whose resident weights do not fit the 64 MiB v7x ceiling.
    per_layer_w = 2 * (D * 3 * D + 3 * D * D + D * 2 * D + D * F + F * D)
    per_layer_b = 4 * (3 * D + 4 * D + 2 * D + 6 * D + F + D)
    act_bytes = 4 * Bt * T * D * 2 + 2 * Bt * S * D + 4 * Bt * T * Cpad
    fc_bytes = 2 * D * Cpad + 4 * Cpad
    need = 2 * (per_layer_w + per_layer_b + act_bytes + fc_bytes) + (4 << 20)
    vmem_limit = int(min(max(need, 32 << 20), 60 << 20))

    logits = pl.pallas_call(
        kern,
        out_shape=jax.ShapeDtypeStruct((B, T, Cpad), jnp.float32),
        grid=(nb, L),
        in_specs=in_specs,
        out_specs=out_specs,
        scratch_shapes=[pltpu.VMEM((Bt * T, D), jnp.float32)],   # residual stream
        compiler_params=pltpu.CompilerParams(
            dimension_semantics=("parallel", "arbitrary"),
            vmem_limit_bytes=vmem_limit),
    )(tgt, mem_bf16,
      params["wqkv_s"], params["bqkv_s"], params["wo_s"], params["bo_s"],
      params["wq_c"], params["bq_c"], params["wkv_c"], params["bkv_c"],
      params["wo_c"], params["bo_c"],
      params["ln1_g"], params["ln1_b"], params["ln2_g"], params["ln2_b"],
      params["ln3_g"], params["ln3_b"],
      params["w1"], params["b1"], params["w2"], params["b2"],
      params["fc_w"], params["fc_b"])

    return logits[..., :C]


# ------------------------------ parameters ----------------------------------- #

def init_params(key, d_model, nhead, num_layers, num_classes, dim_ff):
    D, F = d_model, dim_ff
    Dh = D // nhead
    q_scale = 1.0 / math.sqrt(Dh)

    def dense(k, shape):
        return jax.random.normal(k, shape, jnp.float32) * 0.02

    keys = jax.random.split(key, num_layers + 1)
    names = ["wqkv_s", "bqkv_s", "wo_s", "bo_s", "wq_c", "bq_c", "wkv_c",
             "bkv_c", "wo_c", "bo_c", "ln1_g", "ln1_b", "ln2_g", "ln2_b",
             "ln3_g", "ln3_b", "w1", "b1", "w2", "b2"]
    stack = {n: [] for n in names}
    for k in keys[:-1]:
        ks = jax.random.split(k, 10)
        # 1/sqrt(Dh) attention scale folded into Wq.  NOTE: when importing real
        # PyTorch in_proj weights the Q-slice of the bias must be scaled too
        # (biases here are zero, so folding is exact).
        wq_s = dense(ks[0], (D, D)) * q_scale
        wqkv_s = jnp.concatenate(
            [wq_s, dense(ks[1], (D, D)), dense(ks[2], (D, D))], axis=1)
        wq_c = dense(ks[3], (D, D)) * q_scale
        wkv_c = jnp.concatenate(
            [dense(ks[4], (D, D)), dense(ks[5], (D, D))], axis=1)
        stack["wqkv_s"].append(wqkv_s.astype(jnp.bfloat16))
        stack["bqkv_s"].append(jnp.zeros((1, 3 * D), jnp.float32))
        stack["wo_s"].append(dense(ks[6], (D, D)).astype(jnp.bfloat16))
        stack["bo_s"].append(jnp.zeros((1, D), jnp.float32))
        stack["wq_c"].append(wq_c.astype(jnp.bfloat16))
        stack["bq_c"].append(jnp.zeros((1, D), jnp.float32))
        stack["wkv_c"].append(wkv_c.astype(jnp.bfloat16))
        stack["bkv_c"].append(jnp.zeros((1, 2 * D), jnp.float32))
        stack["wo_c"].append(dense(ks[7], (D, D)).astype(jnp.bfloat16))
        stack["bo_c"].append(jnp.zeros((1, D), jnp.float32))
        stack["ln1_g"].append(jnp.ones((1, D), jnp.float32))
        stack["ln1_b"].append(jnp.zeros((1, D), jnp.float32))
        stack["ln2_g"].append(jnp.ones((1, D), jnp.float32))
        stack["ln2_b"].append(jnp.zeros((1, D), jnp.float32))
        stack["ln3_g"].append(jnp.ones((1, D), jnp.float32))
        stack["ln3_b"].append(jnp.zeros((1, D), jnp.float32))
        stack["w1"].append(dense(ks[8], (D, F)).astype(jnp.bfloat16))
        stack["b1"].append(jnp.zeros((1, F), jnp.float32))
        stack["w2"].append(dense(ks[9], (F, D)).astype(jnp.bfloat16))
        stack["b2"].append(jnp.zeros((1, D), jnp.float32))

    params = {n: jnp.stack(v, axis=0) for n, v in stack.items()}

    # Classifier padded to a lane-dense multiple of 128 output columns.
    c_pad = ((num_classes + 127) // 128) * 128
    fc_w = dense(keys[-1], (D, num_classes))
    fc_w = jnp.zeros((D, c_pad), jnp.float32).at[:, :num_classes].set(fc_w)
    params["fc_w"] = fc_w.astype(jnp.bfloat16)
    params["fc_b"] = jnp.zeros((1, c_pad), jnp.float32)
    params["num_classes"] = num_classes
    return params


# --------------------------- pure-JAX reference ------------------------------ #

def _reference_forward(memory, tgt, params, nhead):
    """Plain-JAX reference mirroring the kernel math (bf16 matmul operands,
    f32 accumulation, f32 LN/softmax); softmax reciprocal is exact here."""
    eps = 1e-5

    def ln(v, g, b):
        mu = jnp.mean(v, -1, keepdims=True)
        vc = v - mu
        var = jnp.mean(vc * vc, -1, keepdims=True)
        return vc * lax.rsqrt(var + eps) * g + b

    def bdot(a, w):
        return jnp.dot(a.astype(jnp.bfloat16), w,
                       preferred_element_type=jnp.float32)

    def mha(q, k, v, mask, H):
        T_, D_ = q.shape
        S_ = k.shape[0]
        Dh = D_ // H
        qh = q.reshape(T_, H, Dh).transpose(1, 0, 2)
        kh = k.reshape(S_, H, Dh).transpose(1, 0, 2)
        vh = v.reshape(S_, H, Dh).transpose(1, 0, 2)
        s = jnp.einsum("htd,hsd->hts", qh.astype(jnp.bfloat16),
                       kh.astype(jnp.bfloat16),
                       preferred_element_type=jnp.float32)
        if mask is not None:
            s = s + mask
        p = jax.nn.softmax(s, axis=-1)
        o = jnp.einsum("hts,hsd->htd", p.astype(jnp.bfloat16),
                       vh.astype(jnp.bfloat16),
                       preferred_element_type=jnp.float32)
        return o.transpose(1, 0, 2).reshape(T_, D_)

    B, T, D = tgt.shape
    L = params["wqkv_s"].shape[0]
    row = jnp.arange(T)[:, None]
    col = jnp.arange(T)[None, :]
    causal = jnp.where(row >= col, 0.0, -1e30).astype(jnp.float32)

    outs = []
    for b in range(B):
        x = tgt[b]
        m = memory[b]
        for li in range(L):
            g = lambda name: params[name][li]
            qkv = bdot(x, g("wqkv_s")) + g("bqkv_s")
            q, k, v = qkv[:, :D], qkv[:, D:2 * D], qkv[:, 2 * D:]
            sa = bdot(mha(q, k, v, causal, nhead), g("wo_s")) + g("bo_s")
            x = ln(x + sa, g("ln1_g"), g("ln1_b"))
            qc = bdot(x, g("wq_c")) + g("bq_c")
            kv = bdot(m, g("wkv_c")) + g("bkv_c")
            ca = bdot(mha(qc, kv[:, :D], kv[:, D:], None, nhead),
                      g("wo_c")) + g("bo_c")
            x = ln(x + ca, g("ln2_g"), g("ln2_b"))
            f = jnp.maximum(bdot(x, g("w1")) + g("b1"), 0.0)
            ff = bdot(f, g("w2")) + g("b2")
            x = ln(x + ff, g("ln3_g"), g("ln3_b"))
        logits = bdot(x, params["fc_w"]) + params["fc_b"]
        outs.append(logits[:, :params["num_classes"]])
    return jnp.stack(outs, axis=0)


# --------------------------------- main -------------------------------------- #

if __name__ == "__main__":
    # Small, module-consistent shapes (scaled down from d_model=512, nhead=8).
    d_model, nhead, num_layers = 32, 4, 2
    num_classes, dim_ff = 10, 64
    B, T_tgt, S_mem = 2, 8, 16

    key = jax.random.PRNGKey(0)
    k_mem, k_tgt, k_par = jax.random.split(key, 3)
    memory = jax.random.normal(k_mem, (B, S_mem, d_model), jnp.float32)
    tgt = jax.random.normal(k_tgt, (B, T_tgt, d_model), jnp.float32)
    params = init_params(k_par, d_model, nhead, num_layers, num_classes, dim_ff)

    # TODO(synk): dropout inside TransformerDecoderLayer is treated as identity
    # (eval-mode semantics); training-mode stochastic dropout is not modeled.
    out = parallel_decoder_forward(memory, tgt, params, nhead)
    out = jax.block_until_ready(out)

    assert out.shape == (B, T_tgt, num_classes)
    assert bool(jnp.all(jnp.isfinite(out)))

    ref = _reference_forward(memory, tgt, params, nhead)
    max_err = float(jnp.max(jnp.abs(out - ref)))
    assert bool(jnp.allclose(out, ref, rtol=5e-2, atol=5e-2)), max_err

    print("KERNEL_OK")
</pallas_src>

<mosaic_0001>
module attributes {stable_mosaic.version = 11 : i64} {
  func.func @_decoder_stack_kernel(%arg0: i32, %arg1: i32, %arg2: memref<1x8x32xf32, #tpu.memory_space<vmem>>, %arg3: memref<1x16x32xbf16, #tpu.memory_space<vmem>>, %arg4: memref<1x32x96xbf16, #tpu.memory_space<vmem>>, %arg5: memref<1x1x96xf32, #tpu.memory_space<vmem>>, %arg6: memref<1x32x32xbf16, #tpu.memory_space<vmem>>, %arg7: memref<1x1x32xf32, #tpu.memory_space<vmem>>, %arg8: memref<1x32x32xbf16, #tpu.memory_space<vmem>>, %arg9: memref<1x1x32xf32, #tpu.memory_space<vmem>>, %arg10: memref<1x32x64xbf16, #tpu.memory_space<vmem>>, %arg11: memref<1x1x64xf32, #tpu.memory_space<vmem>>, %arg12: memref<1x32x32xbf16, #tpu.memory_space<vmem>>, %arg13: memref<1x1x32xf32, #tpu.memory_space<vmem>>, %arg14: memref<1x1x32xf32, #tpu.memory_space<vmem>>, %arg15: memref<1x1x32xf32, #tpu.memory_space<vmem>>, %arg16: memref<1x1x32xf32, #tpu.memory_space<vmem>>, %arg17: memref<1x1x32xf32, #tpu.memory_space<vmem>>, %arg18: memref<1x1x32xf32, #tpu.memory_space<vmem>>, %arg19: memref<1x1x32xf32, #tpu.memory_space<vmem>>, %arg20: memref<1x32x64xbf16, #tpu.memory_space<vmem>>, %arg21: memref<1x1x64xf32, #tpu.memory_space<vmem>>, %arg22: memref<1x64x32xbf16, #tpu.memory_space<vmem>>, %arg23: memref<1x1x32xf32, #tpu.memory_space<vmem>>, %arg24: memref<32x128xbf16, #tpu.memory_space<vmem>>, %arg25: memref<1x128xf32, #tpu.memory_space<vmem>>, %arg26: memref<1x8x128xf32, #tpu.memory_space<vmem>>, %arg27: memref<8x32xf32, #tpu.memory_space<vmem>>) attributes {dimension_semantics = [#tpu.dimension_semantics<parallel>, #tpu.dimension_semantics<arbitrary>], iteration_bounds = array<i64: 2, 2>, scalar_prefetch = 0 : i64, scratch_operands = 1 : i64, tpu.core_type = #tpu.core_type<tc>, window_params = [{transform_indices = @transform_0, window_bounds = array<i64: 1, 8, 32>}, {transform_indices = @transform_1, window_bounds = array<i64: 1, 16, 32>}, {transform_indices = @transform_2, window_bounds = array<i64: 1, 32, 96>}, {transform_indices = @transform_3, window_bounds = array<i64: 1, 1, 96>}, {transform_indices = @transform_4, window_bounds = array<i64: 1, 32, 32>}, {transform_indices = @transform_5, window_bounds = array<i64: 1, 1, 32>}, {transform_indices = @transform_6, window_bounds = array<i64: 1, 32, 32>}, {transform_indices = @transform_7, window_bounds = array<i64: 1, 1, 32>}, {transform_indices = @transform_8, window_bounds = array<i64: 1, 32, 64>}, {transform_indices = @transform_9, window_bounds = array<i64: 1, 1, 64>}, {transform_indices = @transform_10, window_bounds = array<i64: 1, 32, 32>}, {transform_indices = @transform_11, window_bounds = array<i64: 1, 1, 32>}, {transform_indices = @transform_12, window_bounds = array<i64: 1, 1, 32>}, {transform_indices = @transform_13, window_bounds = array<i64: 1, 1, 32>}, {transform_indices = @transform_14, window_bounds = array<i64: 1, 1, 32>}, {transform_indices = @transform_15, window_bounds = array<i64: 1, 1, 32>}, {transform_indices = @transform_16, window_bounds = array<i64: 1, 1, 32>}, {transform_indices = @transform_17, window_bounds = array<i64: 1, 1, 32>}, {transform_indices = @transform_18, window_bounds = array<i64: 1, 32, 64>}, {transform_indices = @transform_19, window_bounds = array<i64: 1, 1, 64>}, {transform_indices = @transform_20, window_bounds = array<i64: 1, 64, 32>}, {transform_indices = @transform_21, window_bounds = array<i64: 1, 1, 32>}, {pipeline_mode = #tpu.pipeline_mode<synchronous>, transform_indices = @transform_22, window_bounds = array<i64: 32, 128>}, {pipeline_mode = #tpu.pipeline_mode<synchronous>, transform_indices = @transform_23, window_bounds = array<i64: 1, 128>}, {transform_indices = @transform_24, window_bounds = array<i64: 1, 8, 128>}]} {
    %c0_i32 = arith.constant 0 : i32
    %0 = arith.cmpi eq, %arg1, %c0_i32 : i32
    %1 = arith.extui %0 : i1 to i32
    %c0_i32_0 = arith.constant 0 : i32
    %2 = arith.cmpi ne, %1, %c0_i32_0 : i32
    scf.if %2 {
      %c0_145 = arith.constant 0 : index
      %c0_146 = arith.constant 0 : index
      %c0_147 = arith.constant 0 : index
      %339 = vector.load %arg2[%c0_145, %c0_146, %c0_147] : memref<1x8x32xf32, #tpu.memory_space<vmem>>, vector<1x8x32xf32>
      %340 = vector.shape_cast %339 : vector<1x8x32xf32> to vector<8x32xf32>
      %c0_148 = arith.constant 0 : index
      %c0_149 = arith.constant 0 : index
      %341 = vector.load %arg27[%c0_148, %c0_149] : memref<8x32xf32, #tpu.memory_space<vmem>>, vector<8x32xf32>
      tpu.vector_store %arg27[%c0_148, %c0_149], %340 {strides = array<i32>} : memref<8x32xf32, #tpu.memory_space<vmem>>, vector<8x32xf32>,
    } else {
    }
    %c0 = arith.constant 0 : index
    %c0_1 = arith.constant 0 : index
    %3 = vector.load %arg27[%c0, %c0_1] : memref<8x32xf32, #tpu.memory_space<vmem>>, vector<8x32xf32>
    %c0_2 = arith.constant 0 : index
    %c0_3 = arith.constant 0 : index
    %c0_4 = arith.constant 0 : index
    %4 = vector.load %arg3[%c0_2, %c0_3, %c0_4] : memref<1x16x32xbf16, #tpu.memory_space<vmem>>, vector<1x16x32xbf16>
    %5 = vector.shape_cast %4 : vector<1x16x32xbf16> to vector<16x32xbf16>
    %6 = arith.truncf %3 : vector<8x32xf32> to vector<8x32xbf16>
    %c0_5 = arith.constant 0 : index
    %c0_6 = arith.constant 0 : index
    %c0_7 = arith.constant 0 : index
    %7 = vector.load %arg4[%c0_5, %c0_6, %c0_7] : memref<1x32x96xbf16, #tpu.memory_space<vmem>>, vector<1x32x96xbf16>
    %8 = vector.shape_cast %7 : vector<1x32x96xbf16> to vector<32x96xbf16>
    %cst = arith.constant dense<0.000000e+00> : vector<8x96xf32>
    %9 = tpu.matmul %6, %8, %cst {dimension_numbers = #tpu.dot_dimension_numbers<[1], [0], [0], [1], [0, 0, 1, 1], [], []>} : vector<8x32xbf16>, vector<32x96xbf16>, vector<8x96xf32> -> vector<8x96xf32>
    %c0_8 = arith.constant 0 : index
    %c0_9 = arith.constant 0 : index
    %c0_10 = arith.constant 0 : index
    %10 = vector.load %arg5[%c0_8, %c0_9, %c0_10] : memref<1x1x96xf32, #tpu.memory_space<vmem>>, vector<1x1x96xf32>
    %11 = vector.shape_cast %10 : vector<1x1x96xf32> to vector<1x96xf32>
    %12 = vector.broadcast %11 : vector<1x96xf32> to vector<8x96xf32>
    %13 = arith.addf %9, %12 : vector<8x96xf32>
    %14 = vector.extract_strided_slice %13 {offsets = [0, 0], sizes = [8, 32], strides = [1, 1]} : vector<8x96xf32> to vector<8x32xf32>
    %15 = vector.extract_strided_slice %13 {offsets = [0, 32], sizes = [8, 32], strides = [1, 1]} : vector<8x96xf32> to vector<8x32xf32>
    %16 = vector.extract_strided_slice %13 {offsets = [0, 64], sizes = [8, 32], strides = [1, 1]} : vector<8x96xf32> to vector<8x32xf32>
    %17 = tpu.iota {dimensions = array<i32: 0>} : vector<8x8xi32>
    %18 = tpu.iota {dimensions = array<i32: 1>} : vector<8x8xi32>
    %19 = arith.cmpi sge, %17, %18 : vector<8x8xi32>
    %cst_11 = arith.constant 0.000000e+00 : f32
    %cst_12 = arith.constant -1.000000e+30 : f32
    %20 = vector.broadcast %cst_11 : f32 to vector<8x8xf32>
    %21 = vector.broadcast %cst_12 : f32 to vector<8x8xf32>
    %22 = arith.select %19, %20, %21 : vector<8x8xi1>, vector<8x8xf32>
    %c0_13 = arith.constant 0 : index
    %c0_14 = arith.constant 0 : index
    %c0_15 = arith.constant 0 : index
    %23 = vector.load %arg6[%c0_13, %c0_14, %c0_15] : memref<1x32x32xbf16, #tpu.memory_space<vmem>>, vector<1x8x32xbf16>
    %24 = vector.shape_cast %23 : vector<1x8x32xbf16> to vector<8x32xbf16>
    %25 = vector.extract_strided_slice %14 {offsets = [0, 0], sizes = [8, 8], strides = [1, 1]} : vector<8x32xf32> to vector<8x8xf32>
    %26 = arith.truncf %25 : vector<8x8xf32> to vector<8x8xbf16>
    %27 = vector.extract_strided_slice %15 {offsets = [0, 0], sizes = [8, 8], strides = [1, 1]} : vector<8x32xf32> to vector<8x8xf32>
    %28 = arith.truncf %27 : vector<8x8xf32> to vector<8x8xbf16>
    %29 = vector.extract_strided_slice %16 {offsets = [0, 0], sizes = [8, 8], strides = [1, 1]} : vector<8x32xf32> to vector<8x8xf32>
    %30 = arith.truncf %29 : vector<8x8xf32> to vector<8x8xbf16>
    %cst_16 = arith.constant dense<0.000000e+00> : vector<8x8xf32>
    %31 = tpu.matmul %26, %28, %cst_16 {dimension_numbers = #tpu.dot_dimension_numbers<[1], [1], [0], [0], [0, 0, 1, 0], [], []>} : vector<8x8xbf16>, vector<8x8xbf16>, vector<8x8xf32> -> vector<8x8xf32>
    %32 = arith.addf %31, %22 : vector<8x8xf32>
    %cst_17 = arith.constant dense<0xFF800000> : vector<8xf32>
    %33 = vector.multi_reduction <maximumf>, %32, %cst_17 [1] : vector<8x8xf32> to vector<8xf32>
    %34 = vector.shape_cast %33 : vector<8xf32> to vector<8x1xf32>
    %35 = vector.broadcast %34 : vector<8x1xf32> to vector<8x8xf32>
    %36 = arith.subf %32, %35 : vector<8x8xf32>
    %37 = math.exp %36 : vector<8x8xf32>
    %cst_18 = arith.constant dense<0.000000e+00> : vector<8xf32>
    %38 = vector.multi_reduction <add>, %37, %cst_18 [1] : vector<8x8xf32> to vector<8xf32>
    %39 = vector.shape_cast %38 : vector<8xf32> to vector<8x1xf32>
    %40 = tpu.reciprocal %39 {approx = true} : vector<8x1xf32> -> vector<8x1xf32>
    %41 = vector.broadcast %40 : vector<8x1xf32> to vector<8x8xf32>
    %42 = arith.mulf %37, %41 : vector<8x8xf32>
    %43 = arith.truncf %42 : vector<8x8xf32> to vector<8x8xbf16>
    %cst_19 = arith.constant dense<0.000000e+00> : vector<8x8xf32>
    %44 = tpu.matmul %43, %30, %cst_19 {dimension_numbers = #tpu.dot_dimension_numbers<[1], [0], [0], [1], [0, 0, 1, 1], [], []>} : vector<8x8xbf16>, vector<8x8xbf16>, vector<8x8xf32> -> vector<8x8xf32>
    %45 = arith.truncf %44 : vector<8x8xf32> to vector<8x8xbf16>
    %cst_20 = arith.constant dense<0.000000e+00> : vector<8x32xf32>
    %46 = tpu.matmul %45, %24, %cst_20 {dimension_numbers = #tpu.dot_dimension_numbers<[1], [0], [0], [1], [0, 0, 1, 1], [], []>} : vector<8x8xbf16>, vector<8x32xbf16>, vector<8x32xf32> -> vector<8x32xf32>
    %c0_21 = arith.constant 0 : index
    %c8 = arith.constant 8 : index
    %c0_22 = arith.constant 0 : index
    %47 = vector.load %arg6[%c0_21, %c8, %c0_22] : memref<1x32x32xbf16, #tpu.memory_space<vmem>>, vector<1x8x32xbf16>
    %48 = vector.shape_cast %47 : vector<1x8x32xbf16> to vector<8x32xbf16>
    %49 = vector.extract_strided_slice %14 {offsets = [0, 8], sizes = [8, 8], strides = [1, 1]} : vector<8x32xf32> to vector<8x8xf32>
    %50 = arith.truncf %49 : vector<8x8xf32> to vector<8x8xbf16>
    %51 = vector.extract_strided_slice %15 {offsets = [0, 8], sizes = [8, 8], strides = [1, 1]} : vector<8x32xf32> to vector<8x8xf32>
    %52 = arith.truncf %51 : vector<8x8xf32> to vector<8x8xbf16>
    %53 = vector.extract_strided_slice %16 {offsets = [0, 8], sizes = [8, 8], strides = [1, 1]} : vector<8x32xf32> to vector<8x8xf32>
    %54 = arith.truncf %53 : vector<8x8xf32> to vector<8x8xbf16>
    %cst_23 = arith.constant dense<0.000000e+00> : vector<8x8xf32>
    %55 = tpu.matmul %50, %52, %cst_23 {dimension_numbers = #tpu.dot_dimension_numbers<[1], [1], [0], [0], [0, 0, 1, 0], [], []>} : vector<8x8xbf16>, vector<8x8xbf16>, vector<8x8xf32> -> vector<8x8xf32>
    %56 = arith.addf %55, %22 : vector<8x8xf32>
    %cst_24 = arith.constant dense<0xFF800000> : vector<8xf32>
    %57 = vector.multi_reduction <maximumf>, %56, %cst_24 [1] : vector<8x8xf32> to vector<8xf32>
    %58 = vector.shape_cast %57 : vector<8xf32> to vector<8x1xf32>
    %59 = vector.broadcast %58 : vector<8x1xf32> to vector<8x8xf32>
    %60 = arith.subf %56, %59 : vector<8x8xf32>
    %61 = math.exp %60 : vector<8x8xf32>
    %cst_25 = arith.constant dense<0.000000e+00> : vector<8xf32>
    %62 = vector.multi_reduction <add>, %61, %cst_25 [1] : vector<8x8xf32> to vector<8xf32>
    %63 = vector.shape_cast %62 : vector<8xf32> to vector<8x1xf32>
    %64 = tpu.reciprocal %63 {approx = true} : vector<8x1xf32> -> vector<8x1xf32>
    %65 = vector.broadcast %64 : vector<8x1xf32> to vector<8x8xf32>
    %66 = arith.mulf %61, %65 : vector<8x8xf32>
    %67 = arith.truncf %66 : vector<8x8xf32> to vector<8x8xbf16>
    %cst_26 = arith.constant dense<0.000000e+00> : vector<8x8xf32>
    %68 = tpu.matmul %67, %54, %cst_26 {dimension_numbers = #tpu.dot_dimension_numbers<[1], [0], [0], [1], [0, 0, 1, 1], [], []>} : vector<8x8xbf16>, vector<8x8xbf16>, vector<8x8xf32> -> vector<8x8xf32>
    %69 = arith.truncf %68 : vector<8x8xf32> to vector<8x8xbf16>
    %cst_27 = arith.constant dense<0.000000e+00> : vector<8x32xf32>
    %70 = tpu.matmul %69, %48, %cst_27 {dimension_numbers = #tpu.dot_dimension_numbers<[1], [0], [0], [1], [0, 0, 1, 1], [], []>} : vector<8x8xbf16>, vector<8x32xbf16>, vector<8x32xf32> -> vector<8x32xf32>
    %71 = arith.addf %46, %70 : vector<8x32xf32>
    %c0_28 = arith.constant 0 : index
    %c16 = arith.constant 16 : index
    %c0_29 = arith.constant 0 : index
    %72 = vector.load %arg6[%c0_28, %c16, %c0_29] : memref<1x32x32xbf16, #tpu.memory_space<vmem>>, vector<1x8x32xbf16>
    %73 = vector.shape_cast %72 : vector<1x8x32xbf16> to vector<8x32xbf16>
    %74 = vector.extract_strided_slice %14 {offsets = [0, 16], sizes = [8, 8], strides = [1, 1]} : vector<8x32xf32> to vector<8x8xf32>
    %75 = arith.truncf %74 : vector<8x8xf32> to vector<8x8xbf16>
    %76 = vector.extract_strided_slice %15 {offsets = [0, 16], sizes = [8, 8], strides = [1, 1]} : vector<8x32xf32> to vector<8x8xf32>
    %77 = arith.truncf %76 : vector<8x8xf32> to vector<8x8xbf16>
    %78 = vector.extract_strided_slice %16 {offsets = [0, 16], sizes = [8, 8], strides = [1, 1]} : vector<8x32xf32> to vector<8x8xf32>
    %79 = arith.truncf %78 : vector<8x8xf32> to vector<8x8xbf16>
    %cst_30 = arith.constant dense<0.000000e+00> : vector<8x8xf32>
    %80 = tpu.matmul %75, %77, %cst_30 {dimension_numbers = #tpu.dot_dimension_numbers<[1], [1], [0], [0], [0, 0, 1, 0], [], []>} : vector<8x8xbf16>, vector<8x8xbf16>, vector<8x8xf32> -> vector<8x8xf32>
    %81 = arith.addf %80, %22 : vector<8x8xf32>
    %cst_31 = arith.constant dense<0xFF800000> : vector<8xf32>
    %82 = vector.multi_reduction <maximumf>, %81, %cst_31 [1] : vector<8x8xf32> to vector<8xf32>
    %83 = vector.shape_cast %82 : vector<8xf32> to vector<8x1xf32>
    %84 = vector.broadcast %83 : vector<8x1xf32> to vector<8x8xf32>
    %85 = arith.subf %81, %84 : vector<8x8xf32>
    %86 = math.exp %85 : vector<8x8xf32>
    %cst_32 = arith.constant dense<0.000000e+00> : vector<8xf32>
    %87 = vector.multi_reduction <add>, %86, %cst_32 [1] : vector<8x8xf32> to vector<8xf32>
    %88 = vector.shape_cast %87 : vector<8xf32> to vector<8x1xf32>
    %89 = tpu.reciprocal %88 {approx = true} : vector<8x1xf32> -> vector<8x1xf32>
    %90 = vector.broadcast %89 : vector<8x1xf32> to vector<8x8xf32>
    %91 = arith.mulf %86, %90 : vector<8x8xf32>
    %92 = arith.truncf %91 : vector<8x8xf32> to vector<8x8xbf16>
    %cst_33 = arith.constant dense<0.000000e+00> : vector<8x8xf32>
    %93 = tpu.matmul %92, %79, %cst_33 {dimension_numbers = #tpu.dot_dimension_numbers<[1], [0], [0], [1], [0, 0, 1, 1], [], []>} : vector<8x8xbf16>, vector<8x8xbf16>, vector<8x8xf32> -> vector<8x8xf32>
    %94 = arith.truncf %93 : vector<8x8xf32> to vector<8x8xbf16>
    %cst_34 = arith.constant dense<0.000000e+00> : vector<8x32xf32>
    %95 = tpu.matmul %94, %73, %cst_34 {dimension_numbers = #tpu.dot_dimension_numbers<[1], [0], [0], [1], [0, 0, 1, 1], [], []>} : vector<8x8xbf16>, vector<8x32xbf16>, vector<8x32xf32> -> vector<8x32xf32>
    %96 = arith.addf %71, %95 : vector<8x32xf32>
    %c0_35 = arith.constant 0 : index
    %c24 = arith.constant 24 : index
    %c0_36 = arith.constant 0 : index
    %97 = vector.load %arg6[%c0_35, %c24, %c0_36] : memref<1x32x32xbf16, #tpu.memory_space<vmem>>, vector<1x8x32xbf16>
    %98 = vector.shape_cast %97 : vector<1x8x32xbf16> to vector<8x32xbf16>
    %99 = vector.extract_strided_slice %14 {offsets = [0, 24], sizes = [8, 8], strides = [1, 1]} : vector<8x32xf32> to vector<8x8xf32>
    %100 = arith.truncf %99 : vector<8x8xf32> to vector<8x8xbf16>
    %101 = vector.extract_strided_slice %15 {offsets = [0, 24], sizes = [8, 8], strides = [1, 1]} : vector<8x32xf32> to vector<8x8xf32>
    %102 = arith.truncf %101 : vector<8x8xf32> to vector<8x8xbf16>
    %103 = vector.extract_strided_slice %16 {offsets = [0, 24], sizes = [8, 8], strides = [1, 1]} : vector<8x32xf32> to vector<8x8xf32>
    %104 = arith.truncf %103 : vector<8x8xf32> to vector<8x8xbf16>
    %cst_37 = arith.constant dense<0.000000e+00> : vector<8x8xf32>
    %105 = tpu.matmul %100, %102, %cst_37 {dimension_numbers = #tpu.dot_dimension_numbers<[1], [1], [0], [0], [0, 0, 1, 0], [], []>} : vector<8x8xbf16>, vector<8x8xbf16>, vector<8x8xf32> -> vector<8x8xf32>
    %106 = arith.addf %105, %22 : vector<8x8xf32>
    %cst_38 = arith.constant dense<0xFF800000> : vector<8xf32>
    %107 = vector.multi_reduction <maximumf>, %106, %cst_38 [1] : vector<8x8xf32> to vector<8xf32>
    %108 = vector.shape_cast %107 : vector<8xf32> to vector<8x1xf32>
    %109 = vector.broadcast %108 : vector<8x1xf32> to vector<8x8xf32>
    %110 = arith.subf %106, %109 : vector<8x8xf32>
    %111 = math.exp %110 : vector<8x8xf32>
    %cst_39 = arith.constant dense<0.000000e+00> : vector<8xf32>
    %112 = vector.multi_reduction <add>, %111, %cst_39 [1] : vector<8x8xf32> to vector<8xf32>
    %113 = vector.shape_cast %112 : vector<8xf32> to vector<8x1xf32>
    %114 = tpu.reciprocal %113 {approx = true} : vector<8x1xf32> -> vector<8x1xf32>
    %115 = vector.broadcast %114 : vector<8x1xf32> to vector<8x8xf32>
    %116 = arith.mulf %111, %115 : vector<8x8xf32>
    %117 = arith.truncf %116 : vector<8x8xf32> to vector<8x8xbf16>
    %cst_40 = arith.constant dense<0.000000e+00> : vector<8x8xf32>
    %118 = tpu.matmul %117, %104, %cst_40 {dimension_numbers = #tpu.dot_dimension_numbers<[1], [0], [0], [1], [0, 0, 1, 1], [], []>} : vector<8x8xbf16>, vector<8x8xbf16>, vector<8x8xf32> -> vector<8x8xf32>
    %119 = arith.truncf %118 : vector<8x8xf32> to vector<8x8xbf16>
    %cst_41 = arith.constant dense<0.000000e+00> : vector<8x32xf32>
    %120 = tpu.matmul %119, %98, %cst_41 {dimension_numbers = #tpu.dot_dimension_numbers<[1], [0], [0], [1], [0, 0, 1, 1], [], []>} : vector<8x8xbf16>, vector<8x32xbf16>, vector<8x32xf32> -> vector<8x32xf32>
    %121 = arith.addf %96, %120 : vector<8x32xf32>
    %c0_42 = arith.constant 0 : index
    %c0_43 = arith.constant 0 : index
    %c0_44 = arith.constant 0 : index
    %122 = vector.load %arg7[%c0_42, %c0_43, %c0_44] : memref<1x1x32xf32, #tpu.memory_space<vmem>>, vector<1x1x32xf32>
    %123 = vector.shape_cast %122 : vector<1x1x32xf32> to vector<1x32xf32>
    %124 = vector.broadcast %123 : vector<1x32xf32> to vector<8x32xf32>
    %125 = arith.addf %121, %124 : vector<8x32xf32>
    %126 = arith.addf %3, %125 : vector<8x32xf32>
    %cst_45 = arith.constant dense<0.000000e+00> : vector<8xf32>
    %127 = vector.multi_reduction <add>, %126, %cst_45 [1] : vector<8x32xf32> to vector<8xf32>
    %128 = vector.shape_cast %127 : vector<8xf32> to vector<8x1xf32>
    %cst_46 = arith.constant 3.200000e+01 : f32
    %129 = vector.broadcast %cst_46 : f32 to vector<8x1xf32>
    %130 = arith.divf %128, %129 : vector<8x1xf32>
    %131 = vector.broadcast %130 : vector<8x1xf32> to vector<8x32xf32>
    %132 = arith.subf %126, %131 : vector<8x32xf32>
    %133 = arith.mulf %132, %132 : vector<8x32xf32>
    %cst_47 = arith.constant dense<0.000000e+00> : vector<8xf32>
    %134 = vector.multi_reduction <add>, %133, %cst_47 [1] : vector<8x32xf32> to vector<8xf32>
    %135 = vector.shape_cast %134 : vector<8xf32> to vector<8x1xf32>
    %cst_48 = arith.constant 3.200000e+01 : f32
    %136 = vector.broadcast %cst_48 : f32 to vector<8x1xf32>
    %137 = arith.divf %135, %136 : vector<8x1xf32>
    %cst_49 = arith.constant 9.99999974E-6 : f32
    %138 = vector.broadcast %cst_49 : f32 to vector<8x1xf32>
    %139 = arith.addf %137, %138 : vector<8x1xf32>
    %140 = math.rsqrt %139 : vector<8x1xf32>
    %141 = vector.broadcast %140 : vector<8x1xf32> to vector<8x32xf32>
    %142 = arith.mulf %132, %141 : vector<8x32xf32>
    %c0_50 = arith.constant 0 : index
    %c0_51 = arith.constant 0 : index
    %c0_52 = arith.constant 0 : index
    %143 = vector.load %arg14[%c0_50, %c0_51, %c0_52] : memref<1x1x32xf32, #tpu.memory_space<vmem>>, vector<1x1x32xf32>
    %144 = vector.shape_cast %143 : vector<1x1x32xf32> to vector<1x32xf32>
    %145 = vector.broadcast %144 : vector<1x32xf32> to vector<8x32xf32>
    %146 = arith.mulf %142, %145 : vector<8x32xf32>
    %c0_53 = arith.constant 0 : index
    %c0_54 = arith.constant 0 : index
    %c0_55 = arith.constant 0 : index
    %147 = vector.load %arg15[%c0_53, %c0_54, %c0_55] : memref<1x1x32xf32, #tpu.memory_space<vmem>>, vector<1x1x32xf32>
    %148 = vector.shape_cast %147 : vector<1x1x32xf32> to vector<1x32xf32>
    %149 = vector.broadcast %148 : vector<1x32xf32> to vector<8x32xf32>
    %150 = arith.addf %146, %149 : vector<8x32xf32>
    %151 = arith.truncf %150 : vector<8x32xf32> to vector<8x32xbf16>
    %c0_56 = arith.constant 0 : index
    %c0_57 = arith.constant 0 : index
    %c0_58 = arith.constant 0 : index
    %152 = vector.load %arg8[%c0_56, %c0_57, %c0_58] : memref<1x32x32xbf16, #tpu.memory_space<vmem>>, vector<1x32x32xbf16>
    %153 = vector.shape_cast %152 : vector<1x32x32xbf16> to vector<32x32xbf16>
    %cst_59 = arith.constant dense<0.000000e+00> : vector<8x32xf32>
    %154 = tpu.matmul %151, %153, %cst_59 {dimension_numbers = #tpu.dot_dimension_numbers<[1], [0], [0], [1], [0, 0, 1, 1], [], []>} : vector<8x32xbf16>, vector<32x32xbf16>, vector<8x32xf32> -> vector<8x32xf32>
    %c0_60 = arith.constant 0 : index
    %c0_61 = arith.constant 0 : index
    %c0_62 = arith.constant 0 : index
    %155 = vector.load %arg9[%c0_60, %c0_61, %c0_62] : memref<1x1x32xf32, #tpu.memory_space<vmem>>, vector<1x1x32xf32>
    %156 = vector.shape_cast %155 : vector<1x1x32xf32> to vector<1x32xf32>
    %157 = vector.broadcast %156 : vector<1x32xf32> to vector<8x32xf32>
    %158 = arith.addf %154, %157 : vector<8x32xf32>
    %c0_63 = arith.constant 0 : index
    %c0_64 = arith.constant 0 : index
    %c0_65 = arith.constant 0 : index
    %159 = vector.load %arg10[%c0_63, %c0_64, %c0_65] : memref<1x32x64xbf16, #tpu.memory_space<vmem>>, vector<1x32x64xbf16>
    %160 = vector.shape_cast %159 : vector<1x32x64xbf16> to vector<32x64xbf16>
    %cst_66 = arith.constant dense<0.000000e+00> : vector<16x64xf32>
    %161 = tpu.matmul %5, %160, %cst_66 {dimension_numbers = #tpu.dot_dimension_numbers<[1], [0], [0], [1], [0, 0, 1, 1], [], []>} : vector<16x32xbf16>, vector<32x64xbf16>, vector<16x64xf32> -> vector<16x64xf32>
    %c0_67 = arith.constant 0 : index
    %c0_68 = arith.constant 0 : index
    %c0_69 = arith.constant 0 : index
    %162 = vector.load %arg11[%c0_67, %c0_68, %c0_69] : memref<1x1x64xf32, #tpu.memory_space<vmem>>, vector<1x1x64xf32>
    %163 = vector.shape_cast %162 : vector<1x1x64xf32> to vector<1x64xf32>
    %164 = vector.broadcast %163 : vector<1x64xf32> to vector<16x64xf32>
    %165 = arith.addf %161, %164 : vector<16x64xf32>
    %166 = vector.extract_strided_slice %165 {offsets = [0, 0], sizes = [16, 32], strides = [1, 1]} : vector<16x64xf32> to vector<16x32xf32>
    %167 = vector.extract_strided_slice %165 {offsets = [0, 32], sizes = [16, 32], strides = [1, 1]} : vector<16x64xf32> to vector<16x32xf32>
    %c0_70 = arith.constant 0 : index
    %c0_71 = arith.constant 0 : index
    %c0_72 = arith.constant 0 : index
    %168 = vector.load %arg12[%c0_70, %c0_71, %c0_72] : memref<1x32x32xbf16, #tpu.memory_space<vmem>>, vector<1x8x32xbf16>
    %169 = vector.shape_cast %168 : vector<1x8x32xbf16> to vector<8x32xbf16>
    %170 = vector.extract_strided_slice %158 {offsets = [0, 0], sizes = [8, 8], strides = [1, 1]} : vector<8x32xf32> to vector<8x8xf32>
    %171 = arith.truncf %170 : vector<8x8xf32> to vector<8x8xbf16>
    %172 = vector.extract_strided_slice %166 {offsets = [0, 0], sizes = [16, 8], strides = [1, 1]} : vector<16x32xf32> to vector<16x8xf32>
    %173 = arith.truncf %172 : vector<16x8xf32> to vector<16x8xbf16>
    %174 = vector.extract_strided_slice %167 {offsets = [0, 0], sizes = [16, 8], strides = [1, 1]} : vector<16x32xf32> to vector<16x8xf32>
    %175 = arith.truncf %174 : vector<16x8xf32> to vector<16x8xbf16>
    %cst_73 = arith.constant dense<0.000000e+00> : vector<8x16xf32>
    %176 = tpu.matmul %171, %173, %cst_73 {dimension_numbers = #tpu.dot_dimension_numbers<[1], [1], [0], [0], [0, 0, 1, 0], [], []>} : vector<8x8xbf16>, vector<16x8xbf16>, vector<8x16xf32> -> vector<8x16xf32>
    %cst_74 = arith.constant dense<0xFF800000> : vector<8xf32>
    %177 = vector.multi_reduction <maximumf>, %176, %cst_74 [1] : vector<8x16xf32> to vector<8xf32>
    %178 = vector.shape_cast %177 : vector<8xf32> to vector<8x1xf32>
    %179 = vector.broadcast %178 : vector<8x1xf32> to vector<8x16xf32>
    %180 = arith.subf %176, %179 : vector<8x16xf32>
    %181 = math.exp %180 : vector<8x16xf32>
    %cst_75 = arith.constant dense<0.000000e+00> : vector<8xf32>
    %182 = vector.multi_reduction <add>, %181, %cst_75 [1] : vector<8x16xf32> to vector<8xf32>
    %183 = vector.shape_cast %182 : vector<8xf32> to vector<8x1xf32>
    %184 = tpu.reciprocal %183 {approx = true} : vector<8x1xf32> -> vector<8x1xf32>
    %185 = vector.broadcast %184 : vector<8x1xf32> to vector<8x16xf32>
    %186 = arith.mulf %181, %185 : vector<8x16xf32>
    %187 = arith.truncf %186 : vector<8x16xf32> to vector<8x16xbf16>
    %cst_76 = arith.constant dense<0.000000e+00> : vector<8x8xf32>
    %188 = tpu.matmul %187, %175, %cst_76 {dimension_numbers = #tpu.dot_dimension_numbers<[1], [0], [0], [1], [0, 0, 1, 1], [], []>} : vector<8x16xbf16>, vector<16x8xbf16>, vector<8x8xf32> -> vector<8x8xf32>
    %189 = arith.truncf %188 : vector<8x8xf32> to vector<8x8xbf16>
    %cst_77 = arith.constant dense<0.000000e+00> : vector<8x32xf32>
    %190 = tpu.matmul %189, %169, %cst_77 {dimension_numbers = #tpu.dot_dimension_numbers<[1], [0], [0], [1], [0, 0, 1, 1], [], []>} : vector<8x8xbf16>, vector<8x32xbf16>, vector<8x32xf32> -> vector<8x32xf32>
    %c0_78 = arith.constant 0 : index
    %c8_79 = arith.constant 8 : index
    %c0_80 = arith.constant 0 : index
    %191 = vector.load %arg12[%c0_78, %c8_79, %c0_80] : memref<1x32x32xbf16, #tpu.memory_space<vmem>>, vector<1x8x32xbf16>
    %192 = vector.shape_cast %191 : vector<1x8x32xbf16> to vector<8x32xbf16>
    %193 = vector.extract_strided_slice %158 {offsets = [0, 8], sizes = [8, 8], strides = [1, 1]} : vector<8x32xf32> to vector<8x8xf32>
    %194 = arith.truncf %193 : vector<8x8xf32> to vector<8x8xbf16>
    %195 = vector.extract_strided_slice %166 {offsets = [0, 8], sizes = [16, 8], strides = [1, 1]} : vector<16x32xf32> to vector<16x8xf32>
    %196 = arith.truncf %195 : vector<16x8xf32> to vector<16x8xbf16>
    %197 = vector.extract_strided_slice %167 {offsets = [0, 8], sizes = [16, 8], strides = [1, 1]} : vector<16x32xf32> to vector<16x8xf32>
    %198 = arith.truncf %197 : vector<16x8xf32> to vector<16x8xbf16>
    %cst_81 = arith.constant dense<0.000000e+00> : vector<8x16xf32>
    %199 = tpu.matmul %194, %196, %cst_81 {dimension_numbers = #tpu.dot_dimension_numbers<[1], [1], [0], [0], [0, 0, 1, 0], [], []>} : vector<8x8xbf16>, vector<16x8xbf16>, vector<8x16xf32> -> vector<8x16xf32>
    %cst_82 = arith.constant dense<0xFF800000> : vector<8xf32>
    %200 = vector.multi_reduction <maximumf>, %199, %cst_82 [1] : vector<8x16xf32> to vector<8xf32>
    %201 = vector.shape_cast %200 : vector<8xf32> to vector<8x1xf32>
    %202 = vector.broadcast %201 : vector<8x1xf32> to vector<8x16xf32>
    %203 = arith.subf %199, %202 : vector<8x16xf32>
    %204 = math.exp %203 : vector<8x16xf32>
    %cst_83 = arith.constant dense<0.000000e+00> : vector<8xf32>
    %205 = vector.multi_reduction <add>, %204, %cst_83 [1] : vector<8x16xf32> to vector<8xf32>
    %206 = vector.shape_cast %205 : vector<8xf32> to vector<8x1xf32>
    %207 = tpu.reciprocal %206 {approx = true} : vector<8x1xf32> -> vector<8x1xf32>
    %208 = vector.broadcast %207 : vector<8x1xf32> to vector<8x16xf32>
    %209 = arith.mulf %204, %208 : vector<8x16xf32>
    %210 = arith.truncf %209 : vector<8x16xf32> to vector<8x16xbf16>
    %cst_84 = arith.constant dense<0.000000e+00> : vector<8x8xf32>
    %211 = tpu.matmul %210, %198, %cst_84 {dimension_numbers = #tpu.dot_dimension_numbers<[1], [0], [0], [1], [0, 0, 1, 1], [], []>} : vector<8x16xbf16>, vector<16x8xbf16>, vector<8x8xf32> -> vector<8x8xf32>
    %212 = arith.truncf %211 : vector<8x8xf32> to vector<8x8xbf16>
    %cst_85 = arith.constant dense<0.000000e+00> : vector<8x32xf32>
    %213 = tpu.matmul %212, %192, %cst_85 {dimension_numbers = #tpu.dot_dimension_numbers<[1], [0], [0], [1], [0, 0, 1, 1], [], []>} : vector<8x8xbf16>, vector<8x32xbf16>, vector<8x32xf32> -> vector<8x32xf32>
    %214 = arith.addf %190, %213 : vector<8x32xf32>
    %c0_86 = arith.constant 0 : index
    %c16_87 = arith.constant 16 : index
    %c0_88 = arith.constant 0 : index
    %215 = vector.load %arg12[%c0_86, %c16_87, %c0_88] : memref<1x32x32xbf16, #tpu.memory_space<vmem>>, vector<1x8x32xbf16>
    %216 = vector.shape_cast %215 : vector<1x8x32xbf16> to vector<8x32xbf16>
    %217 = vector.extract_strided_slice %158 {offsets = [0, 16], sizes = [8, 8], strides = [1, 1]} : vector<8x32xf32> to vector<8x8xf32>
    %218 = arith.truncf %217 : vector<8x8xf32> to vector<8x8xbf16>
    %219 = vector.extract_strided_slice %166 {offsets = [0, 16], sizes = [16, 8], strides = [1, 1]} : vector<16x32xf32> to vector<16x8xf32>
    %220 = arith.truncf %219 : vector<16x8xf32> to vector<16x8xbf16>
    %221 = vector.extract_strided_slice %167 {offsets = [0, 16], sizes = [16, 8], strides = [1, 1]} : vector<16x32xf32> to vector<16x8xf32>
    %222 = arith.truncf %221 : vector<16x8xf32> to vector<16x8xbf16>
    %cst_89 = arith.constant dense<0.000000e+00> : vector<8x16xf32>
    %223 = tpu.matmul %218, %220, %cst_89 {dimension_numbers = #tpu.dot_dimension_numbers<[1], [1], [0], [0], [0, 0, 1, 0], [], []>} : vector<8x8xbf16>, vector<16x8xbf16>, vector<8x16xf32> -> vector<8x16xf32>
    %cst_90 = arith.constant dense<0xFF800000> : vector<8xf32>
    %224 = vector.multi_reduction <maximumf>, %223, %cst_90 [1] : vector<8x16xf32> to vector<8xf32>
    %225 = vector.shape_cast %224 : vector<8xf32> to vector<8x1xf32>
    %226 = vector.broadcast %225 : vector<8x1xf32> to vector<8x16xf32>
    %227 = arith.subf %223, %226 : vector<8x16xf32>
    %228 = math.exp %227 : vector<8x16xf32>
    %cst_91 = arith.constant dense<0.000000e+00> : vector<8xf32>
    %229 = vector.multi_reduction <add>, %228, %cst_91 [1] : vector<8x16xf32> to vector<8xf32>
    %230 = vector.shape_cast %229 : vector<8xf32> to vector<8x1xf32>
    %231 = tpu.reciprocal %230 {approx = true} : vector<8x1xf32> -> vector<8x1xf32>
    %232 = vector.broadcast %231 : vector<8x1xf32> to vector<8x16xf32>
    %233 = arith.mulf %228, %232 : vector<8x16xf32>
    %234 = arith.truncf %233 : vector<8x16xf32> to vector<8x16xbf16>
    %cst_92 = arith.constant dense<0.000000e+00> : vector<8x8xf32>
    %235 = tpu.matmul %234, %222, %cst_92 {dimension_numbers = #tpu.dot_dimension_numbers<[1], [0], [0], [1], [0, 0, 1, 1], [], []>} : vector<8x16xbf16>, vector<16x8xbf16>, vector<8x8xf32> -> vector<8x8xf32>
    %236 = arith.truncf %235 : vector<8x8xf32> to vector<8x8xbf16>
    %cst_93 = arith.constant dense<0.000000e+00> : vector<8x32xf32>
    %237 = tpu.matmul %236, %216, %cst_93 {dimension_numbers = #tpu.dot_dimension_numbers<[1], [0], [0], [1], [0, 0, 1, 1], [], []>} : vector<8x8xbf16>, vector<8x32xbf16>, vector<8x32xf32> -> vector<8x32xf32>
    %238 = arith.addf %214, %237 : vector<8x32xf32>
    %c0_94 = arith.constant 0 : index
    %c24_95 = arith.constant 24 : index
    %c0_96 = arith.constant 0 : index
    %239 = vector.load %arg12[%c0_94, %c24_95, %c0_96] : memref<1x32x32xbf16, #tpu.memory_space<vmem>>, vector<1x8x32xbf16>
    %240 = vector.shape_cast %239 : vector<1x8x32xbf16> to vector<8x32xbf16>
    %241 = vector.extract_strided_slice %158 {offsets = [0, 24], sizes = [8, 8], strides = [1, 1]} : vector<8x32xf32> to vector<8x8xf32>
    %242 = arith.truncf %241 : vector<8x8xf32> to vector<8x8xbf16>
    %243 = vector.extract_strided_slice %166 {offsets = [0, 24], sizes = [16, 8], strides = [1, 1]} : vector<16x32xf32> to vector<16x8xf32>
    %244 = arith.truncf %243 : vector<16x8xf32> to vector<16x8xbf16>
    %245 = vector.extract_strided_slice %167 {offsets = [0, 24], sizes = [16, 8], strides = [1, 1]} : vector<16x32xf32> to vector<16x8xf32>
    %246 = arith.truncf %245 : vector<16x8xf32> to vector<16x8xbf16>
    %cst_97 = arith.constant dense<0.000000e+00> : vector<8x16xf32>
    %247 = tpu.matmul %242, %244, %cst_97 {dimension_numbers = #tpu.dot_dimension_numbers<[1], [1], [0], [0], [0, 0, 1, 0], [], []>} : vector<8x8xbf16>, vector<16x8xbf16>, vector<8x16xf32> -> vector<8x16xf32>
    %cst_98 = arith.constant dense<0xFF800000> : vector<8xf32>
    %248 = vector.multi_reduction <maximumf>, %247, %cst_98 [1] : vector<8x16xf32> to vector<8xf32>
    %249 = vector.shape_cast %248 : vector<8xf32> to vector<8x1xf32>
    %250 = vector.broadcast %249 : vector<8x1xf32> to vector<8x16xf32>
    %251 = arith.subf %247, %250 : vector<8x16xf32>
    %252 = math.exp %251 : vector<8x16xf32>
    %cst_99 = arith.constant dense<0.000000e+00> : vector<8xf32>
    %253 = vector.multi_reduction <add>, %252, %cst_99 [1] : vector<8x16xf32> to vector<8xf32>
    %254 = vector.shape_cast %253 : vector<8xf32> to vector<8x1xf32>
    %255 = tpu.reciprocal %254 {approx = true} : vector<8x1xf32> -> vector<8x1xf32>
    %256 = vector.broadcast %255 : vector<8x1xf32> to vector<8x16xf32>
    %257 = arith.mulf %252, %256 : vector<8x16xf32>
    %258 = arith.truncf %257 : vector<8x16xf32> to vector<8x16xbf16>
    %cst_100 = arith.constant dense<0.000000e+00> : vector<8x8xf32>
    %259 = tpu.matmul %258, %246, %cst_100 {dimension_numbers = #tpu.dot_dimension_numbers<[1], [0], [0], [1], [0, 0, 1, 1], [], []>} : vector<8x16xbf16>, vector<16x8xbf16>, vector<8x8xf32> -> vector<8x8xf32>
    %260 = arith.truncf %259 : vector<8x8xf32> to vector<8x8xbf16>
    %cst_101 = arith.constant dense<0.000000e+00> : vector<8x32xf32>
    %261 = tpu.matmul %260, %240, %cst_101 {dimension_numbers = #tpu.dot_dimension_numbers<[1], [0], [0], [1], [0, 0, 1, 1], [], []>} : vector<8x8xbf16>, vector<8x32xbf16>, vector<8x32xf32> -> vector<8x32xf32>
    %262 = arith.addf %238, %261 : vector<8x32xf32>
    %c0_102 = arith.constant 0 : index
    %c0_103 = arith.constant 0 : index
    %c0_104 = arith.constant 0 : index
    %263 = vector.load %arg13[%c0_102, %c0_103, %c0_104] : memref<1x1x32xf32, #tpu.memory_space<vmem>>, vector<1x1x32xf32>
    %264 = vector.shape_cast %263 : vector<1x1x32xf32> to vector<1x32xf32>
    %265 = vector.broadcast %264 : vector<1x32xf32> to vector<8x32xf32>
    %266 = arith.addf %262, %265 : vector<8x32xf32>
    %267 = arith.addf %150, %266 : vector<8x32xf32>
    %cst_105 = arith.constant dense<0.000000e+00> : vector<8xf32>
    %268 = vector.multi_reduction <add>, %267, %cst_105 [1] : vector<8x32xf32> to vector<8xf32>
    %269 = vector.shape_cast %268 : vector<8xf32> to vector<8x1xf32>
    %cst_106 = arith.constant 3.200000e+01 : f32
    %270 = vector.broadcast %cst_106 : f32 to vector<8x1xf32>
    %271 = arith.divf %269, %270 : vector<8x1xf32>
    %272 = vector.broadcast %271 : vector<8x1xf32> to vector<8x32xf32>
    %273 = arith.subf %267, %272 : vector<8x32xf32>
    %274 = arith.mulf %273, %273 : vector<8x32xf32>
    %cst_107 = arith.constant dense<0.000000e+00> : vector<8xf32>
    %275 = vector.multi_reduction <add>, %274, %cst_107 [1] : vector<8x32xf32> to vector<8xf32>
    %276 = vector.shape_cast %275 : vector<8xf32> to vector<8x1xf32>
    %cst_108 = arith.constant 3.200000e+01 : f32
    %277 = vector.broadcast %cst_108 : f32 to vector<8x1xf32>
    %278 = arith.divf %276, %277 : vector<8x1xf32>
    %cst_109 = arith.constant 9.99999974E-6 : f32
    %279 = vector.broadcast %cst_109 : f32 to vector<8x1xf32>
    %280 = arith.addf %278, %279 : vector<8x1xf32>
    %281 = math.rsqrt %280 : vector<8x1xf32>
    %282 = vector.broadcast %281 : vector<8x1xf32> to vector<8x32xf32>
    %283 = arith.mulf %273, %282 : vector<8x32xf32>
    %c0_110 = arith.constant 0 : index
    %c0_111 = arith.constant 0 : index
    %c0_112 = arith.constant 0 : index
    %284 = vector.load %arg16[%c0_110, %c0_111, %c0_112] : memref<1x1x32xf32, #tpu.memory_space<vmem>>, vector<1x1x32xf32>
    %285 = vector.shape_cast %284 : vector<1x1x32xf32> to vector<1x32xf32>
    %286 = vector.broadcast %285 : vector<1x32xf32> to vector<8x32xf32>
    %287 = arith.mulf %283, %286 : vector<8x32xf32>
    %c0_113 = arith.constant 0 : index
    %c0_114 = arith.constant 0 : index
    %c0_115 = arith.constant 0 : index
    %288 = vector.load %arg17[%c0_113, %c0_114, %c0_115] : memref<1x1x32xf32, #tpu.memory_space<vmem>>, vector<1x1x32xf32>
    %289 = vector.shape_cast %288 : vector<1x1x32xf32> to vector<1x32xf32>
    %290 = vector.broadcast %289 : vector<1x32xf32> to vector<8x32xf32>
    %291 = arith.addf %287, %290 : vector<8x32xf32>
    %292 = arith.truncf %291 : vector<8x32xf32> to vector<8x32xbf16>
    %c0_116 = arith.constant 0 : index
    %c0_117 = arith.constant 0 : index
    %c0_118 = arith.constant 0 : index
    %293 = vector.load %arg20[%c0_116, %c0_117, %c0_118] : memref<1x32x64xbf16, #tpu.memory_space<vmem>>, vector<1x32x64xbf16>
    %294 = vector.shape_cast %293 : vector<1x32x64xbf16> to vector<32x64xbf16>
    %cst_119 = arith.constant dense<0.000000e+00> : vector<8x64xf32>
    %295 = tpu.matmul %292, %294, %cst_119 {dimension_numbers = #tpu.dot_dimension_numbers<[1], [0], [0], [1], [0, 0, 1, 1], [], []>} : vector<8x32xbf16>, vector<32x64xbf16>, vector<8x64xf32> -> vector<8x64xf32>
    %c0_120 = arith.constant 0 : index
    %c0_121 = arith.constant 0 : index
    %c0_122 = arith.constant 0 : index
    %296 = vector.load %arg21[%c0_120, %c0_121, %c0_122] : memref<1x1x64xf32, #tpu.memory_space<vmem>>, vector<1x1x64xf32>
    %297 = vector.shape_cast %296 : vector<1x1x64xf32> to vector<1x64xf32>
    %298 = vector.broadcast %297 : vector<1x64xf32> to vector<8x64xf32>
    %299 = arith.addf %295, %298 : vector<8x64xf32>
    %cst_123 = arith.constant 0.000000e+00 : f32
    %300 = vector.broadcast %cst_123 : f32 to vector<8x64xf32>
    %301 = arith.maximumf %299, %300 : vector<8x64xf32>
    %302 = arith.truncf %301 : vector<8x64xf32> to vector<8x64xbf16>
    %c0_124 = arith.constant 0 : index
    %c0_125 = arith.constant 0 : index
    %c0_126 = arith.constant 0 : index
    %303 = vector.load %arg22[%c0_124, %c0_125, %c0_126] : memref<1x64x32xbf16, #tpu.memory_space<vmem>>, vector<1x64x32xbf16>
    %304 = vector.shape_cast %303 : vector<1x64x32xbf16> to vector<64x32xbf16>
    %cst_127 = arith.constant dense<0.000000e+00> : vector<8x32xf32>
    %305 = tpu.matmul %302, %304, %cst_127 {dimension_numbers = #tpu.dot_dimension_numbers<[1], [0], [0], [1], [0, 0, 1, 1], [], []>} : vector<8x64xbf16>, vector<64x32xbf16>, vector<8x32xf32> -> vector<8x32xf32>
    %c0_128 = arith.constant 0 : index
    %c0_129 = arith.constant 0 : index
    %c0_130 = arith.constant 0 : index
    %306 = vector.load %arg23[%c0_128, %c0_129, %c0_130] : memref<1x1x32xf32, #tpu.memory_space<vmem>>, vector<1x1x32xf32>
    %307 = vector.shape_cast %306 : vector<1x1x32xf32> to vector<1x32xf32>
    %308 = vector.broadcast %307 : vector<1x32xf32> to vector<8x32xf32>
    %309 = arith.addf %305, %308 : vector<8x32xf32>
    %310 = arith.addf %291, %309 : vector<8x32xf32>
    %cst_131 = arith.constant dense<0.000000e+00> : vector<8xf32>
    %311 = vector.multi_reduction <add>, %310, %cst_131 [1] : vector<8x32xf32> to vector<8xf32>
    %312 = vector.shape_cast %311 : vector<8xf32> to vector<8x1xf32>
    %cst_132 = arith.constant 3.200000e+01 : f32
    %313 = vector.broadcast %cst_132 : f32 to vector<8x1xf32>
    %314 = arith.divf %312, %313 : vector<8x1xf32>
    %315 = vector.broadcast %314 : vector<8x1xf32> to vector<8x32xf32>
    %316 = arith.subf %310, %315 : vector<8x32xf32>
    %317 = arith.mulf %316, %316 : vector<8x32xf32>
    %cst_133 = arith.constant dense<0.000000e+00> : vector<8xf32>
    %318 = vector.multi_reduction <add>, %317, %cst_133 [1] : vector<8x32xf32> to vector<8xf32>
    %319 = vector.shape_cast %318 : vector<8xf32> to vector<8x1xf32>
    %cst_134 = arith.constant 3.200000e+01 : f32
    %320 = vector.broadcast %cst_134 : f32 to vector<8x1xf32>
    %321 = arith.divf %319, %320 : vector<8x1xf32>
    %cst_135 = arith.constant 9.99999974E-6 : f32
    %322 = vector.broadcast %cst_135 : f32 to vector<8x1xf32>
    %323 = arith.addf %321, %322 : vector<8x1xf32>
    %324 = math.rsqrt %323 : vector<8x1xf32>
    %325 = vector.broadcast %324 : vector<8x1xf32> to vector<8x32xf32>
    %326 = arith.mulf %316, %325 : vector<8x32xf32>
    %c0_136 = arith.constant 0 : index
    %c0_137 = arith.constant 0 : index
    %c0_138 = arith.constant 0 : index
    %327 = vector.load %arg18[%c0_136, %c0_137, %c0_138] : memref<1x1x32xf32, #tpu.memory_space<vmem>>, vector<1x1x32xf32>
    %328 = vector.shape_cast %327 : vector<1x1x32xf32> to vector<1x32xf32>
    %329 = vector.broadcast %328 : vector<1x32xf32> to vector<8x32xf32>
    %330 = arith.mulf %326, %329 : vector<8x32xf32>
    %c0_139 = arith.constant 0 : index
    %c0_140 = arith.constant 0 : index
    %c0_141 = arith.constant 0 : index
    %331 = vector.load %arg19[%c0_139, %c0_140, %c0_141] : memref<1x1x32xf32, #tpu.memory_space<vmem>>, vector<1x1x32xf32>
    %332 = vector.shape_cast %331 : vector<1x1x32xf32> to vector<1x32xf32>
    %333 = vector.broadcast %332 : vector<1x32xf32> to vector<8x32xf32>
    %334 = arith.addf %330, %333 : vector<8x32xf32>
    %c0_142 = arith.constant 0 : index
    %c0_143 = arith.constant 0 : index
    %335 = vector.load %arg27[%c0_142, %c0_143] : memref<8x32xf32, #tpu.memory_space<vmem>>, vector<8x32xf32>
    tpu.vector_store %arg27[%c0_142, %c0_143], %334 {strides = array<i32>} : memref<8x32xf32, #tpu.memory_space<vmem>>, vector<8x32xf32>,
    %c1_i32 = arith.constant 1 : i32
    %336 = arith.cmpi eq, %arg1, %c1_i32 : i32
    %337 = arith.extui %336 : i1 to i32
    %c0_i32_144 = arith.constant 0 : i32
    %338 = arith.cmpi ne, %337, %c0_i32_144 : i32
    scf.if %338 {
      %339 = arith.truncf %334 : vector<8x32xf32> to vector<8x32xbf16>
      %c0_145 = arith.constant 0 : index
      %c0_146 = arith.constant 0 : index
      %340 = vector.load %arg24[%c0_145, %c0_146] : memref<32x128xbf16, #tpu.memory_space<vmem>>, vector<32x128xbf16>
      %cst_147 = arith.constant dense<0.000000e+00> : vector<8x128xf32>
      %341 = tpu.matmul %339, %340, %cst_147 {dimension_numbers = #tpu.dot_dimension_numbers<[1], [0], [0], [1], [0, 0, 1, 1], [], []>} : vector<8x32xbf16>, vector<32x128xbf16>, vector<8x128xf32> -> vector<8x128xf32>
      %c0_148 = arith.constant 0 : index
      %c0_149 = arith.constant 0 : index
      %342 = vector.load %arg25[%c0_148, %c0_149] : memref<1x128xf32, #tpu.memory_space<vmem>>, vector<1x128xf32>
      %343 = vector.broadcast %342 : vector<1x128xf32> to vector<8x128xf32>
      %344 = arith.addf %341, %343 : vector<8x128xf32>
      %345 = vector.shape_cast %344 : vector<8x128xf32> to vector<1x8x128xf32>
      %c0_150 = arith.constant 0 : index
      %c0_151 = arith.constant 0 : index
      %c0_152 = arith.constant 0 : index
      %346 = vector.load %arg26[%c0_150, %c0_151, %c0_152] : memref<1x8x128xf32, #tpu.memory_space<vmem>>, vector<1x8x128xf32>
      tpu.vector_store %arg26[%c0_150, %c0_151, %c0_152], %345 {strides = array<i32>} : memref<1x8x128xf32, #tpu.memory_space<vmem>>, vector<1x8x128xf32>,
    } else {
    }
    return
  }
  func.func @transform_0(%arg0: i32, %arg1: i32) -> (i32, i32, i32) {
    %c0_i32 = arith.constant 0 : i32
    %c0_i32_0 = arith.constant 0 : i32
    %c0_i32_1 = arith.constant 0 : i32
    return %arg0, %c0_i32, %c0_i32_0 : i32, i32, i32
  }
  func.func @transform_1(%arg0: i32, %arg1: i32) -> (i32, i32, i32) {
    %c0_i32 = arith.constant 0 : i32
    %c0_i32_0 = arith.constant 0 : i32
    %c0_i32_1 = arith.constant 0 : i32
    return %arg0, %c0_i32, %c0_i32_0 : i32, i32, i32
  }
  func.func @transform_2(%arg0: i32, %arg1: i32) -> (i32, i32, i32) {
    %c0_i32 = arith.constant 0 : i32
    %c0_i32_0 = arith.constant 0 : i32
    %c0_i32_1 = arith.constant 0 : i32
    return %arg1, %c0_i32, %c0_i32_0 : i32, i32, i32
  }
  func.func @transform_3(%arg0: i32, %arg1: i32) -> (i32, i32, i32) {
    %c0_i32 = arith.constant 0 : i32
    %c0_i32_0 = arith.constant 0 : i32
    %c0_i32_1 = arith.constant 0 : i32
    return %arg1, %c0_i32, %c0_i32_0 : i32, i32, i32
  }
  func.func @transform_4(%arg0: i32, %arg1: i32) -> (i32, i32, i32) {
    %c0_i32 = arith.constant 0 : i32
    %c0_i32_0 = arith.constant 0 : i32
    %c0_i32_1 = arith.constant 0 : i32
    return %arg1, %c0_i32, %c0_i32_0 : i32, i32, i32
  }
  func.func @transform_5(%arg0: i32, %arg1: i32) -> (i32, i32, i32) {
    %c0_i32 = arith.constant 0 : i32
    %c0_i32_0 = arith.constant 0 : i32
    %c0_i32_1 = arith.constant 0 : i32
    return %arg1, %c0_i32, %c0_i32_0 : i32, i32, i32
  }
  func.func @transform_6(%arg0: i32, %arg1: i32) -> (i32, i32, i32) {
    %c0_i32 = arith.constant 0 : i32
    %c0_i32_0 = arith.constant 0 : i32
    %c0_i32_1 = arith.constant 0 : i32
    return %arg1, %c0_i32, %c0_i32_0 : i32, i32, i32
  }
  func.func @transform_7(%arg0: i32, %arg1: i32) -> (i32, i32, i32) {
    %c0_i32 = arith.constant 0 : i32
    %c0_i32_0 = arith.constant 0 : i32
    %c0_i32_1 = arith.constant 0 : i32
    return %arg1, %c0_i32, %c0_i32_0 : i32, i32, i32
  }
  func.func @transform_8(%arg0: i32, %arg1: i32) -> (i32, i32, i32) {
    %c0_i32 = arith.constant 0 : i32
    %c0_i32_0 = arith.constant 0 : i32
    %c0_i32_1 = arith.constant 0 : i32
    return %arg1, %c0_i32, %c0_i32_0 : i32, i32, i32
  }
  func.func @transform_9(%arg0: i32, %arg1: i32) -> (i32, i32, i32) {
    %c0_i32 = arith.constant 0 : i32
    %c0_i32_0 = arith.constant 0 : i32
    %c0_i32_1 = arith.constant 0 : i32
    return %arg1, %c0_i32, %c0_i32_0 : i32, i32, i32
  }
  func.func @transform_10(%arg0: i32, %arg1: i32) -> (i32, i32, i32) {
    %c0_i32 = arith.constant 0 : i32
    %c0_i32_0 = arith.constant 0 : i32
    %c0_i32_1 = arith.constant 0 : i32
    return %arg1, %c0_i32, %c0_i32_0 : i32, i32, i32
  }
  func.func @transform_11(%arg0: i32, %arg1: i32) -> (i32, i32, i32) {
    %c0_i32 = arith.constant 0 : i32
    %c0_i32_0 = arith.constant 0 : i32
    %c0_i32_1 = arith.constant 0 : i32
    return %arg1, %c0_i32, %c0_i32_0 : i32, i32, i32
  }
  func.func @transform_12(%arg0: i32, %arg1: i32) -> (i32, i32, i32) {
    %c0_i32 = arith.constant 0 : i32
    %c0_i32_0 = arith.constant 0 : i32
    %c0_i32_1 = arith.constant 0 : i32
    return %arg1, %c0_i32, %c0_i32_0 : i32, i32, i32
  }
  func.func @transform_13(%arg0: i32, %arg1: i32) -> (i32, i32, i32) {
    %c0_i32 = arith.constant 0 : i32
    %c0_i32_0 = arith.constant 0 : i32
    %c0_i32_1 = arith.constant 0 : i32
    return %arg1, %c0_i32, %c0_i32_0 : i32, i32, i32
  }
  func.func @transform_14(%arg0: i32, %arg1: i32) -> (i32, i32, i32) {
    %c0_i32 = arith.constant 0 : i32
    %c0_i32_0 = arith.constant 0 : i32
    %c0_i32_1 = arith.constant 0 : i32
    return %arg1, %c0_i32, %c0_i32_0 : i32, i32, i32
  }
  func.func @transform_15(%arg0: i32, %arg1: i32) -> (i32, i32, i32) {
    %c0_i32 = arith.constant 0 : i32
    %c0_i32_0 = arith.constant 0 : i32
    %c0_i32_1 = arith.constant 0 : i32
    return %arg1, %c0_i32, %c0_i32_0 : i32, i32, i32
  }
  func.func @transform_16(%arg0: i32, %arg1: i32) -> (i32, i32, i32) {
    %c0_i32 = arith.constant 0 : i32
    %c0_i32_0 = arith.constant 0 : i32
    %c0_i32_1 = arith.constant 0 : i32
    return %arg1, %c0_i32, %c0_i32_0 : i32, i32, i32
  }
  func.func @transform_17(%arg0: i32, %arg1: i32) -> (i32, i32, i32) {
    %c0_i32 = arith.constant 0 : i32
    %c0_i32_0 = arith.constant 0 : i32
    %c0_i32_1 = arith.constant 0 : i32
    return %arg1, %c0_i32, %c0_i32_0 : i32, i32, i32
  }
  func.func @transform_18(%arg0: i32, %arg1: i32) -> (i32, i32, i32) {
    %c0_i32 = arith.constant 0 : i32
    %c0_i32_0 = arith.constant 0 : i32
    %c0_i32_1 = arith.constant 0 : i32
    return %arg1, %c0_i32, %c0_i32_0 : i32, i32, i32
  }
  func.func @transform_19(%arg0: i32, %arg1: i32) -> (i32, i32, i32) {
    %c0_i32 = arith.constant 0 : i32
    %c0_i32_0 = arith.constant 0 : i32
    %c0_i32_1 = arith.constant 0 : i32
    return %arg1, %c0_i32, %c0_i32_0 : i32, i32, i32
  }
  func.func @transform_20(%arg0: i32, %arg1: i32) -> (i32, i32, i32) {
    %c0_i32 = arith.constant 0 : i32
    %c0_i32_0 = arith.constant 0 : i32
    %c0_i32_1 = arith.constant 0 : i32
    return %arg1, %c0_i32, %c0_i32_0 : i32, i32, i32
  }
  func.func @transform_21(%arg0: i32, %arg1: i32) -> (i32, i32, i32) {
    %c0_i32 = arith.constant 0 : i32
    %c0_i32_0 = arith.constant 0 : i32
    %c0_i32_1 = arith.constant 0 : i32
    return %arg1, %c0_i32, %c0_i32_0 : i32, i32, i32
  }
  func.func @transform_22(%arg0: i32, %arg1: i32) -> (i32, i32) {
    %c0_i32 = arith.constant 0 : i32
    %c0_i32_0 = arith.constant 0 : i32
    %c0_i32_1 = arith.constant 0 : i32
    return %c0_i32, %c0_i32_0 : i32, i32
  }
  func.func @transform_23(%arg0: i32, %arg1: i32) -> (i32, i32) {
    %c0_i32 = arith.constant 0 : i32
    %c0_i32_0 = arith.constant 0 : i32
    %c0_i32_1 = arith.constant 0 : i32
    return %c0_i32, %c0_i32_0 : i32, i32
  }
  func.func @transform_24(%arg0: i32, %arg1: i32) -> (i32, i32, i32) {
    %c0_i32 = arith.constant 0 : i32
    %c0_i32_0 = arith.constant 0 : i32
    %c0_i32_1 = arith.constant 0 : i32
    return %arg0, %c0_i32, %c0_i32_0 : i32, i32, i32
  }
}

</mosaic_0001>

<llo_original>
// kernel: tpu_custom_call.1
$region0: #{tpu_custom_call.1}
  #allocation0 [shape = 'u32[]', space=smem, size = 0x4, offset = 0x4, fixed_abs, tag = 'smem constant byte address 0x4 - core index']
  #allocation1 [shape = 'u32[144,128]{1,0:T(1,128)}', space=vmem, size = 0x12000, scoped, tag = 'internal scratch']
  #allocation2 [shape = 'f32[8,32]{1,0:T(8,128)}', space=vmem, size = 0x1000, scoped, tag = 'scratch operand']
  %s0 = inlined_call_operand.hbm [shape: f32[2,8,32], index: 0, kind: input, shape index: {}]
  %s1 = inlined_call_operand.hbm [shape: bf16[2,16,32], index: 1, kind: input, shape index: {}]
  %s2 = inlined_call_operand.vmem [shape: bf16[2,32,96], index: 2, kind: input, shape index: {}]
  %s3 = inlined_call_operand.vmem [shape: f32[2,1,96], index: 3, kind: input, shape index: {}]
  %s4 = inlined_call_operand.vmem [shape: bf16[2,32,32], index: 4, kind: input, shape index: {}]
  %s5 = inlined_call_operand.vmem [shape: f32[2,1,32], index: 5, kind: input, shape index: {}]
  %s6 = inlined_call_operand.vmem [shape: bf16[2,32,32], index: 6, kind: input, shape index: {}]
  %s7 = inlined_call_operand.hbm [shape: f32[2,1,32], index: 7, kind: input, shape index: {}]
  %s8 = inlined_call_operand.hbm [shape: bf16[2,32,64], index: 8, kind: input, shape index: {}]
  %s9 = inlined_call_operand.hbm [shape: f32[2,1,64], index: 9, kind: input, shape index: {}]
  %s10 = inlined_call_operand.hbm [shape: bf16[2,32,32], index: 10, kind: input, shape index: {}]
  %s11 = inlined_call_operand.hbm [shape: f32[2,1,32], index: 11, kind: input, shape index: {}]
  %s12 = inlined_call_operand.hbm [shape: f32[2,1,32], index: 12, kind: input, shape index: {}]
  %s13 = inlined_call_operand.hbm [shape: f32[2,1,32], index: 13, kind: input, shape index: {}]
  %s14 = inlined_call_operand.hbm [shape: f32[2,1,32], index: 14, kind: input, shape index: {}]
  %s15 = inlined_call_operand.hbm [shape: f32[2,1,32], index: 15, kind: input, shape index: {}]
  %s16 = inlined_call_operand.hbm [shape: f32[2,1,32], index: 16, kind: input, shape index: {}]
  %s17 = inlined_call_operand.hbm [shape: f32[2,1,32], index: 17, kind: input, shape index: {}]
  %s18 = inlined_call_operand.hbm [shape: bf16[2,32,64], index: 18, kind: input, shape index: {}]
  %s19 = inlined_call_operand.hbm [shape: f32[2,1,64], index: 19, kind: input, shape index: {}]
  %s20 = inlined_call_operand.vmem [shape: bf16[2,64,32], index: 20, kind: input, shape index: {}]
  %s21 = inlined_call_operand.vmem [shape: f32[2,1,32], index: 21, kind: input, shape index: {}]
  %s22 = inlined_call_operand.hbm [shape: bf16[32,128], index: 22, kind: input, shape index: {}]
  %s23 = inlined_call_operand.vmem [shape: f32[1,128], index: 23, kind: input, shape index: {}]
  %s24 = inlined_call_operand.hbm [shape: f32[2,8,128], index: 24, kind: output, shape index: {}]
  %s25 = sld [smem:[#allocation0]]
  $region201: #{tpu_custom_call.1} parent=0
    _
  %s27 = ssub.s32 1, %s25
  %s28 = scalar_select 0, %s27, %s25
  $region1: #{tpu_custom_call.1} parent=0
    #allocation3 [shape = 'u8[8192]{0}', space=vmem, size = 0x2000, scoped, tag = 'input window, operand 0']
    #allocation4 [shape = 's32[2]{0}', space=sflag, size = 0x8, scoped, tag = 'scoped memory for tpu_custom_call.1']
    #allocation5 [shape = 's32[2]{0}', space=sflag, size = 0x8, scoped, tag = 'scoped memory for tpu_custom_call.1']
    #allocation6 [shape = 'u8[8192]{0}', space=vmem, size = 0x2000, scoped, tag = 'input window, operand 1']
    #allocation7 [shape = 's32[2]{0}', space=sflag, size = 0x8, scoped, tag = 'scoped memory for tpu_custom_call.1']
    #allocation8 [shape = 'u8[1024]{0}', space=vmem, size = 0x400, scoped, tag = 'input window, operand 7']
    #allocation9 [shape = 'u8[16384]{0}', space=vmem, size = 0x4000, scoped, tag = 'input window, operand 8']
    #allocation10 [shape = 's32[2]{0}', space=sflag, size = 0x8, scoped, tag = 'scoped memory for tpu_custom_call.1']
    #allocation11 [shape = 'u8[1024]{0}', space=vmem, size = 0x400, scoped, tag = 'input window, operand 9']
    #allocation12 [shape = 'u8[16384]{0}', space=vmem, size = 0x4000, scoped, tag = 'input window, operand 10']
    #allocation13 [shape = 's32[2]{0}', space=sflag, size = 0x8, scoped, tag = 'scoped memory for tpu_custom_call.1']
    #allocation14 [shape = 'u8[1024]{0}', space=vmem, size = 0x400, scoped, tag = 'input window, operand 11']
    #allocation15 [shape = 'u8[1024]{0}', space=vmem, size = 0x400, scoped, tag = 'input window, operand 12']
    #allocation16 [shape = 's32[2]{0}', space=sflag, size = 0x8, scoped, tag = 'scoped memory for tpu_custom_call.1']
    #allocation17 [shape = 'u8[1024]{0}', space=vmem, size = 0x400, scoped, tag = 'input window, operand 13']
    #allocation18 [shape = 'u8[1024]{0}', space=vmem, size = 0x400, scoped, tag = 'input window, operand 14']
    #allocation19 [shape = 's32[2]{0}', space=sflag, size = 0x8, scoped, tag = 'scoped memory for tpu_custom_call.1']
    #allocation20 [shape = 'u8[1024]{0}', space=vmem, size = 0x400, scoped, tag = 'input window, operand 15']
    #allocation21 [shape = 'u8[1024]{0}', space=vmem, size = 0x400, scoped, tag = 'input window, operand 16']
    #allocation22 [shape = 's32[2]{0}', space=sflag, size = 0x8, scoped, tag = 'scoped memory for tpu_custom_call.1']
    #allocation23 [shape = 'u8[1024]{0}', space=vmem, size = 0x400, scoped, tag = 'input window, operand 17']
    #allocation24 [shape = 'u8[16384]{0}', space=vmem, size = 0x4000, scoped, tag = 'input window, operand 18']
    #allocation25 [shape = 's32[2]{0}', space=sflag, size = 0x8, scoped, tag = 'scoped memory for tpu_custom_call.1']
    #allocation26 [shape = 'u8[1024]{0}', space=vmem, size = 0x400, scoped, tag = 'input window, operand 19']
    #allocation27 [shape = 'u8[8192]{0}', space=vmem, size = 0x2000, scoped, tag = 'input window, operand 22, single buffered']
    #allocation28 [shape = 's32[1]{0}', space=sflag, size = 0x4, scoped, tag = 'scoped memory for tpu_custom_call.1']
    #allocation29 [shape = 'u8[8192]{0}', space=vmem, size = 0x2000, scoped, tag = 'output window, operand 0']
    %29 = vsyncpa [#allocation4], 0
    %s30 = scalar_lea.sflag [#allocation4], 1
    %31 = vsyncpa %s30, 0
    %32 = vsyncpa [#allocation7], 0
    %s33 = scalar_lea.sflag [#allocation7], 1
    %34 = vsyncpa %s33, 0
    %35 = vsyncpa [#allocation10], 0
    %s36 = scalar_lea.sflag [#allocation10], 1
    %37 = vsyncpa %s36, 0
    %38 = vsyncpa [#allocation13], 0
    %s39 = scalar_lea.sflag [#allocation13], 1
    %40 = vsyncpa %s39, 0
    %41 = vsyncpa [#allocation16], 0
    %s42 = scalar_lea.sflag [#allocation16], 1
    %43 = vsyncpa %s42, 0
    %44 = vsyncpa [#allocation19], 0
    %s45 = scalar_lea.sflag [#allocation19], 1
    %46 = vsyncpa %s45, 0
    %47 = vsyncpa [#allocation22], 0
    %s48 = scalar_lea.sflag [#allocation22], 1
    %49 = vsyncpa %s48, 0
    %50 = vsyncpa [#allocation25], 0
    %s51 = scalar_lea.sflag [#allocation25], 1
    %52 = vsyncpa %s51, 0
    %53 = vsyncpa [#allocation28], 0
    %54 = vsyncpa [#allocation5], 0
    %s55 = scalar_lea.sflag [#allocation5], 1
    %56 = vsyncpa %s55, 0
    loop: start=0, step=1, limit=6
    $region2: #{tpu_custom_call.1} parent=1 // loop_pre_header
      _
    $region3: #{tpu_custom_call.1} parent=1 // loop_header
      %s58 = sphi 0, %s62
      %p59 = scmp.ge.s32.totalorder %s58, 6
      %s65 = sphi 0, %s77
      %s66 = sphi 0, %s73
      %s67 = sphi 0, %s65
      %s68 = sphi 0, %s66
      %s69 = sphi 0, %s67
      %s70 = sphi 0, %s68
      %s80 = sphi 0, %s82
      %s83 = sphi 0, %s80
      %s84 = sphi 0, %s83
      %s100 = sphi 0, %s84
      %s106 = sphi 0, %s108
      %s109 = sphi 0, %s106
      %s110 = sphi 0, %s109
      %s126 = sphi 0, %s110
      %s132 = sphi 0, %s134
      %s135 = sphi 0, %s132
      %s136 = sphi 0, %s135
      %s152 = sphi 0, %s136
      %s158 = sphi 0, %s160
      %s161 = sphi 0, %s158
      %s162 = sphi 0, %s161
      %s178 = sphi 0, %s162
      %s184 = sphi 0, %s186
      %s187 = sphi 0, %s184
      %s188 = sphi 0, %s187
      %s204 = sphi 0, %s188
      %s210 = sphi 0, %s212
      %s213 = sphi 0, %s210
      %s214 = sphi 0, %s213
      %s230 = sphi 0, %s214
      %s236 = sphi 0, %s238
      %s239 = sphi 0, %s236
      %s240 = sphi 0, %s239
      %s256 = sphi 0, %s240
      %s262 = sphi 0, %s264
      %s265 = sphi 0, %s262
      %s266 = sphi 0, %s265
      %s282 = sphi 0, %s266
      %s288 = sphi 0, %s290
      %s291 = sphi 0, %s288
      %s292 = sphi 0, %s291
      %s308 = sphi 0, %s292
      %s314 = sphi 0, %s316
      %s317 = sphi 0, %s314
      %s318 = sphi 0, %s317
      %s334 = sphi 0, %s318
      %s340 = sphi 0, %s342
      %s343 = sphi 0, %s340
      %s344 = sphi 0, %s343
      %s360 = sphi 0, %s344
      %s366 = sphi 0, %s368
      %s369 = sphi 0, %s366
      %s370 = sphi 0, %s369
      %s386 = sphi 0, %s370
      %s392 = sphi 0, %s394
      %s395 = sphi 0, %s392
      %s396 = sphi 0, %s395
      %s412 = sphi 0, %s396
      %s418 = sphi 0, %s420
      %s421 = sphi 0, %s418
      %s422 = sphi 0, %s421
      %s438 = sphi 0, %s422
      %s444 = sphi 0, %s446
      %s447 = sphi 0, %s444
      %s448 = sphi 0, %s447
      %s464 = sphi 0, %s448
      %s470 = sphi 0, %s472
      %s473 = sphi 0, %s470
      %s474 = sphi 0, %s473
      %s490 = sphi 0, %s474
      %s496 = sphi 0, %s498
      %s499 = sphi 0, %s496
      %s500 = sphi 0, %s499
      %s516 = sphi 0, %s500
      %s522 = sphi 0, %s524
      %s525 = sphi 0, %s522
      %s526 = sphi 0, %s525
      %s542 = sphi 0, %s526
      %s548 = sphi 0, %s550
      %s551 = sphi 0, %s548
      %s552 = sphi 0, %s551
      %s568 = sphi 0, %s552
      %s574 = sphi 0, %s576
      %s577 = sphi 0, %s574
      %s578 = sphi 0, %s577
      %s594 = sphi 0, %s578
      %s600 = sphi 0, %s602
      %s603 = sphi 0, %s600
      %s604 = sphi 0, %s603
      %s620 = sphi 0, %s604
      %s626 = sphi 0, %s628
      %s629 = sphi 0, %s626
      %s630 = sphi 0, %s629
      %s646 = sphi 0, %s630
      %s650 = sphi 0, %s650
      %s652 = sphi 0, %s650
      %s653 = sphi 0, %s652
      %s667 = sphi 0, %s653
      %s671 = sphi 0, %s671
      %s673 = sphi 0, %s671
      %s674 = sphi 0, %s673
      %s688 = sphi 0, %s674
      %s694 = sphi 0, %s696
      %s697 = sphi 0, %s694
      %s698 = sphi 0, %s697
      %s714 = sphi 0, %s698
    $region4: #{tpu_custom_call.1} parent=1 // loop_header_branch
      %61 = sbr.rel (%p59) target = $region8
    $region5: #{tpu_custom_call.1} parent=1 // loop_body
      %s63 = ssub.s32 %s58, 1
      %s64 = ssub.s32 %s58, 2
      %s71 = sadd.s32 1, %s66
      %p72 = scmp.ge.s32.totalorder %s71, 2
      %s73 = scalar_select %p72, 0, %s71
      %s74 = sadd.s32 1, %s65
      %s75 = scalar_select %p72, %s74, %s65
      %p76 = scmp.ge.s32.totalorder %s75, 2
      %s77 = scalar_select %p76, 0, %s75
      %s78 = ssub.s32 %s65, %s77
      %p79 = scmp.eq.s32.totalorder %s78, 0
      %s81 = sadd.s32 %s80, 1
      %s82 = scalar_select %p79, %s80, %s81
      %p85 = pneg %p79
      %p86 = scmp.eq.s32.totalorder %s58, 3
      %p87 = por %p85, %p86
      %p88 = scmp.ne.s32.totalorder %s80, %s83
      %p89 = scmp.eq.s32.totalorder %s58, 0
      %p90 = por %p88, %p89
      %p91 = scmp.ne.s32.totalorder %s80, %s83
      %p92 = scmp.eq.s32.totalorder %s63, 3
      %p93 = por %p91, %p92
      %p94 = scmp.ne.s32.totalorder %s83, %s84
      %p95 = scmp.eq.s32.totalorder %s63, 0
      %p96 = por %p94, %p95
      %p97 = scmp.ne.s32.totalorder %s83, %s84
      %p98 = scmp.eq.s32.totalorder %s64, 3
      %p99 = por %p97, %p98
      %p101 = scmp.ne.s32.totalorder %s84, %s100
      %p102 = scmp.eq.s32.totalorder %s64, 0
      %p103 = por %p101, %p102
      %s104 = ssub.s32 %s65, %s77
      %p105 = scmp.eq.s32.totalorder %s104, 0
      %s107 = sadd.s32 %s106, 1
      %s108 = scalar_select %p105, %s106, %s107
      %p111 = pneg %p105
      %p112 = scmp.eq.s32.totalorder %s58, 3
      %p113 = por %p111, %p112
      %p114 = scmp.ne.s32.totalorder %s106, %s109
      %p115 = scmp.eq.s32.totalorder %s58, 0
      %p116 = por %p114, %p115
      %p117 = scmp.ne.s32.totalorder %s106, %s109
      %p118 = scmp.eq.s32.totalorder %s63, 3
      %p119 = por %p117, %p118
      %p120 = scmp.ne.s32.totalorder %s109, %s110
      %p121 = scmp.eq.s32.totalorder %s63, 0
      %p122 = por %p120, %p121
      %p123 = scmp.ne.s32.totalorder %s109, %s110
      %p124 = scmp.eq.s32.totalorder %s64, 3
      %p125 = por %p123, %p124
      %p127 = scmp.ne.s32.totalorder %s110, %s126
      %p128 = scmp.eq.s32.totalorder %s64, 0
      %p129 = por %p127, %p128
      %s130 = ssub.s32 %s66, %s73
      %p131 = scmp.eq.s32.totalorder %s130, 0
      %s133 = sadd.s32 %s132, 1
      %s134 = scalar_select %p131, %s132, %s133
      %p137 = pneg %p131
      %p138 = scmp.eq.s32.totalorder %s58, 3
      %p139 = por %p137, %p138
      %p140 = scmp.ne.s32.totalorder %s132, %s135
      %p141 = scmp.eq.s32.totalorder %s58, 0
      %p142 = por %p140, %p141
      %p143 = scmp.ne.s32.totalorder %s132, %s135
      %p144 = scmp.eq.s32.totalorder %s63, 3
      %p145 = por %p143, %p144
      %p146 = scmp.ne.s32.totalorder %s135, %s136
      %p147 = scmp.eq.s32.totalorder %s63, 0
      %p148 = por %p146, %p147
      %p149 = scmp.ne.s32.totalorder %s135, %s136
      %p150 = scmp.eq.s32.totalorder %s64, 3
      %p151 = por %p149, %p150
      %p153 = scmp.ne.s32.totalorder %s136, %s152
      %p154 = scmp.eq.s32.totalorder %s64, 0
      %p155 = por %p153, %p154
      %s156 = ssub.s32 %s66, %s73
      %p157 = scmp.eq.s32.totalorder %s156, 0
      %s159 = sadd.s32 %s158, 1
      %s160 = scalar_select %p157, %s158, %s159
      %p163 = pneg %p157
      %p164 = scmp.eq.s32.totalorder %s58, 3
      %p165 = por %p163, %p164
      %p166 = scmp.ne.s32.totalorder %s158, %s161
      %p167 = scmp.eq.s32.totalorder %s58, 0
      %p168 = por %p166, %p167
      %p169 = scmp.ne.s32.totalorder %s158, %s161
      %p170 = scmp.eq.s32.totalorder %s63, 3
      %p171 = por %p169, %p170
      %p172 = scmp.ne.s32.totalorder %s161, %s162
      %p173 = scmp.eq.s32.totalorder %s63, 0
      %p174 = por %p172, %p173
      %p175 = scmp.ne.s32.totalorder %s161, %s162
      %p176 = scmp.eq.s32.totalorder %s64, 3
      %p177 = por %p175, %p176
      %p179 = scmp.ne.s32.totalorder %s162, %s178
      %p180 = scmp.eq.s32.totalorder %s64, 0
      %p181 = por %p179, %p180
      %s182 = ssub.s32 %s66, %s73
      %p183 = scmp.eq.s32.totalorder %s182, 0
      %s185 = sadd.s32 %s184, 1
      %s186 = scalar_select %p183, %s184, %s185
      %p189 = pneg %p183
      %p190 = scmp.eq.s32.totalorder %s58, 3
      %p191 = por %p189, %p190
      %p192 = scmp.ne.s32.totalorder %s184, %s187
      %p193 = scmp.eq.s32.totalorder %s58, 0
      %p194 = por %p192, %p193
      %p195 = scmp.ne.s32.totalorder %s184, %s187
      %p196 = scmp.eq.s32.totalorder %s63, 3
      %p197 = por %p195, %p196
      %p198 = scmp.ne.s32.totalorder %s187, %s188
      %p199 = scmp.eq.s32.totalorder %s63, 0
      %p200 = por %p198, %p199
      %p201 = scmp.ne.s32.totalorder %s187, %s188
      %p202 = scmp.eq.s32.totalorder %s64, 3
      %p203 = por %p201, %p202
      %p205 = scmp.ne.s32.totalorder %s188, %s204
      %p206 = scmp.eq.s32.totalorder %s64, 0
      %p207 = por %p205, %p206
      %s208 = ssub.s32 %s66, %s73
      %p209 = scmp.eq.s32.totalorder %s208, 0
      %s211 = sadd.s32 %s210, 1
      %s212 = scalar_select %p209, %s210, %s211
      %p215 = pneg %p209
      %p216 = scmp.eq.s32.totalorder %s58, 3
      %p217 = por %p215, %p216
      %p218 = scmp.ne.s32.totalorder %s210, %s213
      %p219 = scmp.eq.s32.totalorder %s58, 0
      %p220 = por %p218, %p219
      %p221 = scmp.ne.s32.totalorder %s210, %s213
      %p222 = scmp.eq.s32.totalorder %s63, 3
      %p223 = por %p221, %p222
      %p224 = scmp.ne.s32.totalorder %s213, %s214
      %p225 = scmp.eq.s32.totalorder %s63, 0
      %p226 = por %p224, %p225
      %p227 = scmp.ne.s32.totalorder %s213, %s214
      %p228 = scmp.eq.s32.totalorder %s64, 3
      %p229 = por %p227, %p228
      %p231 = scmp.ne.s32.totalorder %s214, %s230
      %p232 = scmp.eq.s32.totalorder %s64, 0
      %p233 = por %p231, %p232
      %s234 = ssub.s32 %s66, %s73
      %p235 = scmp.eq.s32.totalorder %s234, 0
      %s237 = sadd.s32 %s236, 1
      %s238 = scalar_select %p235, %s236, %s237
      %p241 = pneg %p235
      %p242 = scmp.eq.s32.totalorder %s58, 3
      %p243 = por %p241, %p242
      %p244 = scmp.ne.s32.totalorder %s236, %s239
      %p245 = scmp.eq.s32.totalorder %s58, 0
      %p246 = por %p244, %p245
      %p247 = scmp.ne.s32.totalorder %s236, %s239
      %p248 = scmp.eq.s32.totalorder %s63, 3
      %p249 = por %p247, %p248
      %p250 = scmp.ne.s32.totalorder %s239, %s240
      %p251 = scmp.eq.s32.totalorder %s63, 0
      %p252 = por %p250, %p251
      %p253 = scmp.ne.s32.totalorder %s239, %s240
      %p254 = scmp.eq.s32.totalorder %s64, 3
      %p255 = por %p253, %p254
      %p257 = scmp.ne.s32.totalorder %s240, %s256
      %p258 = scmp.eq.s32.totalorder %s64, 0
      %p259 = por %p257, %p258
      %s260 = ssub.s32 %s66, %s73
      %p261 = scmp.eq.s32.totalorder %s260, 0
      %s263 = sadd.s32 %s262, 1
      %s264 = scalar_select %p261, %s262, %s263
      %p267 = pneg %p261
      %p268 = scmp.eq.s32.totalorder %s58, 3
      %p269 = por %p267, %p268
      %p270 = scmp.ne.s32.totalorder %s262, %s265
      %p271 = scmp.eq.s32.totalorder %s58, 0
      %p272 = por %p270, %p271
      %p273 = scmp.ne.s32.totalorder %s262, %s265
      %p274 = scmp.eq.s32.totalorder %s63, 3
      %p275 = por %p273, %p274
      %p276 = scmp.ne.s32.totalorder %s265, %s266
      %p277 = scmp.eq.s32.totalorder %s63, 0
      %p278 = por %p276, %p277
      %p279 = scmp.ne.s32.totalorder %s265, %s266
      %p280 = scmp.eq.s32.totalorder %s64, 3
      %p281 = por %p279, %p280
      %p283 = scmp.ne.s32.totalorder %s266, %s282
      %p284 = scmp.eq.s32.totalorder %s64, 0
      %p285 = por %p283, %p284
      %s286 = ssub.s32 %s66, %s73
      %p287 = scmp.eq.s32.totalorder %s286, 0
      %s289 = sadd.s32 %s288, 1
      %s290 = scalar_select %p287, %s288, %s289
      %p293 = pneg %p287
      %p294 = scmp.eq.s32.totalorder %s58, 3
      %p295 = por %p293, %p294
      %p296 = scmp.ne.s32.totalorder %s288, %s291
      %p297 = scmp.eq.s32.totalorder %s58, 0
      %p298 = por %p296, %p297
      %p299 = scmp.ne.s32.totalorder %s288, %s291
      %p300 = scmp.eq.s32.totalorder %s63, 3
      %p301 = por %p299, %p300
      %p302 = scmp.ne.s32.totalorder %s291, %s292
      %p303 = scmp.eq.s32.totalorder %s63, 0
      %p304 = por %p302, %p303
      %p305 = scmp.ne.s32.totalorder %s291, %s292
      %p306 = scmp.eq.s32.totalorder %s64, 3
      %p307 = por %p305, %p306
      %p309 = scmp.ne.s32.totalorder %s292, %s308
      %p310 = scmp.eq.s32.totalorder %s64, 0
      %p311 = por %p309, %p310
      %s312 = ssub.s32 %s66, %s73
      %p313 = scmp.eq.s32.totalorder %s312, 0
      %s315 = sadd.s32 %s314, 1
      %s316 = scalar_select %p313, %s314, %s315
      %p319 = pneg %p313
      %p320 = scmp.eq.s32.totalorder %s58, 3
      %p321 = por %p319, %p320
      %p322 = scmp.ne.s32.totalorder %s314, %s317
      %p323 = scmp.eq.s32.totalorder %s58, 0
      %p324 = por %p322, %p323
      %p325 = scmp.ne.s32.totalorder %s314, %s317
      %p326 = scmp.eq.s32.totalorder %s63, 3
      %p327 = por %p325, %p326
      %p328 = scmp.ne.s32.totalorder %s317, %s318
      %p329 = scmp.eq.s32.totalorder %s63, 0
      %p330 = por %p328, %p329
      %p331 = scmp.ne.s32.totalorder %s317, %s318
      %p332 = scmp.eq.s32.totalorder %s64, 3
      %p333 = por %p331, %p332
      %p335 = scmp.ne.s32.totalorder %s318, %s334
      %p336 = scmp.eq.s32.totalorder %s64, 0
      %p337 = por %p335, %p336
      %s338 = ssub.s32 %s66, %s73
      %p339 = scmp.eq.s32.totalorder %s338, 0
      %s341 = sadd.s32 %s340, 1
      %s342 = scalar_select %p339, %s340, %s341
      %p345 = pneg %p339
      %p346 = scmp.eq.s32.totalorder %s58, 3
      %p347 = por %p345, %p346
      %p348 = scmp.ne.s32.totalorder %s340, %s343
      %p349 = scmp.eq.s32.totalorder %s58, 0
      %p350 = por %p348, %p349
      %p351 = scmp.ne.s32.totalorder %s340, %s343
      %p352 = scmp.eq.s32.totalorder %s63, 3
      %p353 = por %p351, %p352
      %p354 = scmp.ne.s32.totalorder %s343, %s344
      %p355 = scmp.eq.s32.totalorder %s63, 0
      %p356 = por %p354, %p355
      %p357 = scmp.ne.s32.totalorder %s343, %s344
      %p358 = scmp.eq.s32.totalorder %s64, 3
      %p359 = por %p357, %p358
      %p361 = scmp.ne.s32.totalorder %s344, %s360
      %p362 = scmp.eq.s32.totalorder %s64, 0
      %p363 = por %p361, %p362
      %s364 = ssub.s32 %s66, %s73
      %p365 = scmp.eq.s32.totalorder %s364, 0
      %s367 = sadd.s32 %s366, 1
      %s368 = scalar_select %p365, %s366, %s367
      %p371 = pneg %p365
      %p372 = scmp.eq.s32.totalorder %s58, 3
      %p373 = por %p371, %p372
      %p374 = scmp.ne.s32.totalorder %s366, %s369
      %p375 = scmp.eq.s32.totalorder %s58, 0
      %p376 = por %p374, %p375
      %p377 = scmp.ne.s32.totalorder %s366, %s369
      %p378 = scmp.eq.s32.totalorder %s63, 3
      %p379 = por %p377, %p378
      %p380 = scmp.ne.s32.totalorder %s369, %s370
      %p381 = scmp.eq.s32.totalorder %s63, 0
      %p382 = por %p380, %p381
      %p383 = scmp.ne.s32.totalorder %s369, %s370
      %p384 = scmp.eq.s32.totalorder %s64, 3
      %p385 = por %p383, %p384
      %p387 = scmp.ne.s32.totalorder %s370, %s386
      %p388 = scmp.eq.s32.totalorder %s64, 0
      %p389 = por %p387, %p388
      %s390 = ssub.s32 %s66, %s73
      %p391 = scmp.eq.s32.totalorder %s390, 0
      %s393 = sadd.s32 %s392, 1
      %s394 = scalar_select %p391, %s392, %s393
      %p397 = pneg %p391
      %p398 = scmp.eq.s32.totalorder %s58, 3
      %p399 = por %p397, %p398
      %p400 = scmp.ne.s32.totalorder %s392, %s395
      %p401 = scmp.eq.s32.totalorder %s58, 0
      %p402 = por %p400, %p401
      %p403 = scmp.ne.s32.totalorder %s392, %s395
      %p404 = scmp.eq.s32.totalorder %s63, 3
      %p405 = por %p403, %p404
      %p406 = scmp.ne.s32.totalorder %s395, %s396
      %p407 = scmp.eq.s32.totalorder %s63, 0
      %p408 = por %p406, %p407
      %p409 = scmp.ne.s32.totalorder %s395, %s396
      %p410 = scmp.eq.s32.totalorder %s64, 3
      %p411 = por %p409, %p410
      %p413 = scmp.ne.s32.totalorder %s396, %s412
      %p414 = scmp.eq.s32.totalorder %s64, 0
      %p415 = por %p413, %p414
      %s416 = ssub.s32 %s66, %s73
      %p417 = scmp.eq.s32.totalorder %s416, 0
      %s419 = sadd.s32 %s418, 1
      %s420 = scalar_select %p417, %s418, %s419
      %p423 = pneg %p417
      %p424 = scmp.eq.s32.totalorder %s58, 3
      %p425 = por %p423, %p424
      %p426 = scmp.ne.s32.totalorder %s418, %s421
      %p427 = scmp.eq.s32.totalorder %s58, 0
      %p428 = por %p426, %p427
      %p429 = scmp.ne.s32.totalorder %s418, %s421
      %p430 = scmp.eq.s32.totalorder %s63, 3
      %p431 = por %p429, %p430
      %p432 = scmp.ne.s32.totalorder %s421, %s422
      %p433 = scmp.eq.s32.totalorder %s63, 0
      %p434 = por %p432, %p433
      %p435 = scmp.ne.s32.totalorder %s421, %s422
      %p436 = scmp.eq.s32.totalorder %s64, 3
      %p437 = por %p435, %p436
      %p439 = scmp.ne.s32.totalorder %s422, %s438
      %p440 = scmp.eq.s32.totalorder %s64, 0
      %p441 = por %p439, %p440
      %s442 = ssub.s32 %s66, %s73
      %p443 = scmp.eq.s32.totalorder %s442, 0
      %s445 = sadd.s32 %s444, 1
      %s446 = scalar_select %p443, %s444, %s445
      %p449 = pneg %p443
      %p450 = scmp.eq.s32.totalorder %s58, 3
      %p451 = por %p449, %p450
      %p452 = scmp.ne.s32.totalorder %s444, %s447
      %p453 = scmp.eq.s32.totalorder %s58, 0
      %p454 = por %p452, %p453
      %p455 = scmp.ne.s32.totalorder %s444, %s447
      %p456 = scmp.eq.s32.totalorder %s63, 3
      %p457 = por %p455, %p456
      %p458 = scmp.ne.s32.totalorder %s447, %s448
      %p459 = scmp.eq.s32.totalorder %s63, 0
      %p460 = por %p458, %p459
      %p461 = scmp.ne.s32.totalorder %s447, %s448
      %p462 = scmp.eq.s32.totalorder %s64, 3
      %p463 = por %p461, %p462
      %p465 = scmp.ne.s32.totalorder %s448, %s464
      %p466 = scmp.eq.s32.totalorder %s64, 0
      %p467 = por %p465, %p466
      %s468 = ssub.s32 %s66, %s73
      %p469 = scmp.eq.s32.totalorder %s468, 0
      %s471 = sadd.s32 %s470, 1
      %s472 = scalar_select %p469, %s470, %s471
      %p475 = pneg %p469
      %p476 = scmp.eq.s32.totalorder %s58, 3
      %p477 = por %p475, %p476
      %p478 = scmp.ne.s32.totalorder %s470, %s473
      %p479 = scmp.eq.s32.totalorder %s58, 0
      %p480 = por %p478, %p479
      %p481 = scmp.ne.s32.totalorder %s470, %s473
      %p482 = scmp.eq.s32.totalorder %s63, 3
      %p483 = por %p481, %p482
      %p484 = scmp.ne.s32.totalorder %s473, %s474
      %p485 = scmp.eq.s32.totalorder %s63, 0
      %p486 = por %p484, %p485
      %p487 = scmp.ne.s32.totalorder %s473, %s474
      %p488 = scmp.eq.s32.totalorder %s64, 3
      %p489 = por %p487, %p488
      %p491 = scmp.ne.s32.totalorder %s474, %s490
      %p492 = scmp.eq.s32.totalorder %s64, 0
      %p493 = por %p491, %p492
      %s494 = ssub.s32 %s66, %s73
      %p495 = scmp.eq.s32.totalorder %s494, 0
      %s497 = sadd.s32 %s496, 1
      %s498 = scalar_select %p495, %s496, %s497
      %p501 = pneg %p495
      %p502 = scmp.eq.s32.totalorder %s58, 3
      %p503 = por %p501, %p502
      %p504 = scmp.ne.s32.totalorder %s496, %s499
      %p505 = scmp.eq.s32.totalorder %s58, 0
      %p506 = por %p504, %p505
      %p507 = scmp.ne.s32.totalorder %s496, %s499
      %p508 = scmp.eq.s32.totalorder %s63, 3
      %p509 = por %p507, %p508
      %p510 = scmp.ne.s32.totalorder %s499, %s500
      %p511 = scmp.eq.s32.totalorder %s63, 0
      %p512 = por %p510, %p511
      %p513 = scmp.ne.s32.totalorder %s499, %s500
      %p514 = scmp.eq.s32.totalorder %s64, 3
      %p515 = por %p513, %p514
      %p517 = scmp.ne.s32.totalorder %s500, %s516
      %p518 = scmp.eq.s32.totalorder %s64, 0
      %p519 = por %p517, %p518
      %s520 = ssub.s32 %s66, %s73
      %p521 = scmp.eq.s32.totalorder %s520, 0
      %s523 = sadd.s32 %s522, 1
      %s524 = scalar_select %p521, %s522, %s523
      %p527 = pneg %p521
      %p528 = scmp.eq.s32.totalorder %s58, 3
      %p529 = por %p527, %p528
      %p530 = scmp.ne.s32.totalorder %s522, %s525
      %p531 = scmp.eq.s32.totalorder %s58, 0
      %p532 = por %p530, %p531
      %p533 = scmp.ne.s32.totalorder %s522, %s525
      %p534 = scmp.eq.s32.totalorder %s63, 3
      %p535 = por %p533, %p534
      %p536 = scmp.ne.s32.totalorder %s525, %s526
      %p537 = scmp.eq.s32.totalorder %s63, 0
      %p538 = por %p536, %p537
      %p539 = scmp.ne.s32.totalorder %s525, %s526
      %p540 = scmp.eq.s32.totalorder %s64, 3
      %p541 = por %p539, %p540
      %p543 = scmp.ne.s32.totalorder %s526, %s542
      %p544 = scmp.eq.s32.totalorder %s64, 0
      %p545 = por %p543, %p544
      %s546 = ssub.s32 %s66, %s73
      %p547 = scmp.eq.s32.totalorder %s546, 0
      %s549 = sadd.s32 %s548, 1
      %s550 = scalar_select %p547, %s548, %s549
      %p553 = pneg %p547
      %p554 = scmp.eq.s32.totalorder %s58, 3
      %p555 = por %p553, %p554
      %p556 = scmp.ne.s32.totalorder %s548, %s551
      %p557 = scmp.eq.s32.totalorder %s58, 0
      %p558 = por %p556, %p557
      %p559 = scmp.ne.s32.totalorder %s548, %s551
      %p560 = scmp.eq.s32.totalorder %s63, 3
      %p561 = por %p559, %p560
      %p562 = scmp.ne.s32.totalorder %s551, %s552
      %p563 = scmp.eq.s32.totalorder %s63, 0
      %p564 = por %p562, %p563
      %p565 = scmp.ne.s32.totalorder %s551, %s552
      %p566 = scmp.eq.s32.totalorder %s64, 3
      %p567 = por %p565, %p566
      %p569 = scmp.ne.s32.totalorder %s552, %s568
      %p570 = scmp.eq.s32.totalorder %s64, 0
      %p571 = por %p569, %p570
      %s572 = ssub.s32 %s66, %s73
      %p573 = scmp.eq.s32.totalorder %s572, 0
      %s575 = sadd.s32 %s574, 1
      %s576 = scalar_select %p573, %s574, %s575
      %p579 = pneg %p573
      %p580 = scmp.eq.s32.totalorder %s58, 3
      %p581 = por %p579, %p580
      %p582 = scmp.ne.s32.totalorder %s574, %s577
      %p583 = scmp.eq.s32.totalorder %s58, 0
      %p584 = por %p582, %p583
      %p585 = scmp.ne.s32.totalorder %s574, %s577
      %p586 = scmp.eq.s32.totalorder %s63, 3
      %p587 = por %p585, %p586
      %p588 = scmp.ne.s32.totalorder %s577, %s578
      %p589 = scmp.eq.s32.totalorder %s63, 0
      %p590 = por %p588, %p589
      %p591 = scmp.ne.s32.totalorder %s577, %s578
      %p592 = scmp.eq.s32.totalorder %s64, 3
      %p593 = por %p591, %p592
      %p595 = scmp.ne.s32.totalorder %s578, %s594
      %p596 = scmp.eq.s32.totalorder %s64, 0
      %p597 = por %p595, %p596
      %s598 = ssub.s32 %s66, %s73
      %p599 = scmp.eq.s32.totalorder %s598, 0
      %s601 = sadd.s32 %s600, 1
      %s602 = scalar_select %p599, %s600, %s601
      %p605 = pneg %p599
      %p606 = scmp.eq.s32.totalorder %s58, 3
      %p607 = por %p605, %p606
      %p608 = scmp.ne.s32.totalorder %s600, %s603
      %p609 = scmp.eq.s32.totalorder %s58, 0
      %p610 = por %p608, %p609
      %p611 = scmp.ne.s32.totalorder %s600, %s603
      %p612 = scmp.eq.s32.totalorder %s63, 3
      %p613 = por %p611, %p612
      %p614 = scmp.ne.s32.totalorder %s603, %s604
      %p615 = scmp.eq.s32.totalorder %s63, 0
      %p616 = por %p614, %p615
      %p617 = scmp.ne.s32.totalorder %s603, %s604
      %p618 = scmp.eq.s32.totalorder %s64, 3
      %p619 = por %p617, %p618
      %p621 = scmp.ne.s32.totalorder %s604, %s620
      %p622 = scmp.eq.s32.totalorder %s64, 0
      %p623 = por %p621, %p622
      %s624 = ssub.s32 %s66, %s73
      %p625 = scmp.eq.s32.totalorder %s624, 0
      %s627 = sadd.s32 %s626, 1
      %s628 = scalar_select %p625, %s626, %s627
      %p631 = pneg %p625
      %p632 = scmp.eq.s32.totalorder %s58, 3
      %p633 = por %p631, %p632
      %p634 = scmp.ne.s32.totalorder %s626, %s629
      %p635 = scmp.eq.s32.totalorder %s58, 0
      %p636 = por %p634, %p635
      %p637 = scmp.ne.s32.totalorder %s626, %s629
      %p638 = scmp.eq.s32.totalorder %s63, 3
      %p639 = por %p637, %p638
      %p640 = scmp.ne.s32.totalorder %s629, %s630
      %p641 = scmp.eq.s32.totalorder %s63, 0
      %p642 = por %p640, %p641
      %p643 = scmp.ne.s32.totalorder %s629, %s630
      %p644 = scmp.eq.s32.totalorder %s64, 3
      %p645 = por %p643, %p644
      %p647 = scmp.ne.s32.totalorder %s630, %s646
      %p648 = scmp.eq.s32.totalorder %s64, 0
      %p649 = por %p647, %p648
      %s651 = sadd.s32 %s650, 1
      %p654 = scmp.eq.s32.totalorder %s58, 3
      %p655 = scmp.ne.s32.totalorder %s650, %s652
      %p656 = scmp.eq.s32.totalorder %s58, 0
      %p657 = por %p655, %p656
      %p658 = scmp.ne.s32.totalorder %s650, %s652
      %p659 = scmp.eq.s32.totalorder %s63, 3
      %p660 = por %p658, %p659
      %p661 = scmp.ne.s32.totalorder %s652, %s653
      %p662 = scmp.eq.s32.totalorder %s63, 0
      %p663 = por %p661, %p662
      %p664 = scmp.ne.s32.totalorder %s652, %s653
      %p665 = scmp.eq.s32.totalorder %s64, 3
      %p666 = por %p664, %p665
      %p668 = scmp.ne.s32.totalorder %s653, %s667
      %p669 = scmp.eq.s32.totalorder %s64, 0
      %p670 = por %p668, %p669
      %s672 = sadd.s32 %s671, 1
      %p675 = scmp.eq.s32.totalorder %s58, 3
      %p676 = scmp.ne.s32.totalorder %s671, %s673
      %p677 = scmp.eq.s32.totalorder %s58, 0
      %p678 = por %p676, %p677
      %p679 = scmp.ne.s32.totalorder %s671, %s673
      %p680 = scmp.eq.s32.totalorder %s63, 3
      %p681 = por %p679, %p680
      %p682 = scmp.ne.s32.totalorder %s673, %s674
      %p683 = scmp.eq.s32.totalorder %s63, 0
      %p684 = por %p682, %p683
      %p685 = scmp.ne.s32.totalorder %s673, %s674
      %p686 = scmp.eq.s32.totalorder %s64, 3
      %p687 = por %p685, %p686
      %p689 = scmp.ne.s32.totalorder %s674, %s688
      %p690 = scmp.eq.s32.totalorder %s64, 0
      %p691 = por %p689, %p690
      %s692 = ssub.s32 %s65, %s77
      %p693 = scmp.eq.s32.totalorder %s692, 0
      %s695 = sadd.s32 %s694, 1
      %s696 = scalar_select %p693, %s694, %s695
      %p699 = pneg %p693
      %p700 = scmp.eq.s32.totalorder %s58, 3
      %p701 = por %p699, %p700
      %p702 = scmp.ne.s32.totalorder %s694, %s697
      %p703 = scmp.eq.s32.totalorder %s58, 0
      %p704 = por %p702, %p703
      %p705 = scmp.ne.s32.totalorder %s694, %s697
      %p706 = scmp.eq.s32.totalorder %s63, 3
      %p707 = por %p705, %p706
      %p708 = scmp.ne.s32.totalorder %s697, %s698
      %p709 = scmp.eq.s32.totalorder %s63, 0
      %p710 = por %p708, %p709
      %p711 = scmp.ne.s32.totalorder %s697, %s698
      %p712 = scmp.eq.s32.totalorder %s64, 3
      %p713 = por %p711, %p712
      %p715 = scmp.ne.s32.totalorder %s698, %s714
      %p716 = scmp.eq.s32.totalorder %s64, 0
      %p717 = por %p715, %p716
      %p718 = scmp.le.s32.totalorder 1, %s58
      %p719 = scmp.lt.s32.totalorder %s58, 5
      %p720 = pnand %p718, %p719
      %p721 = pneg %p720
      // Predicated region
      $region9: #{tpu_custom_call.1} parent=5 // pred_check
        _
      $region10: #{tpu_custom_call.1} parent=5 // pred_check_branch
        %723 = sbr.rel (%p720) target = $region12
      $region11: #{tpu_custom_call.1} parent=5 // pred_region
        %s724 = ssub.s32 %s58, 1
        // Predicated region
        $region13: #{tpu_custom_call.1} parent=11 // pred_check
          %p725 = pneg %p663
        $region14: #{tpu_custom_call.1} parent=11 // pred_check_branch
          %727 = sbr.rel (%p725) target = $region16
        $region15: #{tpu_custom_call.1} parent=11 // pred_region
          %s729 = ssub.s32 256, 256
          %730 = vsyncadd [#allocation28], %s729
          %s731 = sshll.u32 [#allocation27], 4
          %s732 = int_to_ptr.vmem [resolvable:$true] %s731
          %737 = dma.hbm_to_vmem [thread:$0]  %s22, 256, %s732, [#allocation28], 64, 64, 4
        $region16: #{tpu_custom_call.1} parent=11 // pred_fallthru
          _
        // Predicated region
        $region17: #{tpu_custom_call.1} parent=11 // pred_check
          %p738 = pneg %p684
        $region18: #{tpu_custom_call.1} parent=11 // pred_check_branch
          %740 = sbr.rel (%p738) target = $region20
        $region19: #{tpu_custom_call.1} parent=11 // pred_region
          _
        $region20: #{tpu_custom_call.1} parent=11 // pred_fallthru
          _
      $region12: #{tpu_custom_call.1} parent=5 // pred_fallthru
        _
      %p741 = scmp.lt.s32.totalorder %s58, 4
      // Predicated region
      $region21: #{tpu_custom_call.1} parent=5 // pred_check
        %p742 = pneg %p741
      $region22: #{tpu_custom_call.1} parent=5 // pred_check_branch
        %744 = sbr.rel (%p742) target = $region24
      $region23: #{tpu_custom_call.1} parent=5 // pred_region
        // Predicated region
        $region25: #{tpu_custom_call.1} parent=23 // pred_check
          %p745 = pneg %p90
        $region26: #{tpu_custom_call.1} parent=23 // pred_check_branch
          %747 = sbr.rel (%p745) target = $region28
        $region27: #{tpu_custom_call.1} parent=23 // pred_region
          %s748 = sand.u32 %s80, 1
          %s749 = scalar_lea.sflag [#allocation4], %s748
          %s750 = sand.u32 %s80, 1
          %s751 = smul.addr %s750, 8
          %s752 = scalar_lea.vmem [#allocation3], %s751
          %s754 = ssub.s32 128, 128
          %755 = vsyncadd %s749, %s754
          %s756 = smul.addr %s65, 128
          %s757 = scalar_lea.hbm %s0, %s756
          %s759 = sshll.u32 %s752, 4
          %s760 = int_to_ptr.vmem [resolvable:$true] %s759
          %762 = dma.hbm_to_vmem [thread:$0]  %s757, 128, %s760, %s749
        $region28: #{tpu_custom_call.1} parent=23 // pred_fallthru
          _
        // Predicated region
        $region29: #{tpu_custom_call.1} parent=23 // pred_check
          %p763 = pneg %p116
        $region30: #{tpu_custom_call.1} parent=23 // pred_check_branch
          %765 = sbr.rel (%p763) target = $region32
        $region31: #{tpu_custom_call.1} parent=23 // pred_region
          %s766 = sand.u32 %s58, 1
          %s767 = scalar_lea.sflag [#allocation7], %s766
          %s768 = sand.u32 %s106, 1
          %s769 = smul.addr %s768, 8
          %s770 = scalar_lea.vmem [#allocation6], %s769
          %s772 = ssub.s32 128, 128
          %773 = vsyncadd %s767, %s772
          %s774 = smul.addr %s65, 2
          %s775 = smul.addr %s774, 64
          %s776 = scalar_lea.hbm %s1, %s775
          %s777 = sshll.u32 %s770, 4
          %s778 = int_to_ptr.vmem [resolvable:$true] %s777
          %783 = dma.hbm_to_vmem [thread:$0]  %s776, 128, %s778, %s767, 64, 64, 4
        $region32: #{tpu_custom_call.1} parent=23 // pred_fallthru
          _
        // Predicated region
        $region33: #{tpu_custom_call.1} parent=23 // pred_check
          %p784 = pneg %p142
        $region34: #{tpu_custom_call.1} parent=23 // pred_check_branch
          %786 = sbr.rel (%p784) target = $region36
        $region35: #{tpu_custom_call.1} parent=23 // pred_region
          %p787 = scmp.lt.s32.totalorder %s66, 1
          %s788 = scalar_select %p787, %s66, 1
          %s789 = smul.addr %s788, 4
          %s790 = smul.addr %s789, 4
          %s791 = scalar_lea.vmem %s2, %s790
        $region36: #{tpu_custom_call.1} parent=23 // pred_fallthru
          _
        // Predicated region
        $region37: #{tpu_custom_call.1} parent=23 // pred_check
          %p792 = pneg %p168
        $region38: #{tpu_custom_call.1} parent=23 // pred_check_branch
          %794 = sbr.rel (%p792) target = $region40
        $region39: #{tpu_custom_call.1} parent=23 // pred_region
          %p795 = scmp.lt.s32.totalorder %s66, 1
          %s796 = scalar_select %p795, %s66, 1
          %s797 = scalar_lea.vmem %s3, %s796
        $region40: #{tpu_custom_call.1} parent=23 // pred_fallthru
          _
        // Predicated region
        $region41: #{tpu_custom_call.1} parent=23 // pred_check
          %p798 = pneg %p194
        $region42: #{tpu_custom_call.1} parent=23 // pred_check_branch
          %800 = sbr.rel (%p798) target = $region44
        $region43: #{tpu_custom_call.1} parent=23 // pred_region
          %p801 = scmp.lt.s32.totalorder %s66, 1
          %s802 = scalar_select %p801, %s66, 1
          %s803 = smul.addr %s802, 4
          %s804 = smul.addr %s803, 4
          %s805 = scalar_lea.vmem %s4, %s804
        $region44: #{tpu_custom_call.1} parent=23 // pred_fallthru
          _
        // Predicated region
        $region45: #{tpu_custom_call.1} parent=23 // pred_check
          %p806 = pneg %p220
        $region46: #{tpu_custom_call.1} parent=23 // pred_check_branch
          %808 = sbr.rel (%p806) target = $region48
        $region47: #{tpu_custom_call.1} parent=23 // pred_region
          %p809 = scmp.lt.s32.totalorder %s66, 1
          %s810 = scalar_select %p809, %s66, 1
          %s811 = scalar_lea.vmem %s5, %s810
        $region48: #{tpu_custom_call.1} parent=23 // pred_fallthru
          _
        // Predicated region
        $region49: #{tpu_custom_call.1} parent=23 // pred_check
          %p812 = pneg %p246
        $region50: #{tpu_custom_call.1} parent=23 // pred_check_branch
          %814 = sbr.rel (%p812) target = $region52
        $region51: #{tpu_custom_call.1} parent=23 // pred_region
          %p815 = scmp.lt.s32.totalorder %s66, 1
          %s816 = scalar_select %p815, %s66, 1
          %s817 = smul.addr %s816, 4
          %s818 = smul.addr %s817, 4
          %s819 = scalar_lea.vmem %s6, %s818
        $region52: #{tpu_custom_call.1} parent=23 // pred_fallthru
          _
        // Predicated region
        $region53: #{tpu_custom_call.1} parent=23 // pred_check
          %p820 = pneg %p272
        $region54: #{tpu_custom_call.1} parent=23 // pred_check_branch
          %822 = sbr.rel (%p820) target = $region56
        $region55: #{tpu_custom_call.1} parent=23 // pred_region
          %s823 = sand.u32 %s58, 1
          %s824 = scalar_lea.sflag [#allocation7], %s823
          %s825 = sand.u32 %s262, 1
          %s826 = scalar_lea.vmem [#allocation8], %s825
          %s828 = ssub.s32 16, 16
          %829 = vsyncadd %s824, %s828
          %s830 = smul.addr %s66, 16
          %s831 = scalar_lea.hbm %s7, %s830
          %s833 = sshll.u32 %s826, 4
          %s834 = int_to_ptr.vmem [resolvable:$true] %s833
          %836 = dma.hbm_to_vmem [thread:$0]  %s831, 16, %s834, %s824
        $region56: #{tpu_custom_call.1} parent=23 // pred_fallthru
          _
        // Predicated region
        $region57: #{tpu_custom_call.1} parent=23 // pred_check
          %p837 = pneg %p298
        $region58: #{tpu_custom_call.1} parent=23 // pred_check_branch
          %839 = sbr.rel (%p837) target = $region60
        $region59: #{tpu_custom_call.1} parent=23 // pred_region
          %s840 = sand.u32 %s58, 1
          %s841 = scalar_lea.sflag [#allocation10], %s840
          %s842 = sand.u32 %s288, 1
          %s843 = smul.addr %s842, 16
          %s844 = scalar_lea.vmem [#allocation9], %s843
          %s846 = ssub.s32 256, 256
          %847 = vsyncadd %s841, %s846
          %s848 = smul.addr %s66, 4
          %s849 = smul.addr %s848, 64
          %s850 = scalar_lea.hbm %s8, %s849
          %s851 = sshll.u32 %s844, 4
          %s852 = int_to_ptr.vmem [resolvable:$true] %s851
          %857 = dma.hbm_to_vmem [thread:$0]  %s850, 256, %s852, %s841, 64, 64, 4
        $region60: #{tpu_custom_call.1} parent=23 // pred_fallthru
          _
        // Predicated region
        $region61: #{tpu_custom_call.1} parent=23 // pred_check
          %p858 = pneg %p324
        $region62: #{tpu_custom_call.1} parent=23 // pred_check_branch
          %860 = sbr.rel (%p858) target = $region64
        $region63: #{tpu_custom_call.1} parent=23 // pred_region
          %s861 = sand.u32 %s58, 1
          %s862 = scalar_lea.sflag [#allocation10], %s861
          %s863 = sand.u32 %s314, 1
          %s864 = scalar_lea.vmem [#allocation11], %s863
          %s866 = ssub.s32 16, 16
          %867 = vsyncadd %s862, %s866
          %s868 = smul.addr %s66, 16
          %s869 = scalar_lea.hbm %s9, %s868
          %s871 = sshll.u32 %s864, 4
          %s872 = int_to_ptr.vmem [resolvable:$true] %s871
          %874 = dma.hbm_to_vmem [thread:$0]  %s869, 16, %s872, %s862
        $region64: #{tpu_custom_call.1} parent=23 // pred_fallthru
          _
        // Predicated region
        $region65: #{tpu_custom_call.1} parent=23 // pred_check
          %p875 = pneg %p350
        $region66: #{tpu_custom_call.1} parent=23 // pred_check_branch
          %877 = sbr.rel (%p875) target = $region68
        $region67: #{tpu_custom_call.1} parent=23 // pred_region
          %s878 = sand.u32 %s58, 1
          %s879 = scalar_lea.sflag [#allocation13], %s878
          %s880 = sand.u32 %s340, 1
          %s881 = smul.addr %s880, 16
          %s882 = scalar_lea.vmem [#allocation12], %s881
          %s884 = ssub.s32 256, 256
          %885 = vsyncadd %s879, %s884
          %s886 = smul.addr %s66, 4
          %s887 = smul.addr %s886, 64
          %s888 = scalar_lea.hbm %s10, %s887
          %s889 = sshll.u32 %s882, 4
          %s890 = int_to_ptr.vmem [resolvable:$true] %s889
          %895 = dma.hbm_to_vmem [thread:$0]  %s888, 256, %s890, %s879, 64, 64, 4
        $region68: #{tpu_custom_call.1} parent=23 // pred_fallthru
          _
        // Predicated region
        $region69: #{tpu_custom_call.1} parent=23 // pred_check
          %p896 = pneg %p376
        $region70: #{tpu_custom_call.1} parent=23 // pred_check_branch
          %898 = sbr.rel (%p896) target = $region72
        $region71: #{tpu_custom_call.1} parent=23 // pred_region
          %s899 = sand.u32 %s58, 1
          %s900 = scalar_lea.sflag [#allocation13], %s899
          %s901 = sand.u32 %s366, 1
          %s902 = scalar_lea.vmem [#allocation14], %s901
          %s904 = ssub.s32 16, 16
          %905 = vsyncadd %s900, %s904
          %s906 = smul.addr %s66, 16
          %s907 = scalar_lea.hbm %s11, %s906
          %s909 = sshll.u32 %s902, 4
          %s910 = int_to_ptr.vmem [resolvable:$true] %s909
          %912 = dma.hbm_to_vmem [thread:$0]  %s907, 16, %s910, %s900
        $region72: #{tpu_custom_call.1} parent=23 // pred_fallthru
          _
        // Predicated region
        $region73: #{tpu_custom_call.1} parent=23 // pred_check
          %p913 = pneg %p402
        $region74: #{tpu_custom_call.1} parent=23 // pred_check_branch
          %915 = sbr.rel (%p913) target = $region76
        $region75: #{tpu_custom_call.1} parent=23 // pred_region
          %s916 = sand.u32 %s58, 1
          %s917 = scalar_lea.sflag [#allocation16], %s916
          %s918 = sand.u32 %s392, 1
          %s919 = scalar_lea.vmem [#allocation15], %s918
          %s921 = ssub.s32 16, 16
          %922 = vsyncadd %s917, %s921
          %s923 = smul.addr %s66, 16
          %s924 = scalar_lea.hbm %s12, %s923
          %s926 = sshll.u32 %s919, 4
          %s927 = int_to_ptr.vmem [resolvable:$true] %s926
          %929 = dma.hbm_to_vmem [thread:$0]  %s924, 16, %s927, %s917
        $region76: #{tpu_custom_call.1} parent=23 // pred_fallthru
          _
        // Predicated region
        $region77: #{tpu_custom_call.1} parent=23 // pred_check
          %p930 = pneg %p428
        $region78: #{tpu_custom_call.1} parent=23 // pred_check_branch
          %932 = sbr.rel (%p930) target = $region80
        $region79: #{tpu_custom_call.1} parent=23 // pred_region
          %s933 = sand.u32 %s58, 1
          %s934 = scalar_lea.sflag [#allocation16], %s933
          %s935 = sand.u32 %s418, 1
          %s936 = scalar_lea.vmem [#allocation17], %s935
          %s938 = ssub.s32 16, 16
          %939 = vsyncadd %s934, %s938
          %s940 = smul.addr %s66, 16
          %s941 = scalar_lea.hbm %s13, %s940
          %s943 = sshll.u32 %s936, 4
          %s944 = int_to_ptr.vmem [resolvable:$true] %s943
          %946 = dma.hbm_to_vmem [thread:$0]  %s941, 16, %s944, %s934
        $region80: #{tpu_custom_call.1} parent=23 // pred_fallthru
          _
        // Predicated region
        $region81: #{tpu_custom_call.1} parent=23 // pred_check
          %p947 = pneg %p454
        $region82: #{tpu_custom_call.1} parent=23 // pred_check_branch
          %949 = sbr.rel (%p947) target = $region84
        $region83: #{tpu_custom_call.1} parent=23 // pred_region
          %s950 = sand.u32 %s58, 1
          %s951 = scalar_lea.sflag [#allocation19], %s950
          %s952 = sand.u32 %s444, 1
          %s953 = scalar_lea.vmem [#allocation18], %s952
          %s955 = ssub.s32 16, 16
          %956 = vsyncadd %s951, %s955
          %s957 = smul.addr %s66, 16
          %s958 = scalar_lea.hbm %s14, %s957
          %s960 = sshll.u32 %s953, 4
          %s961 = int_to_ptr.vmem [resolvable:$true] %s960
          %963 = dma.hbm_to_vmem [thread:$0]  %s958, 16, %s961, %s951
        $region84: #{tpu_custom_call.1} parent=23 // pred_fallthru
          _
        // Predicated region
        $region85: #{tpu_custom_call.1} parent=23 // pred_check
          %p964 = pneg %p480
        $region86: #{tpu_custom_call.1} parent=23 // pred_check_branch
          %966 = sbr.rel (%p964) target = $region88
        $region87: #{tpu_custom_call.1} parent=23 // pred_region
          %s967 = sand.u32 %s58, 1
          %s968 = scalar_lea.sflag [#allocation19], %s967
          %s969 = sand.u32 %s470, 1
          %s970 = scalar_lea.vmem [#allocation20], %s969
          %s972 = ssub.s32 16, 16
          %973 = vsyncadd %s968, %s972
          %s974 = smul.addr %s66, 16
          %s975 = scalar_lea.hbm %s15, %s974
          %s977 = sshll.u32 %s970, 4
          %s978 = int_to_ptr.vmem [resolvable:$true] %s977
          %980 = dma.hbm_to_vmem [thread:$0]  %s975, 16, %s978, %s968
        $region88: #{tpu_custom_call.1} parent=23 // pred_fallthru
          _
        // Predicated region
        $region89: #{tpu_custom_call.1} parent=23 // pred_check
          %p981 = pneg %p506
        $region90: #{tpu_custom_call.1} parent=23 // pred_check_branch
          %983 = sbr.rel (%p981) target = $region92
        $region91: #{tpu_custom_call.1} parent=23 // pred_region
          %s984 = sand.u32 %s58, 1
          %s985 = scalar_lea.sflag [#allocation22], %s984
          %s986 = sand.u32 %s496, 1
          %s987 = scalar_lea.vmem [#allocation21], %s986
          %s989 = ssub.s32 16, 16
          %990 = vsyncadd %s985, %s989
          %s991 = smul.addr %s66, 16
          %s992 = scalar_lea.hbm %s16, %s991
          %s994 = sshll.u32 %s987, 4
          %s995 = int_to_ptr.vmem [resolvable:$true] %s994
          %997 = dma.hbm_to_vmem [thread:$0]  %s992, 16, %s995, %s985
        $region92: #{tpu_custom_call.1} parent=23 // pred_fallthru
          _
        // Predicated region
        $region93: #{tpu_custom_call.1} parent=23 // pred_check
          %p998 = pneg %p532
        $region94: #{tpu_custom_call.1} parent=23 // pred_check_branch
          %1000 = sbr.rel (%p998) target = $region96
        $region95: #{tpu_custom_call.1} parent=23 // pred_region
          %s1001 = sand.u32 %s58, 1
          %s1002 = scalar_lea.sflag [#allocation22], %s1001
          %s1003 = sand.u32 %s522, 1
          %s1004 = scalar_lea.vmem [#allocation23], %s1003
          %s1006 = ssub.s32 16, 16
          %1007 = vsyncadd %s1002, %s1006
          %s1008 = smul.addr %s66, 16
          %s1009 = scalar_lea.hbm %s17, %s1008
          %s1011 = sshll.u32 %s1004, 4
          %s1012 = int_to_ptr.vmem [resolvable:$true] %s1011
          %1014 = dma.hbm_to_vmem [thread:$0]  %s1009, 16, %s1012, %s1002
        $region96: #{tpu_custom_call.1} parent=23 // pred_fallthru
          _
        // Predicated region
        $region97: #{tpu_custom_call.1} parent=23 // pred_check
          %p1015 = pneg %p558
        $region98: #{tpu_custom_call.1} parent=23 // pred_check_branch
          %1017 = sbr.rel (%p1015) target = $region100
        $region99: #{tpu_custom_call.1} parent=23 // pred_region
          %s1018 = sand.u32 %s58, 1
          %s1019 = scalar_lea.sflag [#allocation25], %s1018
          %s1020 = sand.u32 %s548, 1
          %s1021 = smul.addr %s1020, 16
          %s1022 = scalar_lea.vmem [#allocation24], %s1021
          %s1024 = ssub.s32 256, 256
          %1025 = vsyncadd %s1019, %s1024
          %s1026 = smul.addr %s66, 4
          %s1027 = smul.addr %s1026, 64
          %s1028 = scalar_lea.hbm %s18, %s1027
          %s1029 = sshll.u32 %s1022, 4
          %s1030 = int_to_ptr.vmem [resolvable:$true] %s1029
          %1035 = dma.hbm_to_vmem [thread:$0]  %s1028, 256, %s1030, %s1019, 64, 64, 4
        $region100: #{tpu_custom_call.1} parent=23 // pred_fallthru
          _
        // Predicated region
        $region101: #{tpu_custom_call.1} parent=23 // pred_check
          %p1036 = pneg %p584
        $region102: #{tpu_custom_call.1} parent=23 // pred_check_branch
          %1038 = sbr.rel (%p1036) target = $region104
        $region103: #{tpu_custom_call.1} parent=23 // pred_region
          %s1039 = sand.u32 %s58, 1
          %s1040 = scalar_lea.sflag [#allocation25], %s1039
          %s1041 = sand.u32 %s574, 1
          %s1042 = scalar_lea.vmem [#allocation26], %s1041
          %s1044 = ssub.s32 16, 16
          %1045 = vsyncadd %s1040, %s1044
          %s1046 = smul.addr %s66, 16
          %s1047 = scalar_lea.hbm %s19, %s1046
          %s1049 = sshll.u32 %s1042, 4
          %s1050 = int_to_ptr.vmem [resolvable:$true] %s1049
          %1052 = dma.hbm_to_vmem [thread:$0]  %s1047, 16, %s1050, %s1040
        $region104: #{tpu_custom_call.1} parent=23 // pred_fallthru
          _
        // Predicated region
        $region105: #{tpu_custom_call.1} parent=23 // pred_check
          %p1053 = pneg %p610
        $region106: #{tpu_custom_call.1} parent=23 // pred_check_branch
          %1055 = sbr.rel (%p1053) target = $region108
        $region107: #{tpu_custom_call.1} parent=23 // pred_region
          %p1056 = scmp.lt.s32.totalorder %s66, 1
          %s1057 = scalar_select %p1056, %s66, 1
          %s1058 = smul.addr %s1057, 8
          %s1059 = smul.addr %s1058, 4
          %s1060 = scalar_lea.vmem %s20, %s1059
        $region108: #{tpu_custom_call.1} parent=23 // pred_fallthru
          _
        // Predicated region
        $region109: #{tpu_custom_call.1} parent=23 // pred_check
          %p1061 = pneg %p636
        $region110: #{tpu_custom_call.1} parent=23 // pred_check_branch
          %1063 = sbr.rel (%p1061) target = $region112
        $region111: #{tpu_custom_call.1} parent=23 // pred_region
          %p1064 = scmp.lt.s32.totalorder %s66, 1
          %s1065 = scalar_select %p1064, %s66, 1
          %s1066 = scalar_lea.vmem %s21, %s1065
        $region112: #{tpu_custom_call.1} parent=23 // pred_fallthru
          _
      $region24: #{tpu_custom_call.1} parent=5 // pred_fallthru
        _
      %p1067 = scmp.le.s32.totalorder 1, %s58
      %p1068 = scmp.lt.s32.totalorder %s58, 5
      %p1069 = pnand %p1067, %p1068
      %p1070 = pneg %p1069
      // Predicated region
      $region113: #{tpu_custom_call.1} parent=5 // pred_check
        _
      $region114: #{tpu_custom_call.1} parent=5 // pred_check_branch
        %1072 = sbr.rel (%p1069) target = $region116
      $region115: #{tpu_custom_call.1} parent=5 // pred_region
        %s1073 = ssub.s32 %s58, 1
        %s1074 = sand.u32 %s83, 1
        %s1075 = scalar_lea.sflag [#allocation4], %s1074
        %s1076 = sand.u32 %s83, 1
        %s1077 = smul.addr %s1076, 8
        %s1078 = scalar_lea.vmem [#allocation3], %s1077
        // Predicated region
        $region117: #{tpu_custom_call.1} parent=115 // pred_check
          %p1079 = pneg %p96
        $region118: #{tpu_custom_call.1} parent=115 // pred_check_branch
          %1081 = sbr.rel (%p1079) target = $region120
        $region119: #{tpu_custom_call.1} parent=115 // pred_region
          %1082 = dma.done %s1075, 128
        $region120: #{tpu_custom_call.1} parent=115 // pred_fallthru
          _
        %s1083 = sand.u32 %s63, 1
        %s1084 = scalar_lea.sflag [#allocation7], %s1083
        %s1085 = sand.u32 %s109, 1
        %s1086 = smul.addr %s1085, 8
        %s1087 = scalar_lea.vmem [#allocation6], %s1086
        // Predicated region
        $region121: #{tpu_custom_call.1} parent=115 // pred_check
          %p1088 = pneg %p122
        $region122: #{tpu_custom_call.1} parent=115 // pred_check_branch
          %1090 = sbr.rel (%p1088) target = $region124
        $region123: #{tpu_custom_call.1} parent=115 // pred_region
          %1091 = dma.done %s1084, 128
        $region124: #{tpu_custom_call.1} parent=115 // pred_fallthru
          _
        %s1092 = sand.u32 %s63, 1
        %s1093 = scalar_lea.sflag [#allocation7], %s1092
        %s1094 = sand.u32 %s265, 1
        %s1095 = scalar_lea.vmem [#allocation8], %s1094
        // Predicated region
        $region125: #{tpu_custom_call.1} parent=115 // pred_check
          %p1096 = pneg %p278
        $region126: #{tpu_custom_call.1} parent=115 // pred_check_branch
          %1098 = sbr.rel (%p1096) target = $region128
        $region127: #{tpu_custom_call.1} parent=115 // pred_region
          %1099 = dma.done %s1093, 16
        $region128: #{tpu_custom_call.1} parent=115 // pred_fallthru
          _
        %s1100 = sand.u32 %s63, 1
        %s1101 = scalar_lea.sflag [#allocation10], %s1100
        %s1102 = sand.u32 %s291, 1
        %s1103 = smul.addr %s1102, 16
        %s1104 = scalar_lea.vmem [#allocation9], %s1103
        // Predicated region
        $region129: #{tpu_custom_call.1} parent=115 // pred_check
          %p1105 = pneg %p304
        $region130: #{tpu_custom_call.1} parent=115 // pred_check_branch
          %1107 = sbr.rel (%p1105) target = $region132
        $region131: #{tpu_custom_call.1} parent=115 // pred_region
          %1108 = dma.done %s1101, 256
        $region132: #{tpu_custom_call.1} parent=115 // pred_fallthru
          _
        %s1109 = sand.u32 %s63, 1
        %s1110 = scalar_lea.sflag [#allocation10], %s1109
        %s1111 = sand.u32 %s317, 1
        %s1112 = scalar_lea.vmem [#allocation11], %s1111
        // Predicated region
        $region133: #{tpu_custom_call.1} parent=115 // pred_check
          %p1113 = pneg %p330
        $region134: #{tpu_custom_call.1} parent=115 // pred_check_branch
          %1115 = sbr.rel (%p1113) target = $region136
        $region135: #{tpu_custom_call.1} parent=115 // pred_region
          %1116 = dma.done %s1110, 16
        $region136: #{tpu_custom_call.1} parent=115 // pred_fallthru
          _
        %s1117 = sand.u32 %s63, 1
        %s1118 = scalar_lea.sflag [#allocation13], %s1117
        %s1119 = sand.u32 %s343, 1
        %s1120 = smul.addr %s1119, 16
        %s1121 = scalar_lea.vmem [#allocation12], %s1120
        // Predicated region
        $region137: #{tpu_custom_call.1} parent=115 // pred_check
          %p1122 = pneg %p356
        $region138: #{tpu_custom_call.1} parent=115 // pred_check_branch
          %1124 = sbr.rel (%p1122) target = $region140
        $region139: #{tpu_custom_call.1} parent=115 // pred_region
          %1125 = dma.done %s1118, 256
        $region140: #{tpu_custom_call.1} parent=115 // pred_fallthru
          _
        %s1126 = sand.u32 %s63, 1
        %s1127 = scalar_lea.sflag [#allocation13], %s1126
        %s1128 = sand.u32 %s369, 1
        %s1129 = scalar_lea.vmem [#allocation14], %s1128
        // Predicated region
        $region141: #{tpu_custom_call.1} parent=115 // pred_check
          %p1130 = pneg %p382
        $region142: #{tpu_custom_call.1} parent=115 // pred_check_branch
          %1132 = sbr.rel (%p1130) target = $region144
        $region143: #{tpu_custom_call.1} parent=115 // pred_region
          %1133 = dma.done %s1127, 16
        $region144: #{tpu_custom_call.1} parent=115 // pred_fallthru
          _
        %s1134 = sand.u32 %s63, 1
        %s1135 = scalar_lea.sflag [#allocation16], %s1134
        %s1136 = sand.u32 %s395, 1
        %s1137 = scalar_lea.vmem [#allocation15], %s1136
        // Predicated region
        $region145: #{tpu_custom_call.1} parent=115 // pred_check
          %p1138 = pneg %p408
        $region146: #{tpu_custom_call.1} parent=115 // pred_check_branch
          %1140 = sbr.rel (%p1138) target = $region148
        $region147: #{tpu_custom_call.1} parent=115 // pred_region
          %1141 = dma.done %s1135, 16
        $region148: #{tpu_custom_call.1} parent=115 // pred_fallthru
          _
        %s1142 = sand.u32 %s63, 1
        %s1143 = scalar_lea.sflag [#allocation16], %s1142
        %s1144 = sand.u32 %s421, 1
        %s1145 = scalar_lea.vmem [#allocation17], %s1144
        // Predicated region
        $region149: #{tpu_custom_call.1} parent=115 // pred_check
          %p1146 = pneg %p434
        $region150: #{tpu_custom_call.1} parent=115 // pred_check_branch
          %1148 = sbr.rel (%p1146) target = $region152
        $region151: #{tpu_custom_call.1} parent=115 // pred_region
          %1149 = dma.done %s1143, 16
        $region152: #{tpu_custom_call.1} parent=115 // pred_fallthru
          _
        %s1150 = sand.u32 %s63, 1
        %s1151 = scalar_lea.sflag [#allocation19], %s1150
        %s1152 = sand.u32 %s447, 1
        %s1153 = scalar_lea.vmem [#allocation18], %s1152
        // Predicated region
        $region153: #{tpu_custom_call.1} parent=115 // pred_check
          %p1154 = pneg %p460
        $region154: #{tpu_custom_call.1} parent=115 // pred_check_branch
          %1156 = sbr.rel (%p1154) target = $region156
        $region155: #{tpu_custom_call.1} parent=115 // pred_region
          %1157 = dma.done %s1151, 16
        $region156: #{tpu_custom_call.1} parent=115 // pred_fallthru
          _
        %s1158 = sand.u32 %s63, 1
        %s1159 = scalar_lea.sflag [#allocation19], %s1158
        %s1160 = sand.u32 %s473, 1
        %s1161 = scalar_lea.vmem [#allocation20], %s1160
        // Predicated region
        $region157: #{tpu_custom_call.1} parent=115 // pred_check
          %p1162 = pneg %p486
        $region158: #{tpu_custom_call.1} parent=115 // pred_check_branch
          %1164 = sbr.rel (%p1162) target = $region160
        $region159: #{tpu_custom_call.1} parent=115 // pred_region
          %1165 = dma.done %s1159, 16
        $region160: #{tpu_custom_call.1} parent=115 // pred_fallthru
          _
        %s1166 = sand.u32 %s63, 1
        %s1167 = scalar_lea.sflag [#allocation22], %s1166
        %s1168 = sand.u32 %s499, 1
        %s1169 = scalar_lea.vmem [#allocation21], %s1168
        // Predicated region
        $region161: #{tpu_custom_call.1} parent=115 // pred_check
          %p1170 = pneg %p512
        $region162: #{tpu_custom_call.1} parent=115 // pred_check_branch
          %1172 = sbr.rel (%p1170) target = $region164
        $region163: #{tpu_custom_call.1} parent=115 // pred_region
          %1173 = dma.done %s1167, 16
        $region164: #{tpu_custom_call.1} parent=115 // pred_fallthru
          _
        %s1174 = sand.u32 %s63, 1
        %s1175 = scalar_lea.sflag [#allocation22], %s1174
        %s1176 = sand.u32 %s525, 1
        %s1177 = scalar_lea.vmem [#allocation23], %s1176
        // Predicated region
        $region165: #{tpu_custom_call.1} parent=115 // pred_check
          %p1178 = pneg %p538
        $region166: #{tpu_custom_call.1} parent=115 // pred_check_branch
          %1180 = sbr.rel (%p1178) target = $region168
        $region167: #{tpu_custom_call.1} parent=115 // pred_region
          %1181 = dma.done %s1175, 16
        $region168: #{tpu_custom_call.1} parent=115 // pred_fallthru
          _
        %s1182 = sand.u32 %s63, 1
        %s1183 = scalar_lea.sflag [#allocation25], %s1182
        %s1184 = sand.u32 %s551, 1
        %s1185 = smul.addr %s1184, 16
        %s1186 = scalar_lea.vmem [#allocation24], %s1185
        // Predicated region
        $region169: #{tpu_custom_call.1} parent=115 // pred_check
          %p1187 = pneg %p564
        $region170: #{tpu_custom_call.1} parent=115 // pred_check_branch
          %1189 = sbr.rel (%p1187) target = $region172
        $region171: #{tpu_custom_call.1} parent=115 // pred_region
          %1190 = dma.done %s1183, 256
        $region172: #{tpu_custom_call.1} parent=115 // pred_fallthru
          _
        %s1191 = sand.u32 %s63, 1
        %s1192 = scalar_lea.sflag [#allocation25], %s1191
        %s1193 = sand.u32 %s577, 1
        %s1194 = scalar_lea.vmem [#allocation26], %s1193
        // Predicated region
        $region173: #{tpu_custom_call.1} parent=115 // pred_check
          %p1195 = pneg %p590
        $region174: #{tpu_custom_call.1} parent=115 // pred_check_branch
          %1197 = sbr.rel (%p1195) target = $region176
        $region175: #{tpu_custom_call.1} parent=115 // pred_region
          %1198 = dma.done %s1192, 16
        $region176: #{tpu_custom_call.1} parent=115 // pred_fallthru
          _
        // Predicated region
        $region177: #{tpu_custom_call.1} parent=115 // pred_check
          %p1199 = pneg %p663
        $region178: #{tpu_custom_call.1} parent=115 // pred_check_branch
          %1201 = sbr.rel (%p1199) target = $region180
        $region179: #{tpu_custom_call.1} parent=115 // pred_region
          %1202 = dma.done [#allocation28], 256
        $region180: #{tpu_custom_call.1} parent=115 // pred_fallthru
          _
        %s1203 = sand.u32 %s83, 1
        %s1204 = scalar_lea.sflag [#allocation4], %s1203
        %s1205 = sand.u32 %s83, 1
        %s1206 = smul.addr %s1205, 8
        %s1207 = scalar_lea.vmem [#allocation3], %s1206
        %p1208 = pneg %p96
        %p1209 = pneg %p93
        %s1210 = sand.u32 %s63, 1
        %s1211 = scalar_lea.sflag [#allocation7], %s1210
        %s1212 = sand.u32 %s109, 1
        %s1213 = smul.addr %s1212, 8
        %s1214 = scalar_lea.vmem [#allocation6], %s1213
        %p1215 = pneg %p122
        %p1216 = pneg %p119
        %p1217 = scmp.lt.s32.totalorder %s68, 1
        %s1218 = scalar_select %p1217, %s68, 1
        %s1219 = smul.addr %s1218, 4
        %s1220 = smul.addr %s1219, 4
        %s1221 = scalar_lea.vmem %s2, %s1220
        %p1222 = pneg %p148
        %p1223 = pneg %p145
        %p1224 = scmp.lt.s32.totalorder %s68, 1
        %s1225 = scalar_select %p1224, %s68, 1
        %s1226 = scalar_lea.vmem %s3, %s1225
        %p1227 = pneg %p174
        %p1228 = pneg %p171
        %p1229 = scmp.lt.s32.totalorder %s68, 1
        %s1230 = scalar_select %p1229, %s68, 1
        %s1231 = smul.addr %s1230, 4
        %s1232 = smul.addr %s1231, 4
        %s1233 = scalar_lea.vmem %s4, %s1232
        %p1234 = pneg %p200
        %p1235 = pneg %p197
        %p1236 = scmp.lt.s32.totalorder %s68, 1
        %s1237 = scalar_select %p1236, %s68, 1
        %s1238 = scalar_lea.vmem %s5, %s1237
        %p1239 = pneg %p226
        %p1240 = pneg %p223
        %p1241 = scmp.lt.s32.totalorder %s68, 1
        %s1242 = scalar_select %p1241, %s68, 1
        %s1243 = smul.addr %s1242, 4
        %s1244 = smul.addr %s1243, 4
        %s1245 = scalar_lea.vmem %s6, %s1244
        %p1246 = pneg %p252
        %p1247 = pneg %p249
        %s1248 = sand.u32 %s63, 1
        %s1249 = scalar_lea.sflag [#allocation7], %s1248
        %s1250 = sand.u32 %s265, 1
        %s1251 = scalar_lea.vmem [#allocation8], %s1250
        %p1252 = pneg %p278
        %p1253 = pneg %p275
        %s1254 = sand.u32 %s63, 1
        %s1255 = scalar_lea.sflag [#allocation10], %s1254
        %s1256 = sand.u32 %s291, 1
        %s1257 = smul.addr %s1256, 16
        %s1258 = scalar_lea.vmem [#allocation9], %s1257
        %p1259 = pneg %p304
        %p1260 = pneg %p301
        %s1261 = sand.u32 %s63, 1
        %s1262 = scalar_lea.sflag [#allocation10], %s1261
        %s1263 = sand.u32 %s317, 1
        %s1264 = scalar_lea.vmem [#allocation11], %s1263
        %p1265 = pneg %p330
        %p1266 = pneg %p327
        %s1267 = sand.u32 %s63, 1
        %s1268 = scalar_lea.sflag [#allocation13], %s1267
        %s1269 = sand.u32 %s343, 1
        %s1270 = smul.addr %s1269, 16
        %s1271 = scalar_lea.vmem [#allocation12], %s1270
        %p1272 = pneg %p356
        %p1273 = pneg %p353
        %s1274 = sand.u32 %s63, 1
        %s1275 = scalar_lea.sflag [#allocation13], %s1274
        %s1276 = sand.u32 %s369, 1
        %s1277 = scalar_lea.vmem [#allocation14], %s1276
        %p1278 = pneg %p382
        %p1279 = pneg %p379
        %s1280 = sand.u32 %s63, 1
        %s1281 = scalar_lea.sflag [#allocation16], %s1280
        %s1282 = sand.u32 %s395, 1
        %s1283 = scalar_lea.vmem [#allocation15], %s1282
        %p1284 = pneg %p408
        %p1285 = pneg %p405
        %s1286 = sand.u32 %s63, 1
        %s1287 = scalar_lea.sflag [#allocation16], %s1286
        %s1288 = sand.u32 %s421, 1
        %s1289 = scalar_lea.vmem [#allocation17], %s1288
        %p1290 = pneg %p434
        %p1291 = pneg %p431
        %s1292 = sand.u32 %s63, 1
        %s1293 = scalar_lea.sflag [#allocation19], %s1292
        %s1294 = sand.u32 %s447, 1
        %s1295 = scalar_lea.vmem [#allocation18], %s1294
        %p1296 = pneg %p460
        %p1297 = pneg %p457
        %s1298 = sand.u32 %s63, 1
        %s1299 = scalar_lea.sflag [#allocation19], %s1298
        %s1300 = sand.u32 %s473, 1
        %s1301 = scalar_lea.vmem [#allocation20], %s1300
        %p1302 = pneg %p486
        %p1303 = pneg %p483
        %s1304 = sand.u32 %s63, 1
        %s1305 = scalar_lea.sflag [#allocation22], %s1304
        %s1306 = sand.u32 %s499, 1
        %s1307 = scalar_lea.vmem [#allocation21], %s1306
        %p1308 = pneg %p512
        %p1309 = pneg %p509
        %s1310 = sand.u32 %s63, 1
        %s1311 = scalar_lea.sflag [#allocation22], %s1310
        %s1312 = sand.u32 %s525, 1
        %s1313 = scalar_lea.vmem [#allocation23], %s1312
        %p1314 = pneg %p538
        %p1315 = pneg %p535
        %s1316 = sand.u32 %s63, 1
        %s1317 = scalar_lea.sflag [#allocation25], %s1316
        %s1318 = sand.u32 %s551, 1
        %s1319 = smul.addr %s1318, 16
        %s1320 = scalar_lea.vmem [#allocation24], %s1319
        %p1321 = pneg %p564
        %p1322 = pneg %p561
        %s1323 = sand.u32 %s63, 1
        %s1324 = scalar_lea.sflag [#allocation25], %s1323
        %s1325 = sand.u32 %s577, 1
        %s1326 = scalar_lea.vmem [#allocation26], %s1325
        %p1327 = pneg %p590
        %p1328 = pneg %p587
        %p1329 = scmp.lt.s32.totalorder %s68, 1
        %s1330 = scalar_select %p1329, %s68, 1
        %s1331 = smul.addr %s1330, 8
        %s1332 = smul.addr %s1331, 4
        %s1333 = scalar_lea.vmem %s20, %s1332
        %p1334 = pneg %p616
        %p1335 = pneg %p613
        %p1336 = scmp.lt.s32.totalorder %s68, 1
        %s1337 = scalar_select %p1336, %s68, 1
        %s1338 = scalar_lea.vmem %s21, %s1337
        %p1339 = pneg %p642
        %p1340 = pneg %p639
        %p1341 = pneg %p663
        %p1342 = pneg %p660
        %p1343 = pneg %p684
        %p1344 = pneg %p681
        %p1345 = pneg %p710
        %p1346 = pneg %p707
        %s1347 = sand.u32 %s697, 1
        %s1348 = scalar_lea.sflag [#allocation5], %s1347
        %s1349 = sand.u32 %s697, 1
        %s1350 = smul.addr %s1349, 8
        %s1351 = scalar_lea.vmem [#allocation29], %s1350
        %p1352 = scmp.lt.s32.totalorder %s68, 1
        %s1353 = scalar_select %p1352, %s68, 1
        %s1354 = smul.addr %s1353, 4
        %s1355 = smul.addr %s1354, 4
        %s1356 = scalar_lea.vmem %s2, %s1355
        %p1357 = scmp.lt.s32.totalorder %s68, 1
        %s1358 = scalar_select %p1357, %s68, 1
        %s1359 = scalar_lea.vmem %s3, %s1358
        %p1360 = scmp.lt.s32.totalorder %s68, 1
        %s1361 = scalar_select %p1360, %s68, 1
        %s1362 = smul.addr %s1361, 4
        %s1363 = smul.addr %s1362, 4
        %s1364 = scalar_lea.vmem %s4, %s1363
        %p1365 = scmp.lt.s32.totalorder %s68, 1
        %s1366 = scalar_select %p1365, %s68, 1
        %s1367 = scalar_lea.vmem %s5, %s1366
        %p1368 = scmp.lt.s32.totalorder %s68, 1
        %s1369 = scalar_select %p1368, %s68, 1
        %s1370 = smul.addr %s1369, 4
        %s1371 = smul.addr %s1370, 4
        %s1372 = scalar_lea.vmem %s6, %s1371
        %p1373 = scmp.lt.s32.totalorder %s68, 1
        %s1374 = scalar_select %p1373, %s68, 1
        %s1375 = smul.addr %s1374, 8
        %s1376 = smul.addr %s1375, 4
        %s1377 = scalar_lea.vmem %s20, %s1376
        %p1378 = scmp.lt.s32.totalorder %s68, 1
        %s1379 = scalar_select %p1378, %s68, 1
        %s1380 = scalar_lea.vmem %s21, %s1379
        %p1382 = scmp.eq.s32.totalorder %s68, 0
        // Predicated region
        $region181: #{tpu_custom_call.1} parent=115 // pred_check
          %p1383 = pneg %p1382
        $region182: #{tpu_custom_call.1} parent=115 // pred_check_branch
          %1385 = sbr.rel (%p1383) target = $region184
        $region183: #{tpu_custom_call.1} parent=115 // pred_region
          %v1386 = vld [vmem:[%s1078] sm:$0xff]
          %vm1387 = vcmask 261120
          %1388 = vst.msk [vmem:[#allocation2] sm:$0xff] %vm1387, %v1386
        $region184: #{tpu_custom_call.1} parent=115 // pred_fallthru
          _
        %v1389 = vld [vmem:[#allocation2] sm:$0xff]
        %v1390 = vld [vmem:[%s1087] sm:$0xf]
        %v1391 = vld [vmem:[%s1087 + $0x4] sm:$0xf]
        %v1392 = vpack.c.bf16 %v1389, %v1389
        %v1393 = vld [vmem:[%s1356] sm:$0xf]
        %v1394 = vld [vmem:[%s1356 + $0x4] sm:$0xf]
        %v1395 = vld [vmem:[%s1356 + $0x8] sm:$0xf]
        %v1396 = vld [vmem:[%s1356 + $0xc] sm:$0xf]
        %v1397 = vld [vmem:[%s1359] sm:$0x1]
        %v1399 = vlaneseq
        %v1400 = vshrl.u32 %v1399, 7
        %v1401 = vsub.s32 0, %v1400
        %v1402 = vrot.slane %v1397, %v1401
        %v1408 = vunpack.c.l.b16 %v1393
        %v1409 = vunpack.c.l.b16 %v1394
        %v1410 = vunpack.c.l.b16 %v1395
        %v1411 = vunpack.c.l.b16 %v1396
        %v1412 = vpack.c.b16 %v1409, %v1408
        %v1413 = vpack.c.b16 %v1411, %v1410
        %vm1416 = vcmask 261120
        %v1418 = vsel %vm1416, %v1392, 0
        %1420 = vmatprep.subr.bf16.mxu0 0
        %1421 = vmatpush1.bf16.msra.mxu0 0
        %1422 = vmatprep.subr.bf16.mxu0 0
        %1423 = vmatpush1.bf16.msra.mxu0 0
        %1424 = vmatprep.subr.bf16.mxu0 0
        %1425 = vmatpush1.bf16.msra.mxu0 0
        %1426 = vmatprep.subr.bf16.mxu0 0
        %1427 = vmatpush1.bf16.msra.mxu0 0
        %1428 = vmatprep.subr.bf16.mxu0 0
        %1429 = vmatpush1.bf16.msra.mxu0 0
        %1430 = vmatprep.subr.bf16.mxu0 0
        %1431 = vmatpush1.bf16.msra.mxu0 0
        %1432 = vmatprep.subr.bf16.mxu0 0
        %1433 = vmatpush1.bf16.msra.mxu0 %v1413
        %1434 = vmatprep.subr.bf16.mxu0 0
        %1435 = vmatpush1.bf16.msra.mxu0 %v1412
        %1436 = vmatprep.subr.bf16.mxu0 0
        %1437 = vmatpush2.bf16.msra.mxu0 0
        %1438 = vmatprep.subr.bf16.mxu0 0
        %1439 = vmatpush2.bf16.msra.mxu0 0
        %1440 = vmatprep.subr.bf16.mxu0 0
        %1441 = vmatpush2.bf16.msra.mxu0 0
        %1442 = vmatprep.subr.bf16.mxu0 0
        %1443 = vmatpush2.bf16.msra.mxu0 0
        %1444 = vmatprep.subr.bf16.mxu0 0
        %1445 = vmatpush2.bf16.msra.mxu0 0
        %1446 = vmatprep.subr.bf16.mxu0 0
        %1447 = vmatpush2.bf16.msra.mxu0 0
        %1448 = vmatprep.subr.bf16.mxu0 0
        %1449 = vmatpush2.bf16.msra.mxu0 0
        %1450 = vmatprep.subr.bf16.mxu0 0
        %1451 = vmatpush2.bf16.msra.mxu0 0
        %1452 = vmatprep.mubr.bf16.mxu0 0
        %1453 = vmatmul.mubr.bf16.gmra.mxu0 %v1418
        %v1454 = vpop.f32.mrf.mxu0
        %v1455 = vadd.f32 %v1402, %v1454
        %v1456 = vpop.f32.mrf.mxu0
        %v1457 = vpop.f32.mrf.mxu0
        %v1458 = vpop.f32.mrf.mxu0
        %1459 = vdwg.mxu0
        %v1460 = vlaneseq
        %v1461 = vshrl.u32 %v1460, 7
        %v1462 = vlaneseq
        %v1463 = vand.u32 %v1462, 127
        %vm1464 = vcmp.ge.s32.totalorder %v1461, %v1463
        %v1465 = vsel %vm1464, 0.0, -1e+30
        %v1466 = vld [vmem:[%s1364] sm:$0xf]
        %v1467 = vpack.c.bf16 %v1455, %v1455
        %1469 = vrot.lane.b32.xlu0 %v1467, 96
        %v1470 = vpop.permute.xlu0 %1469
        %vm1471 = vcmask 64512
        %v1473 = vsel %vm1471, %v1467, 0
        %v1476 = vsel %vm1471, %v1470, 0
        %1478 = vmatprep.subr.bf16.mxu0 0
        %1479 = vmatpush1.bf16.xpose.msra.mxu0 0
        %1480 = vmatprep.subr.bf16.mxu0 0
        %1481 = vmatpush1.bf16.xpose.msra.mxu0 0
        %1482 = vmatprep.subr.bf16.mxu0 0
        %1483 = vmatpush1.bf16.xpose.msra.mxu0 0
        %1484 = vmatprep.subr.bf16.mxu0 0
        %1485 = vmatpush1.bf16.xpose.msra.mxu0 0
        %1486 = vmatprep.subr.bf16.mxu0 0
        %1487 = vmatpush1.bf16.xpose.msra.mxu0 0
        %1488 = vmatprep.subr.bf16.mxu0 0
        %1489 = vmatpush1.bf16.xpose.msra.mxu0 0
        %1490 = vmatprep.subr.bf16.mxu0 0
        %1491 = vmatpush1.bf16.xpose.msra.mxu0 0
        %1492 = vmatprep.subr.bf16.mxu0 0
        %1493 = vmatpush1.bf16.xpose.msra.mxu0 %v1476
        %1494 = vmatprep.subr.bf16.mxu0 0
        %1495 = vmatpush2.bf16.xpose.msra.mxu0 0
        %1496 = vmatprep.subr.bf16.mxu0 0
        %1497 = vmatpush2.bf16.xpose.msra.mxu0 0
        %1498 = vmatprep.subr.bf16.mxu0 0
        %1499 = vmatpush2.bf16.xpose.msra.mxu0 0
        %1500 = vmatprep.subr.bf16.mxu0 0
        %1501 = vmatpush2.bf16.xpose.msra.mxu0 0
        %1502 = vmatprep.subr.bf16.mxu0 0
        %1503 = vmatpush2.bf16.xpose.msra.mxu0 0
        %1504 = vmatprep.subr.bf16.mxu0 0
        %1505 = vmatpush2.bf16.xpose.msra.mxu0 0
        %1506 = vmatprep.subr.bf16.mxu0 0
        %1507 = vmatpush2.bf16.xpose.msra.mxu0 0
        %1508 = vmatprep.subr.bf16.mxu0 0
        %1509 = vmatpush2.bf16.xpose.msra.mxu0 0
        %1510 = vmatprep.mubr.bf16.mxu0 0
        %1511 = vmatmul.mubr.bf16.gmra.mxu0 %v1473
        %v1512 = vpop.f32.mrf.mxu0
        %v1513 = vadd.f32 %v1465, %v1512
        %v1514 = vpop.f32.mrf.mxu0
        %v1515 = vpop.f32.mrf.mxu0
        %v1516 = vpop.f32.mrf.mxu0
        %1517 = vdwg.mxu0
        %v1518 = vsel %vm1471, %v1513, -inf
        %1519 = vmax.xlane.f32.xlu0 %v1518
        %v1520 = vpop.xlane.xlu0 %1519
        %v1521 = vsub.f32 %v1513, %v1520
        %v1522 = vmul.f32 %v1521, 1.442695
        %v1523 = vpow.pop %v1522
        %v1524 = vsel %vm1471, %v1523, 0.0
        %1525 = vadd.xlane.f32.xlu0 %v1524
        %v1526 = vpop.xlane.xlu0 %1525
        %v1527 = vrcp.pop %v1526
        %v1528 = vmul.f32 %v1523, %v1527
        %v1529 = vpack.c.bf16 %v1528, %v1528
        %1530 = vrot.lane.b32.xlu0 %v1467, 64
        %v1531 = vpop.permute.xlu0 %1530
        %v1533 = vsel %vm1471, %v1529, 0
        %vm1535 = vcmask 1043456
        %v1537 = vsel %vm1535, %v1531, 0
        %1539 = vmatprep.subr.bf16.mxu0 0
        %1540 = vmatpush1.bf16.msra.mxu0 0
        %1541 = vmatprep.subr.bf16.mxu0 0
        %1542 = vmatpush1.bf16.msra.mxu0 0
        %1543 = vmatprep.subr.bf16.mxu0 0
        %1544 = vmatpush1.bf16.msra.mxu0 0
        %1545 = vmatprep.subr.bf16.mxu0 0
        %1546 = vmatpush1.bf16.msra.mxu0 0
        %1547 = vmatprep.subr.bf16.mxu0 0
        %1548 = vmatpush1.bf16.msra.mxu0 0
        %1549 = vmatprep.subr.bf16.mxu0 0
        %1550 = vmatpush1.bf16.msra.mxu0 0
        %1551 = vmatprep.subr.bf16.mxu0 0
        %1552 = vmatpush1.bf16.msra.mxu0 0
        %1553 = vmatprep.subr.bf16.mxu0 0
        %1554 = vmatpush1.bf16.msra.mxu0 %v1537
        %1555 = vmatprep.subr.bf16.mxu0 0
        %1556 = vmatpush2.bf16.msra.mxu0 0
        %1557 = vmatprep.subr.bf16.mxu0 0
        %1558 = vmatpush2.bf16.msra.mxu0 0
        %1559 = vmatprep.subr.bf16.mxu0 0
        %1560 = vmatpush2.bf16.msra.mxu0 0
        %1561 = vmatprep.subr.bf16.mxu0 0
        %1562 = vmatpush2.bf16.msra.mxu0 0
        %1563 = vmatprep.subr.bf16.mxu0 0
        %1564 = vmatpush2.bf16.msra.mxu0 0
        %1565 = vmatprep.subr.bf16.mxu0 0
        %1566 = vmatpush2.bf16.msra.mxu0 0
        %1567 = vmatprep.subr.bf16.mxu0 0
        %1568 = vmatpush2.bf16.msra.mxu0 0
        %1569 = vmatprep.subr.bf16.mxu0 0
        %1570 = vmatpush2.bf16.msra.mxu0 0
        %1571 = vmatprep.mubr.bf16.mxu0 0
        %1572 = vmatmul.mubr.bf16.gmra.mxu0 %v1533
        %v1573 = vpop.f32.mrf.mxu0
        %v1574 = vadd.f32 0.0, %v1573
        %v1575 = vpop.f32.mrf.mxu0
        %v1576 = vpop.f32.mrf.mxu0
        %v1577 = vpop.f32.mrf.mxu0
        %1578 = vdwg.mxu0
        %v1579 = vpack.c.bf16 %v1574, %v1574
        %v1580 = vld [vmem:[%s1364 + $0x4] sm:$0xf]
        %1581 = vrot.lane.b32.xlu0 %v1467, 120
        %v1582 = vpop.permute.xlu0 %1581
        %1583 = vrot.lane.b32.xlu0 %v1467, 88
        %v1584 = vpop.permute.xlu0 %1583
        %v1586 = vsel %vm1471, %v1582, 0
        %v1589 = vsel %vm1471, %v1584, 0
        %1591 = vmatprep.subr.bf16.mxu0 0
        %1592 = vmatpush1.bf16.xpose.msra.mxu0 0
        %1593 = vmatprep.subr.bf16.mxu0 0
        %1594 = vmatpush1.bf16.xpose.msra.mxu0 0
        %1595 = vmatprep.subr.bf16.mxu0 0
        %1596 = vmatpush1.bf16.xpose.msra.mxu0 0
        %1597 = vmatprep.subr.bf16.mxu0 0
        %1598 = vmatpush1.bf16.xpose.msra.mxu0 0
        %1599 = vmatprep.subr.bf16.mxu0 0
        %1600 = vmatpush1.bf16.xpose.msra.mxu0 0
        %1601 = vmatprep.subr.bf16.mxu0 0
        %1602 = vmatpush1.bf16.xpose.msra.mxu0 0
        %1603 = vmatprep.subr.bf16.mxu0 0
        %1604 = vmatpush1.bf16.xpose.msra.mxu0 0
        %1605 = vmatprep.subr.bf16.mxu0 0
        %1606 = vmatpush1.bf16.xpose.msra.mxu0 %v1589
        %1607 = vmatprep.subr.bf16.mxu0 0
        %1608 = vmatpush2.bf16.xpose.msra.mxu0 0
        %1609 = vmatprep.subr.bf16.mxu0 0
        %1610 = vmatpush2.bf16.xpose.msra.mxu0 0
        %1611 = vmatprep.subr.bf16.mxu0 0
        %1612 = vmatpush2.bf16.xpose.msra.mxu0 0
        %1613 = vmatprep.subr.bf16.mxu0 0
        %1614 = vmatpush2.bf16.xpose.msra.mxu0 0
        %1615 = vmatprep.subr.bf16.mxu0 0
        %1616 = vmatpush2.bf16.xpose.msra.mxu0 0
        %1617 = vmatprep.subr.bf16.mxu0 0
        %1618 = vmatpush2.bf16.xpose.msra.mxu0 0
        %1619 = vmatprep.subr.bf16.mxu0 0
        %1620 = vmatpush2.bf16.xpose.msra.mxu0 0
        %1621 = vmatprep.subr.bf16.mxu0 0
        %1622 = vmatpush2.bf16.xpose.msra.mxu0 0
        %1623 = vmatprep.mubr.bf16.mxu0 0
        %1624 = vmatmul.mubr.bf16.gmra.mxu0 %v1586
        %v1625 = vpop.f32.mrf.mxu0
        %v1626 = vadd.f32 %v1465, %v1625
        %v1627 = vpop.f32.mrf.mxu0
        %v1628 = vpop.f32.mrf.mxu0
        %v1629 = vpop.f32.mrf.mxu0
        %1630 = vdwg.mxu0
        %v1631 = vsel %vm1471, %v1626, -inf
        %1632 = vmax.xlane.f32.xlu0 %v1631
        %v1633 = vpop.xlane.xlu0 %1632
        %v1634 = vsub.f32 %v1626, %v1633
        %v1635 = vmul.f32 %v1634, 1.442695
        %v1636 = vpow.pop %v1635
        %v1637 = vsel %vm1471, %v1636, 0.0
        %1638 = vadd.xlane.f32.xlu0 %v1637
        %v1639 = vpop.xlane.xlu0 %1638
        %v1640 = vrcp.pop %v1639
        %v1641 = vmul.f32 %v1636, %v1640
        %v1642 = vpack.c.bf16 %v1641, %v1641
        %1643 = vrot.lane.b32.xlu0 %v1467, 56
        %v1644 = vpop.permute.xlu0 %1643
        %v1646 = vsel %vm1471, %v1642, 0
        %v1649 = vsel %vm1535, %v1644, 0
        %1651 = vmatprep.subr.bf16.mxu0 0
        %1652 = vmatpush1.bf16.msra.mxu0 0
        %1653 = vmatprep.subr.bf16.mxu0 0
        %1654 = vmatpush1.bf16.msra.mxu0 0
        %1655 = vmatprep.subr.bf16.mxu0 0
        %1656 = vmatpush1.bf16.msra.mxu0 0
        %1657 = vmatprep.subr.bf16.mxu0 0
        %1658 = vmatpush1.bf16.msra.mxu0 0
        %1659 = vmatprep.subr.bf16.mxu0 0
        %1660 = vmatpush1.bf16.msra.mxu0 0
        %1661 = vmatprep.subr.bf16.mxu0 0
        %1662 = vmatpush1.bf16.msra.mxu0 0
        %1663 = vmatprep.subr.bf16.mxu0 0
        %1664 = vmatpush1.bf16.msra.mxu0 0
        %1665 = vmatprep.subr.bf16.mxu0 0
        %1666 = vmatpush1.bf16.msra.mxu0 %v1649
        %1667 = vmatprep.subr.bf16.mxu0 0
        %1668 = vmatpush2.bf16.msra.mxu0 0
        %1669 = vmatprep.subr.bf16.mxu0 0
        %1670 = vmatpush2.bf16.msra.mxu0 0
        %1671 = vmatprep.subr.bf16.mxu0 0
        %1672 = vmatpush2.bf16.msra.mxu0 0
        %1673 = vmatprep.subr.bf16.mxu0 0
        %1674 = vmatpush2.bf16.msra.mxu0 0
        %1675 = vmatprep.subr.bf16.mxu0 0
        %1676 = vmatpush2.bf16.msra.mxu0 0
        %1677 = vmatprep.subr.bf16.mxu0 0
        %1678 = vmatpush2.bf16.msra.mxu0 0
        %1679 = vmatprep.subr.bf16.mxu0 0
        %1680 = vmatpush2.bf16.msra.mxu0 0
        %1681 = vmatprep.subr.bf16.mxu0 0
        %1682 = vmatpush2.bf16.msra.mxu0 0
        %1683 = vmatprep.mubr.bf16.mxu0 0
        %1684 = vmatmul.mubr.bf16.gmra.mxu0 %v1646
        %v1685 = vpop.f32.mrf.mxu0
        %v1686 = vadd.f32 0.0, %v1685
        %v1687 = vpop.f32.mrf.mxu0
        %v1688 = vpop.f32.mrf.mxu0
        %v1689 = vpop.f32.mrf.mxu0
        %1690 = vdwg.mxu0
        %v1691 = vpack.c.bf16 %v1686, %v1686
        %v1693 = vsel %vm1471, %v1691, 0
        %v1696 = vsel %vm1535, %v1580, 0
        %1698 = vmatprep.subr.bf16.mxu0 0
        %1699 = vmatpush1.bf16.msra.mxu0 0
        %1700 = vmatprep.subr.bf16.mxu0 0
        %1701 = vmatpush1.bf16.msra.mxu0 0
        %1702 = vmatprep.subr.bf16.mxu0 0
        %1703 = vmatpush1.bf16.msra.mxu0 0
        %1704 = vmatprep.subr.bf16.mxu0 0
        %1705 = vmatpush1.bf16.msra.mxu0 0
        %1706 = vmatprep.subr.bf16.mxu0 0
        %1707 = vmatpush1.bf16.msra.mxu0 0
        %1708 = vmatprep.subr.bf16.mxu0 0
        %1709 = vmatpush1.bf16.msra.mxu0 0
        %1710 = vmatprep.subr.bf16.mxu0 0
        %1711 = vmatpush1.bf16.msra.mxu0 0
        %1712 = vmatprep.subr.bf16.mxu0 0
        %1713 = vmatpush1.bf16.msra.mxu0 %v1696
        %1714 = vmatprep.subr.bf16.mxu0 0
        %1715 = vmatpush2.bf16.msra.mxu0 0
        %1716 = vmatprep.subr.bf16.mxu0 0
        %1717 = vmatpush2.bf16.msra.mxu0 0
        %1718 = vmatprep.subr.bf16.mxu0 0
        %1719 = vmatpush2.bf16.msra.mxu0 0
        %1720 = vmatprep.subr.bf16.mxu0 0
        %1721 = vmatpush2.bf16.msra.mxu0 0
        %1722 = vmatprep.subr.bf16.mxu0 0
        %1723 = vmatpush2.bf16.msra.mxu0 0
        %1724 = vmatprep.subr.bf16.mxu0 0
        %1725 = vmatpush2.bf16.msra.mxu0 0
        %1726 = vmatprep.subr.bf16.mxu0 0
        %1727 = vmatpush2.bf16.msra.mxu0 0
        %1728 = vmatprep.subr.bf16.mxu0 0
        %1729 = vmatpush2.bf16.msra.mxu0 0
        %1730 = vmatprep.mubr.bf16.mxu0 0
        %1731 = vmatmul.mubr.bf16.gmra.mxu0 %v1693
        %v1732 = vpop.f32.mrf.mxu0
        %v1733 = vadd.f32 0.0, %v1732
        %v1734 = vpop.f32.mrf.mxu0
        %v1735 = vpop.f32.mrf.mxu0
        %v1736 = vpop.f32.mrf.mxu0
        %1737 = vdwg.mxu0
        %v1739 = vsel %vm1471, %v1579, 0
        %v1742 = vsel %vm1535, %v1466, 0
        %1744 = vmatprep.subr.bf16.mxu0 0
        %1745 = vmatpush1.bf16.msra.mxu0 0
        %1746 = vmatprep.subr.bf16.mxu0 0
        %1747 = vmatpush1.bf16.msra.mxu0 0
        %1748 = vmatprep.subr.bf16.mxu0 0
        %1749 = vmatpush1.bf16.msra.mxu0 0
        %1750 = vmatprep.subr.bf16.mxu0 0
        %1751 = vmatpush1.bf16.msra.mxu0 0
        %1752 = vmatprep.subr.bf16.mxu0 0
        %1753 = vmatpush1.bf16.msra.mxu0 0
        %1754 = vmatprep.subr.bf16.mxu0 0
        %1755 = vmatpush1.bf16.msra.mxu0 0
        %1756 = vmatprep.subr.bf16.mxu0 0
        %1757 = vmatpush1.bf16.msra.mxu0 0
        %1758 = vmatprep.subr.bf16.mxu0 0
        %1759 = vmatpush1.bf16.msra.mxu0 %v1742
        %1760 = vmatprep.subr.bf16.mxu0 0
        %1761 = vmatpush2.bf16.msra.mxu0 0
        %1762 = vmatprep.subr.bf16.mxu0 0
        %1763 = vmatpush2.bf16.msra.mxu0 0
        %1764 = vmatprep.subr.bf16.mxu0 0
        %1765 = vmatpush2.bf16.msra.mxu0 0
        %1766 = vmatprep.subr.bf16.mxu0 0
        %1767 = vmatpush2.bf16.msra.mxu0 0
        %1768 = vmatprep.subr.bf16.mxu0 0
        %1769 = vmatpush2.bf16.msra.mxu0 0
        %1770 = vmatprep.subr.bf16.mxu0 0
        %1771 = vmatpush2.bf16.msra.mxu0 0
        %1772 = vmatprep.subr.bf16.mxu0 0
        %1773 = vmatpush2.bf16.msra.mxu0 0
        %1774 = vmatprep.subr.bf16.mxu0 0
        %1775 = vmatpush2.bf16.msra.mxu0 0
        %1776 = vmatprep.mubr.bf16.mxu0 0
        %1777 = vmatmul.mubr.bf16.gmra.mxu0 %v1739
        %v1778 = vpop.f32.mrf.mxu0
        %v1779 = vadd.f32 %v1733, %v1778
        %v1780 = vpop.f32.mrf.mxu0
        %v1781 = vpop.f32.mrf.mxu0
        %v1782 = vpop.f32.mrf.mxu0
        %1783 = vdwg.mxu0
        %v1784 = vld [vmem:[%s1364 + $0x8] sm:$0xf]
        %1785 = vrot.lane.b32.xlu0 %v1467, 112
        %v1786 = vpop.permute.xlu0 %1785
        %1787 = vrot.lane.b32.xlu0 %v1467, 80
        %v1788 = vpop.permute.xlu0 %1787
        %v1790 = vsel %vm1471, %v1786, 0
        %v1793 = vsel %vm1471, %v1788, 0
        %1795 = vmatprep.subr.bf16.mxu0 0
        %1796 = vmatpush1.bf16.xpose.msra.mxu0 0
        %1797 = vmatprep.subr.bf16.mxu0 0
        %1798 = vmatpush1.bf16.xpose.msra.mxu0 0
        %1799 = vmatprep.subr.bf16.mxu0 0
        %1800 = vmatpush1.bf16.xpose.msra.mxu0 0
        %1801 = vmatprep.subr.bf16.mxu0 0
        %1802 = vmatpush1.bf16.xpose.msra.mxu0 0
        %1803 = vmatprep.subr.bf16.mxu0 0
        %1804 = vmatpush1.bf16.xpose.msra.mxu0 0
        %1805 = vmatprep.subr.bf16.mxu0 0
        %1806 = vmatpush1.bf16.xpose.msra.mxu0 0
        %1807 = vmatprep.subr.bf16.mxu0 0
        %1808 = vmatpush1.bf16.xpose.msra.mxu0 0
        %1809 = vmatprep.subr.bf16.mxu0 0
        %1810 = vmatpush1.bf16.xpose.msra.mxu0 %v1793
        %1811 = vmatprep.subr.bf16.mxu0 0
        %1812 = vmatpush2.bf16.xpose.msra.mxu0 0
        %1813 = vmatprep.subr.bf16.mxu0 0
        %1814 = vmatpush2.bf16.xpose.msra.mxu0 0
        %1815 = vmatprep.subr.bf16.mxu0 0
        %1816 = vmatpush2.bf16.xpose.msra.mxu0 0
        %1817 = vmatprep.subr.bf16.mxu0 0
        %1818 = vmatpush2.bf16.xpose.msra.mxu0 0
        %1819 = vmatprep.subr.bf16.mxu0 0
        %1820 = vmatpush2.bf16.xpose.msra.mxu0 0
        %1821 = vmatprep.subr.bf16.mxu0 0
        %1822 = vmatpush2.bf16.xpose.msra.mxu0 0
        %1823 = vmatprep.subr.bf16.mxu0 0
        %1824 = vmatpush2.bf16.xpose.msra.mxu0 0
        %1825 = vmatprep.subr.bf16.mxu0 0
        %1826 = vmatpush2.bf16.xpose.msra.mxu0 0
        %1827 = vmatprep.mubr.bf16.mxu0 0
        %1828 = vmatmul.mubr.bf16.gmra.mxu0 %v1790
        %v1829 = vpop.f32.mrf.mxu0
        %v1830 = vadd.f32 %v1465, %v1829
        %v1831 = vpop.f32.mrf.mxu0
        %v1832 = vpop.f32.mrf.mxu0
        %v1833 = vpop.f32.mrf.mxu0
        %1834 = vdwg.mxu0
        %v1835 = vsel %vm1471, %v1830, -inf
        %1836 = vmax.xlane.f32.xlu0 %v1835
        %v1837 = vpop.xlane.xlu0 %1836
        %v1838 = vsub.f32 %v1830, %v1837
        %v1839 = vmul.f32 %v1838, 1.442695
        %v1840 = vpow.pop %v1839
        %v1841 = vsel %vm1471, %v1840, 0.0
        %1842 = vadd.xlane.f32.xlu0 %v1841
        %v1843 = vpop.xlane.xlu0 %1842
        %v1844 = vrcp.pop %v1843
        %v1845 = vmul.f32 %v1840, %v1844
        %v1846 = vpack.c.bf16 %v1845, %v1845
        %1847 = vrot.lane.b32.xlu0 %v1467, 48
        %v1848 = vpop.permute.xlu0 %1847
        %v1850 = vsel %vm1471, %v1846, 0
        %v1853 = vsel %vm1535, %v1848, 0
        %1855 = vmatprep.subr.bf16.mxu0 0
        %1856 = vmatpush1.bf16.msra.mxu0 0
        %1857 = vmatprep.subr.bf16.mxu0 0
        %1858 = vmatpush1.bf16.msra.mxu0 0
        %1859 = vmatprep.subr.bf16.mxu0 0
        %1860 = vmatpush1.bf16.msra.mxu0 0
        %1861 = vmatprep.subr.bf16.mxu0 0
        %1862 = vmatpush1.bf16.msra.mxu0 0
        %1863 = vmatprep.subr.bf16.mxu0 0
        %1864 = vmatpush1.bf16.msra.mxu0 0
        %1865 = vmatprep.subr.bf16.mxu0 0
        %1866 = vmatpush1.bf16.msra.mxu0 0
        %1867 = vmatprep.subr.bf16.mxu0 0
        %1868 = vmatpush1.bf16.msra.mxu0 0
        %1869 = vmatprep.subr.bf16.mxu0 0
        %1870 = vmatpush1.bf16.msra.mxu0 %v1853
        %1871 = vmatprep.subr.bf16.mxu0 0
        %1872 = vmatpush2.bf16.msra.mxu0 0
        %1873 = vmatprep.subr.bf16.mxu0 0
        %1874 = vmatpush2.bf16.msra.mxu0 0
        %1875 = vmatprep.subr.bf16.mxu0 0
        %1876 = vmatpush2.bf16.msra.mxu0 0
        %1877 = vmatprep.subr.bf16.mxu0 0
        %1878 = vmatpush2.bf16.msra.mxu0 0
        %1879 = vmatprep.subr.bf16.mxu0 0
        %1880 = vmatpush2.bf16.msra.mxu0 0
        %1881 = vmatprep.subr.bf16.mxu0 0
        %1882 = vmatpush2.bf16.msra.mxu0 0
        %1883 = vmatprep.subr.bf16.mxu0 0
        %1884 = vmatpush2.bf16.msra.mxu0 0
        %1885 = vmatprep.subr.bf16.mxu0 0
        %1886 = vmatpush2.bf16.msra.mxu0 0
        %1887 = vmatprep.mubr.bf16.mxu0 0
        %1888 = vmatmul.mubr.bf16.gmra.mxu0 %v1850
        %v1889 = vpop.f32.mrf.mxu0
        %v1890 = vadd.f32 0.0, %v1889
        %v1891 = vpop.f32.mrf.mxu0
        %v1892 = vpop.f32.mrf.mxu0
        %v1893 = vpop.f32.mrf.mxu0
        %1894 = vdwg.mxu0
        %v1895 = vpack.c.bf16 %v1890, %v1890
        %v1897 = vsel %vm1471, %v1895, 0
        %v1900 = vsel %vm1535, %v1784, 0
        %1902 = vmatprep.subr.bf16.mxu0 0
        %1903 = vmatpush1.bf16.msra.mxu0 0
        %1904 = vmatprep.subr.bf16.mxu0 0
        %1905 = vmatpush1.bf16.msra.mxu0 0
        %1906 = vmatprep.subr.bf16.mxu0 0
        %1907 = vmatpush1.bf16.msra.mxu0 0
        %1908 = vmatprep.subr.bf16.mxu0 0
        %1909 = vmatpush1.bf16.msra.mxu0 0
        %1910 = vmatprep.subr.bf16.mxu0 0
        %1911 = vmatpush1.bf16.msra.mxu0 0
        %1912 = vmatprep.subr.bf16.mxu0 0
        %1913 = vmatpush1.bf16.msra.mxu0 0
        %1914 = vmatprep.subr.bf16.mxu0 0
        %1915 = vmatpush1.bf16.msra.mxu0 0
        %1916 = vmatprep.subr.bf16.mxu0 0
        %1917 = vmatpush1.bf16.msra.mxu0 %v1900
        %1918 = vmatprep.subr.bf16.mxu0 0
        %1919 = vmatpush2.bf16.msra.mxu0 0
        %1920 = vmatprep.subr.bf16.mxu0 0
        %1921 = vmatpush2.bf16.msra.mxu0 0
        %1922 = vmatprep.subr.bf16.mxu0 0
        %1923 = vmatpush2.bf16.msra.mxu0 0
        %1924 = vmatprep.subr.bf16.mxu0 0
        %1925 = vmatpush2.bf16.msra.mxu0 0
        %1926 = vmatprep.subr.bf16.mxu0 0
        %1927 = vmatpush2.bf16.msra.mxu0 0
        %1928 = vmatprep.subr.bf16.mxu0 0
        %1929 = vmatpush2.bf16.msra.mxu0 0
        %1930 = vmatprep.subr.bf16.mxu0 0
        %1931 = vmatpush2.bf16.msra.mxu0 0
        %1932 = vmatprep.subr.bf16.mxu0 0
        %1933 = vmatpush2.bf16.msra.mxu0 0
        %1934 = vmatprep.mubr.bf16.mxu0 0
        %1935 = vmatmul.mubr.bf16.gmra.mxu0 %v1897
        %v1936 = vpop.f32.mrf.mxu0
        %v1937 = vadd.f32 0.0, %v1936
        %v1938 = vpop.f32.mrf.mxu0
        %v1939 = vpop.f32.mrf.mxu0
        %v1940 = vpop.f32.mrf.mxu0
        %1941 = vdwg.mxu0
        %v1942 = vadd.f32 %v1779, %v1937
        %v1943 = vld [vmem:[%s1364 + $0xc] sm:$0xf]
        %1944 = vrot.lane.b32.xlu0 %v1467, 104
        %v1945 = vpop.permute.xlu0 %1944
        %1946 = vrot.lane.b32.xlu0 %v1467, 72
        %v1947 = vpop.permute.xlu0 %1946
        %v1949 = vsel %vm1471, %v1945, 0
        %v1952 = vsel %vm1471, %v1947, 0
        %1954 = vmatprep.subr.bf16.mxu0 0
        %1955 = vmatpush1.bf16.xpose.msra.mxu0 0
        %1956 = vmatprep.subr.bf16.mxu0 0
        %1957 = vmatpush1.bf16.xpose.msra.mxu0 0
        %1958 = vmatprep.subr.bf16.mxu0 0
        %1959 = vmatpush1.bf16.xpose.msra.mxu0 0
        %1960 = vmatprep.subr.bf16.mxu0 0
        %1961 = vmatpush1.bf16.xpose.msra.mxu0 0
        %1962 = vmatprep.subr.bf16.mxu0 0
        %1963 = vmatpush1.bf16.xpose.msra.mxu0 0
        %1964 = vmatprep.subr.bf16.mxu0 0
        %1965 = vmatpush1.bf16.xpose.msra.mxu0 0
        %1966 = vmatprep.subr.bf16.mxu0 0
        %1967 = vmatpush1.bf16.xpose.msra.mxu0 0
        %1968 = vmatprep.subr.bf16.mxu0 0
        %1969 = vmatpush1.bf16.xpose.msra.mxu0 %v1952
        %1970 = vmatprep.subr.bf16.mxu0 0
        %1971 = vmatpush2.bf16.xpose.msra.mxu0 0
        %1972 = vmatprep.subr.bf16.mxu0 0
        %1973 = vmatpush2.bf16.xpose.msra.mxu0 0
        %1974 = vmatprep.subr.bf16.mxu0 0
        %1975 = vmatpush2.bf16.xpose.msra.mxu0 0
        %1976 = vmatprep.subr.bf16.mxu0 0
        %1977 = vmatpush2.bf16.xpose.msra.mxu0 0
        %1978 = vmatprep.subr.bf16.mxu0 0
        %1979 = vmatpush2.bf16.xpose.msra.mxu0 0
        %1980 = vmatprep.subr.bf16.mxu0 0
        %1981 = vmatpush2.bf16.xpose.msra.mxu0 0
        %1982 = vmatprep.subr.bf16.mxu0 0
        %1983 = vmatpush2.bf16.xpose.msra.mxu0 0
        %1984 = vmatprep.subr.bf16.mxu0 0
        %1985 = vmatpush2.bf16.xpose.msra.mxu0 0
        %1986 = vmatprep.mubr.bf16.mxu0 0
        %1987 = vmatmul.mubr.bf16.gmra.mxu0 %v1949
        %v1988 = vpop.f32.mrf.mxu0
        %v1989 = vadd.f32 %v1465, %v1988
        %v1990 = vpop.f32.mrf.mxu0
        %v1991 = vpop.f32.mrf.mxu0
        %v1992 = vpop.f32.mrf.mxu0
        %1993 = vdwg.mxu0
        %v1994 = vsel %vm1471, %v1989, -inf
        %1995 = vmax.xlane.f32.xlu0 %v1994
        %v1996 = vpop.xlane.xlu0 %1995
        %v1997 = vsub.f32 %v1989, %v1996
        %v1998 = vmul.f32 %v1997, 1.442695
        %v1999 = vpow.pop %v1998
        %v2000 = vsel %vm1471, %v1999, 0.0
        %2001 = vadd.xlane.f32.xlu0 %v2000
        %v2002 = vpop.xlane.xlu0 %2001
        %v2003 = vrcp.pop %v2002
        %v2004 = vmul.f32 %v1999, %v2003
        %v2005 = vpack.c.bf16 %v2004, %v2004
        %2006 = vrot.lane.b32.xlu0 %v1467, 40
        %v2007 = vpop.permute.xlu0 %2006
        %v2009 = vsel %vm1471, %v2005, 0
        %v2012 = vsel %vm1535, %v2007, 0
        %2014 = vmatprep.subr.bf16.mxu0 0
        %2015 = vmatpush1.bf16.msra.mxu0 0
        %2016 = vmatprep.subr.bf16.mxu0 0
        %2017 = vmatpush1.bf16.msra.mxu0 0
        %2018 = vmatprep.subr.bf16.mxu0 0
        %2019 = vmatpush1.bf16.msra.mxu0 0
        %2020 = vmatprep.subr.bf16.mxu0 0
        %2021 = vmatpush1.bf16.msra.mxu0 0
        %2022 = vmatprep.subr.bf16.mxu0 0
        %2023 = vmatpush1.bf16.msra.mxu0 0
        %2024 = vmatprep.subr.bf16.mxu0 0
        %2025 = vmatpush1.bf16.msra.mxu0 0
        %2026 = vmatprep.subr.bf16.mxu0 0
        %2027 = vmatpush1.bf16.msra.mxu0 0
        %2028 = vmatprep.subr.bf16.mxu0 0
        %2029 = vmatpush1.bf16.msra.mxu0 %v2012
        %2030 = vmatprep.subr.bf16.mxu0 0
        %2031 = vmatpush2.bf16.msra.mxu0 0
        %2032 = vmatprep.subr.bf16.mxu0 0
        %2033 = vmatpush2.bf16.msra.mxu0 0
        %2034 = vmatprep.subr.bf16.mxu0 0
        %2035 = vmatpush2.bf16.msra.mxu0 0
        %2036 = vmatprep.subr.bf16.mxu0 0
        %2037 = vmatpush2.bf16.msra.mxu0 0
        %2038 = vmatprep.subr.bf16.mxu0 0
        %2039 = vmatpush2.bf16.msra.mxu0 0
        %2040 = vmatprep.subr.bf16.mxu0 0
        %2041 = vmatpush2.bf16.msra.mxu0 0
        %2042 = vmatprep.subr.bf16.mxu0 0
        %2043 = vmatpush2.bf16.msra.mxu0 0
        %2044 = vmatprep.subr.bf16.mxu0 0
        %2045 = vmatpush2.bf16.msra.mxu0 0
        %2046 = vmatprep.mubr.bf16.mxu0 0
        %2047 = vmatmul.mubr.bf16.gmra.mxu0 %v2009
        %v2048 = vpop.f32.mrf.mxu0
        %v2049 = vadd.f32 0.0, %v2048
        %v2050 = vpop.f32.mrf.mxu0
        %v2051 = vpop.f32.mrf.mxu0
        %v2052 = vpop.f32.mrf.mxu0
        %2053 = vdwg.mxu0
        %v2054 = vpack.c.bf16 %v2049, %v2049
        %v2056 = vsel %vm1471, %v2054, 0
        %v2059 = vsel %vm1535, %v1943, 0
        %2061 = vmatprep.subr.bf16.mxu0 0
        %2062 = vmatpush1.bf16.msra.mxu0 0
        %2063 = vmatprep.subr.bf16.mxu0 0
        %2064 = vmatpush1.bf16.msra.mxu0 0
        %2065 = vmatprep.subr.bf16.mxu0 0
        %2066 = vmatpush1.bf16.msra.mxu0 0
        %2067 = vmatprep.subr.bf16.mxu0 0
        %2068 = vmatpush1.bf16.msra.mxu0 0
        %2069 = vmatprep.subr.bf16.mxu0 0
        %2070 = vmatpush1.bf16.msra.mxu0 0
        %2071 = vmatprep.subr.bf16.mxu0 0
        %2072 = vmatpush1.bf16.msra.mxu0 0
        %2073 = vmatprep.subr.bf16.mxu0 0
        %2074 = vmatpush1.bf16.msra.mxu0 0
        %2075 = vmatprep.subr.bf16.mxu0 0
        %2076 = vmatpush1.bf16.msra.mxu0 %v2059
        %2077 = vmatprep.subr.bf16.mxu0 0
        %2078 = vmatpush2.bf16.msra.mxu0 0
        %2079 = vmatprep.subr.bf16.mxu0 0
        %2080 = vmatpush2.bf16.msra.mxu0 0
        %2081 = vmatprep.subr.bf16.mxu0 0
        %2082 = vmatpush2.bf16.msra.mxu0 0
        %2083 = vmatprep.subr.bf16.mxu0 0
        %2084 = vmatpush2.bf16.msra.mxu0 0
        %2085 = vmatprep.subr.bf16.mxu0 0
        %2086 = vmatpush2.bf16.msra.mxu0 0
        %2087 = vmatprep.subr.bf16.mxu0 0
        %2088 = vmatpush2.bf16.msra.mxu0 0
        %2089 = vmatprep.subr.bf16.mxu0 0
        %2090 = vmatpush2.bf16.msra.mxu0 0
        %2091 = vmatprep.subr.bf16.mxu0 0
        %2092 = vmatpush2.bf16.msra.mxu0 0
        %2093 = vmatprep.mubr.bf16.mxu0 0
        %2094 = vmatmul.mubr.bf16.gmra.mxu0 %v2056
        %v2095 = vpop.f32.mrf.mxu0
        %v2096 = vadd.f32 0.0, %v2095
        %v2097 = vpop.f32.mrf.mxu0
        %v2098 = vpop.f32.mrf.mxu0
        %v2099 = vpop.f32.mrf.mxu0
        %2100 = vdwg.mxu0
        %v2101 = vadd.f32 %v1942, %v2096
        %v2102 = vld [vmem:[%s1367] sm:$0x1]
        %v2104 = vlaneseq
        %v2105 = vshrl.u32 %v2104, 7
        %v2106 = vsub.s32 0, %v2105
        %v2107 = vrot.slane %v2102, %v2106
        %v2109 = vadd.f32 %v2101, %v2107
        %v2110 = vadd.f32 %v1389, %v2109
        %v2111 = vsel %vm1416, %v2110, 0.0
        %2112 = vadd.xlane.f32.xlu0 %v2111
        %v2113 = vpop.xlane.xlu0 %2112
        %v2114 = vrcp.pop 32.0
        %v2115 = vmul.f32 %v2113, %v2114
        %v2116 = vsub.f32 %v2110, %v2115
        %v2117 = vmul.f32 %v2116, %v2116
        %v2118 = vsel %vm1416, %v2117, 0.0
        %2119 = vadd.xlane.f32.xlu0 %v2118
        %v2120 = vpop.xlane.xlu0 %2119
        %v2121 = vmul.f32 %v2120, %v2114
        %v2122 = vadd.f32 %v2121, 1e-05
        %v2123 = vrsqrt.pop %v2122
        %v2124 = vmul.f32 %v2116, %v2123
        %v2125 = vld [vmem:[%s1137] sm:$0x1]
        %v2127 = vlaneseq
        %v2128 = vshrl.u32 %v2127, 7
        %v2129 = vsub.s32 0, %v2128
        %v2130 = vrot.slane %v2125, %v2129
        %v2132 = vmul.f32 %v2124, %v2130
        %v2133 = vld [vmem:[%s1145] sm:$0x1]
        %v2135 = vlaneseq
        %v2136 = vshrl.u32 %v2135, 7
        %v2137 = vsub.s32 0, %v2136
        %v2138 = vrot.slane %v2133, %v2137
        %v2140 = vadd.f32 %v2132, %v2138
        %v2141 = vpack.c.bf16 %v2140, %v2140
        %v2142 = vld [vmem:[%s1372] sm:$0xf]
        %v2143 = vld [vmem:[%s1372 + $0x4] sm:$0xf]
        %v2144 = vld [vmem:[%s1372 + $0x8] sm:$0xf]
        %v2145 = vld [vmem:[%s1372 + $0xc] sm:$0xf]
        %v2146 = vld [vmem:[%s1095] sm:$0x1]
        %v2148 = vlaneseq
        %v2149 = vshrl.u32 %v2148, 7
        %v2150 = vsub.s32 0, %v2149
        %v2151 = vrot.slane %v2146, %v2150
        %v2157 = vunpack.c.l.b16 %v2142
        %v2158 = vunpack.c.l.b16 %v2143
        %v2159 = vunpack.c.l.b16 %v2144
        %v2160 = vunpack.c.l.b16 %v2145
        %v2161 = vpack.c.b16 %v2158, %v2157
        %v2162 = vpack.c.b16 %v2160, %v2159
        %v2166 = vsel %vm1416, %v2141, 0
        %2168 = vmatprep.subr.bf16.mxu0 0
        %2169 = vmatpush1.bf16.msra.mxu0 0
        %2170 = vmatprep.subr.bf16.mxu0 0
        %2171 = vmatpush1.bf16.msra.mxu0 0
        %2172 = vmatprep.subr.bf16.mxu0 0
        %2173 = vmatpush1.bf16.msra.mxu0 0
        %2174 = vmatprep.subr.bf16.mxu0 0
        %2175 = vmatpush1.bf16.msra.mxu0 0
        %2176 = vmatprep.subr.bf16.mxu0 0
        %2177 = vmatpush1.bf16.msra.mxu0 0
        %2178 = vmatprep.subr.bf16.mxu0 0
        %2179 = vmatpush1.bf16.msra.mxu0 0
        %2180 = vmatprep.subr.bf16.mxu0 0
        %2181 = vmatpush1.bf16.msra.mxu0 %v2162
        %2182 = vmatprep.subr.bf16.mxu0 0
        %2183 = vmatpush1.bf16.msra.mxu0 %v2161
        %2184 = vmatprep.subr.bf16.mxu0 0
        %2185 = vmatpush2.bf16.msra.mxu0 0
        %2186 = vmatprep.subr.bf16.mxu0 0
        %2187 = vmatpush2.bf16.msra.mxu0 0
        %2188 = vmatprep.subr.bf16.mxu0 0
        %2189 = vmatpush2.bf16.msra.mxu0 0
        %2190 = vmatprep.subr.bf16.mxu0 0
        %2191 = vmatpush2.bf16.msra.mxu0 0
        %2192 = vmatprep.subr.bf16.mxu0 0
        %2193 = vmatpush2.bf16.msra.mxu0 0
        %2194 = vmatprep.subr.bf16.mxu0 0
        %2195 = vmatpush2.bf16.msra.mxu0 0
        %2196 = vmatprep.subr.bf16.mxu0 0
        %2197 = vmatpush2.bf16.msra.mxu0 0
        %2198 = vmatprep.subr.bf16.mxu0 0
        %2199 = vmatpush2.bf16.msra.mxu0 0
        %2200 = vmatprep.mubr.bf16.mxu0 0
        %2201 = vmatmul.mubr.bf16.gmra.mxu0 %v2166
        %v2202 = vpop.f32.mrf.mxu0
        %v2203 = vadd.f32 %v2151, %v2202
        %v2204 = vpop.f32.mrf.mxu0
        %v2205 = vpop.f32.mrf.mxu0
        %v2206 = vpop.f32.mrf.mxu0
        %2207 = vdwg.mxu0
        %v2208 = vld [vmem:[%s1104] sm:$0xf]
        %v2209 = vld [vmem:[%s1104 + $0x4] sm:$0xf]
        %v2210 = vld [vmem:[%s1104 + $0x8] sm:$0xf]
        %v2211 = vld [vmem:[%s1104 + $0xc] sm:$0xf]
        %v2212 = vld [vmem:[%s1112] sm:$0x1]
        %v2214 = vlaneseq
        %v2215 = vshrl.u32 %v2214, 7
        %v2216 = vsub.s32 0, %v2215
        %v2217 = vrot.slane %v2212, %v2216
        %v2221 = vunpack.c.l.b16 %v1390
        %v2222 = vunpack.c.l.b16 %v1391
        %v2223 = vpack.c.b16 %v2222, %v2221
        %v2228 = vunpack.c.l.b16 %v2208
        %v2229 = vunpack.c.l.b16 %v2209
        %v2230 = vunpack.c.l.b16 %v2210
        %v2231 = vunpack.c.l.b16 %v2211
        %v2232 = vpack.c.b16 %v2229, %v2228
        %v2233 = vpack.c.b16 %v2231, %v2230
        %v2237 = vsel %vm1416, %v2223, 0
        %2239 = vmatprep.subr.bf16.mxu0 0
        %2240 = vmatpush1.bf16.msra.mxu0 0
        %2241 = vmatprep.subr.bf16.mxu0 0
        %2242 = vmatpush1.bf16.msra.mxu0 0
        %2243 = vmatprep.subr.bf16.mxu0 0
        %2244 = vmatpush1.bf16.msra.mxu0 0
        %2245 = vmatprep.subr.bf16.mxu0 0
        %2246 = vmatpush1.bf16.msra.mxu0 0
        %2247 = vmatprep.subr.bf16.mxu0 0
        %2248 = vmatpush1.bf16.msra.mxu0 0
        %2249 = vmatprep.subr.bf16.mxu0 0
        %2250 = vmatpush1.bf16.msra.mxu0 0
        %2251 = vmatprep.subr.bf16.mxu0 0
        %2252 = vmatpush1.bf16.msra.mxu0 %v2233
        %2253 = vmatprep.subr.bf16.mxu0 0
        %2254 = vmatpush1.bf16.msra.mxu0 %v2232
        %2255 = vmatprep.subr.bf16.mxu0 0
        %2256 = vmatpush2.bf16.msra.mxu0 0
        %2257 = vmatprep.subr.bf16.mxu0 0
        %2258 = vmatpush2.bf16.msra.mxu0 0
        %2259 = vmatprep.subr.bf16.mxu0 0
        %2260 = vmatpush2.bf16.msra.mxu0 0
        %2261 = vmatprep.subr.bf16.mxu0 0
        %2262 = vmatpush2.bf16.msra.mxu0 0
        %2263 = vmatprep.subr.bf16.mxu0 0
        %2264 = vmatpush2.bf16.msra.mxu0 0
        %2265 = vmatprep.subr.bf16.mxu0 0
        %2266 = vmatpush2.bf16.msra.mxu0 0
        %2267 = vmatprep.subr.bf16.mxu0 0
        %2268 = vmatpush2.bf16.msra.mxu0 0
        %2269 = vmatprep.subr.bf16.mxu0 0
        %2270 = vmatpush2.bf16.msra.mxu0 0
        %2271 = vmatprep.mubr.bf16.mxu0 0
        %2272 = vmatmul.mubr.bf16.gmra.mxu0 %v2237
        %v2273 = vpop.f32.mrf.mxu0
        %v2274 = vadd.f32 %v2217, %v2273
        %v2275 = vpop.f32.mrf.mxu0
        %v2276 = vpop.f32.mrf.mxu0
        %v2277 = vadd.f32 %v2217, %v2276
        %v2278 = vpop.f32.mrf.mxu0
        %2279 = vdwg.mxu0
        %v2280 = vld [vmem:[%s1121] sm:$0xf]
        %v2281 = vpack.c.bf16 %v2203, %v2203
        %v2282 = vpack.c.bf16 %v2277, %v2274
        %v2284 = vsel %vm1471, %v2281, 0
        %v2287 = vsel %vm1471, %v2282, 0
        %2289 = vmatprep.subr.bf16.mxu0 0
        %2290 = vmatpush1.bf16.xpose.msra.mxu0 0
        %2291 = vmatprep.subr.bf16.mxu0 0
        %2292 = vmatpush1.bf16.xpose.msra.mxu0 0
        %2293 = vmatprep.subr.bf16.mxu0 0
        %2294 = vmatpush1.bf16.xpose.msra.mxu0 0
        %2295 = vmatprep.subr.bf16.mxu0 0
        %2296 = vmatpush1.bf16.xpose.msra.mxu0 0
        %2297 = vmatprep.subr.bf16.mxu0 0
        %2298 = vmatpush1.bf16.xpose.msra.mxu0 0
        %2299 = vmatprep.subr.bf16.mxu0 0
        %2300 = vmatpush1.bf16.xpose.msra.mxu0 0
        %2301 = vmatprep.subr.bf16.mxu0 0
        %2302 = vmatpush1.bf16.xpose.msra.mxu0 0
        %2303 = vmatprep.subr.bf16.mxu0 0
        %2304 = vmatpush1.bf16.xpose.msra.mxu0 %v2287
        %2305 = vmatprep.subr.bf16.mxu0 0
        %2306 = vmatpush2.bf16.xpose.msra.mxu0 0
        %2307 = vmatprep.subr.bf16.mxu0 0
        %2308 = vmatpush2.bf16.xpose.msra.mxu0 0
        %2309 = vmatprep.subr.bf16.mxu0 0
        %2310 = vmatpush2.bf16.xpose.msra.mxu0 0
        %2311 = vmatprep.subr.bf16.mxu0 0
        %2312 = vmatpush2.bf16.xpose.msra.mxu0 0
        %2313 = vmatprep.subr.bf16.mxu0 0
        %2314 = vmatpush2.bf16.xpose.msra.mxu0 0
        %2315 = vmatprep.subr.bf16.mxu0 0
        %2316 = vmatpush2.bf16.xpose.msra.mxu0 0
        %2317 = vmatprep.subr.bf16.mxu0 0
        %2318 = vmatpush2.bf16.xpose.msra.mxu0 0
        %2319 = vmatprep.subr.bf16.mxu0 0
        %2320 = vmatpush2.bf16.xpose.msra.mxu0 0
        %2321 = vmatprep.mubr.bf16.mxu0 0
        %2322 = vmatmul.mubr.bf16.gmra.mxu0 %v2284
        %v2323 = vpop.f32.mrf.mxu0
        %v2324 = vadd.f32 0.0, %v2323
        %v2325 = vpop.f32.mrf.mxu0
        %v2326 = vpop.f32.mrf.mxu0
        %v2327 = vpop.f32.mrf.mxu0
        %2328 = vdwg.mxu0
        %vm2329 = vcmask 130048
        %v2330 = vsel %vm2329, %v2324, -inf
        %2331 = vmax.xlane.f32.xlu0 %v2330
        %v2332 = vpop.xlane.xlu0 %2331
        %v2333 = vsub.f32 %v2324, %v2332
        %v2334 = vmul.f32 %v2333, 1.442695
        %v2335 = vpow.pop %v2334
        %v2336 = vsel %vm2329, %v2335, 0.0
        %2337 = vadd.xlane.f32.xlu0 %v2336
        %v2338 = vpop.xlane.xlu0 %2337
        %v2339 = vrcp.pop %v2338
        %v2340 = vmul.f32 %v2335, %v2339
        %v2341 = vpack.c.bf16 %v2340, %v2340
        %2343 = vrot.lane.b32.xlu0 %v2282, 96
        %v2344 = vpop.permute.xlu0 %2343
        %v2347 = vsel %vm2329, %v2341, 0
        %2349 = vmatprep.subr.bf16.mxu0 0
        %2350 = vmatpush1.bf16.msra.mxu0 0
        %2351 = vmatprep.subr.bf16.mxu0 0
        %2352 = vmatpush1.bf16.msra.mxu0 0
        %2353 = vmatprep.subr.bf16.mxu0 0
        %2354 = vmatpush1.bf16.msra.mxu0 0
        %2355 = vmatprep.subr.bf16.mxu0 0
        %2356 = vmatpush1.bf16.msra.mxu0 0
        %2357 = vmatprep.subr.bf16.mxu0 0
        %2358 = vmatpush1.bf16.msra.mxu0 0
        %2359 = vmatprep.subr.bf16.mxu0 0
        %2360 = vmatpush1.bf16.msra.mxu0 0
        %2361 = vmatprep.subr.bf16.mxu0 0
        %2362 = vmatpush1.bf16.msra.mxu0 0
        %2363 = vmatprep.subr.bf16.mxu0 0
        %2364 = vmatpush1.bf16.msra.mxu0 %v2344
        %2365 = vmatprep.subr.bf16.mxu0 0
        %2366 = vmatpush2.bf16.msra.mxu0 0
        %2367 = vmatprep.subr.bf16.mxu0 0
        %2368 = vmatpush2.bf16.msra.mxu0 0
        %2369 = vmatprep.subr.bf16.mxu0 0
        %2370 = vmatpush2.bf16.msra.mxu0 0
        %2371 = vmatprep.subr.bf16.mxu0 0
        %2372 = vmatpush2.bf16.msra.mxu0 0
        %2373 = vmatprep.subr.bf16.mxu0 0
        %2374 = vmatpush2.bf16.msra.mxu0 0
        %2375 = vmatprep.subr.bf16.mxu0 0
        %2376 = vmatpush2.bf16.msra.mxu0 0
        %2377 = vmatprep.subr.bf16.mxu0 0
        %2378 = vmatpush2.bf16.msra.mxu0 0
        %2379 = vmatprep.subr.bf16.mxu0 0
        %2380 = vmatpush2.bf16.msra.mxu0 0
        %2381 = vmatprep.mubr.bf16.mxu0 0
        %2382 = vmatmul.mubr.bf16.gmra.mxu0 %v2347
        %v2383 = vpop.f32.mrf.mxu0
        %v2384 = vadd.f32 0.0, %v2383
        %v2385 = vpop.f32.mrf.mxu0
        %v2386 = vpop.f32.mrf.mxu0
        %v2387 = vpop.f32.mrf.mxu0
        %2388 = vdwg.mxu0
        %v2389 = vpack.c.bf16 %v2384, %v2384
        %v2390 = vld [vmem:[%s1121 + $0x4] sm:$0xf]
        %2392 = vrot.lane.b32.xlu0 %v2281, 120
        %v2393 = vpop.permute.xlu0 %2392
        %2394 = vrot.lane.b32.xlu0 %v2282, 120
        %v2395 = vpop.permute.xlu0 %2394
        %v2397 = vsel %vm1471, %v2393, 0
        %v2400 = vsel %vm1471, %v2395, 0
        %2402 = vmatprep.subr.bf16.mxu0 0
        %2403 = vmatpush1.bf16.xpose.msra.mxu0 0
        %2404 = vmatprep.subr.bf16.mxu0 0
        %2405 = vmatpush1.bf16.xpose.msra.mxu0 0
        %2406 = vmatprep.subr.bf16.mxu0 0
        %2407 = vmatpush1.bf16.xpose.msra.mxu0 0
        %2408 = vmatprep.subr.bf16.mxu0 0
        %2409 = vmatpush1.bf16.xpose.msra.mxu0 0
        %2410 = vmatprep.subr.bf16.mxu0 0
        %2411 = vmatpush1.bf16.xpose.msra.mxu0 0
        %2412 = vmatprep.subr.bf16.mxu0 0
        %2413 = vmatpush1.bf16.xpose.msra.mxu0 0
        %2414 = vmatprep.subr.bf16.mxu0 0
        %2415 = vmatpush1.bf16.xpose.msra.mxu0 0
        %2416 = vmatprep.subr.bf16.mxu0 0
        %2417 = vmatpush1.bf16.xpose.msra.mxu0 %v2400
        %2418 = vmatprep.subr.bf16.mxu0 0
        %2419 = vmatpush2.bf16.xpose.msra.mxu0 0
        %2420 = vmatprep.subr.bf16.mxu0 0
        %2421 = vmatpush2.bf16.xpose.msra.mxu0 0
        %2422 = vmatprep.subr.bf16.mxu0 0
        %2423 = vmatpush2.bf16.xpose.msra.mxu0 0
        %2424 = vmatprep.subr.bf16.mxu0 0
        %2425 = vmatpush2.bf16.xpose.msra.mxu0 0
        %2426 = vmatprep.subr.bf16.mxu0 0
        %2427 = vmatpush2.bf16.xpose.msra.mxu0 0
        %2428 = vmatprep.subr.bf16.mxu0 0
        %2429 = vmatpush2.bf16.xpose.msra.mxu0 0
        %2430 = vmatprep.subr.bf16.mxu0 0
        %2431 = vmatpush2.bf16.xpose.msra.mxu0 0
        %2432 = vmatprep.subr.bf16.mxu0 0
        %2433 = vmatpush2.bf16.xpose.msra.mxu0 0
        %2434 = vmatprep.mubr.bf16.mxu0 0
        %2435 = vmatmul.mubr.bf16.gmra.mxu0 %v2397
        %v2436 = vpop.f32.mrf.mxu0
        %v2437 = vadd.f32 0.0, %v2436
        %v2438 = vpop.f32.mrf.mxu0
        %v2439 = vpop.f32.mrf.mxu0
        %v2440 = vpop.f32.mrf.mxu0
        %2441 = vdwg.mxu0
        %v2442 = vsel %vm2329, %v2437, -inf
        %2443 = vmax.xlane.f32.xlu0 %v2442
        %v2444 = vpop.xlane.xlu0 %2443
        %v2445 = vsub.f32 %v2437, %v2444
        %v2446 = vmul.f32 %v2445, 1.442695
        %v2447 = vpow.pop %v2446
        %v2448 = vsel %vm2329, %v2447, 0.0
        %2449 = vadd.xlane.f32.xlu0 %v2448
        %v2450 = vpop.xlane.xlu0 %2449
        %v2451 = vrcp.pop %v2450
        %v2452 = vmul.f32 %v2447, %v2451
        %v2453 = vpack.c.bf16 %v2452, %v2452
        %2454 = vrot.lane.b32.xlu0 %v2282, 88
        %v2455 = vpop.permute.xlu0 %2454
        %v2458 = vsel %vm2329, %v2453, 0
        %2460 = vmatprep.subr.bf16.mxu0 0
        %2461 = vmatpush1.bf16.msra.mxu0 0
        %2462 = vmatprep.subr.bf16.mxu0 0
        %2463 = vmatpush1.bf16.msra.mxu0 0
        %2464 = vmatprep.subr.bf16.mxu0 0
        %2465 = vmatpush1.bf16.msra.mxu0 0
        %2466 = vmatprep.subr.bf16.mxu0 0
        %2467 = vmatpush1.bf16.msra.mxu0 0
        %2468 = vmatprep.subr.bf16.mxu0 0
        %2469 = vmatpush1.bf16.msra.mxu0 0
        %2470 = vmatprep.subr.bf16.mxu0 0
        %2471 = vmatpush1.bf16.msra.mxu0 0
        %2472 = vmatprep.subr.bf16.mxu0 0
        %2473 = vmatpush1.bf16.msra.mxu0 0
        %2474 = vmatprep.subr.bf16.mxu0 0
        %2475 = vmatpush1.bf16.msra.mxu0 %v2455
        %2476 = vmatprep.subr.bf16.mxu0 0
        %2477 = vmatpush2.bf16.msra.mxu0 0
        %2478 = vmatprep.subr.bf16.mxu0 0
        %2479 = vmatpush2.bf16.msra.mxu0 0
        %2480 = vmatprep.subr.bf16.mxu0 0
        %2481 = vmatpush2.bf16.msra.mxu0 0
        %2482 = vmatprep.subr.bf16.mxu0 0
        %2483 = vmatpush2.bf16.msra.mxu0 0
        %2484 = vmatprep.subr.bf16.mxu0 0
        %2485 = vmatpush2.bf16.msra.mxu0 0
        %2486 = vmatprep.subr.bf16.mxu0 0
        %2487 = vmatpush2.bf16.msra.mxu0 0
        %2488 = vmatprep.subr.bf16.mxu0 0
        %2489 = vmatpush2.bf16.msra.mxu0 0
        %2490 = vmatprep.subr.bf16.mxu0 0
        %2491 = vmatpush2.bf16.msra.mxu0 0
        %2492 = vmatprep.mubr.bf16.mxu0 0
        %2493 = vmatmul.mubr.bf16.gmra.mxu0 %v2458
        %v2494 = vpop.f32.mrf.mxu0
        %v2495 = vadd.f32 0.0, %v2494
        %v2496 = vpop.f32.mrf.mxu0
        %v2497 = vpop.f32.mrf.mxu0
        %v2498 = vpop.f32.mrf.mxu0
        %2499 = vdwg.mxu0
        %v2500 = vpack.c.bf16 %v2495, %v2495
        %v2502 = vsel %vm1471, %v2500, 0
        %v2505 = vsel %vm1535, %v2390, 0
        %2507 = vmatprep.subr.bf16.mxu0 0
        %2508 = vmatpush1.bf16.msra.mxu0 0
        %2509 = vmatprep.subr.bf16.mxu0 0
        %2510 = vmatpush1.bf16.msra.mxu0 0
        %2511 = vmatprep.subr.bf16.mxu0 0
        %2512 = vmatpush1.bf16.msra.mxu0 0
        %2513 = vmatprep.subr.bf16.mxu0 0
        %2514 = vmatpush1.bf16.msra.mxu0 0
        %2515 = vmatprep.subr.bf16.mxu0 0
        %2516 = vmatpush1.bf16.msra.mxu0 0
        %2517 = vmatprep.subr.bf16.mxu0 0
        %2518 = vmatpush1.bf16.msra.mxu0 0
        %2519 = vmatprep.subr.bf16.mxu0 0
        %2520 = vmatpush1.bf16.msra.mxu0 0
        %2521 = vmatprep.subr.bf16.mxu0 0
        %2522 = vmatpush1.bf16.msra.mxu0 %v2505
        %2523 = vmatprep.subr.bf16.mxu0 0
        %2524 = vmatpush2.bf16.msra.mxu0 0
        %2525 = vmatprep.subr.bf16.mxu0 0
        %2526 = vmatpush2.bf16.msra.mxu0 0
        %2527 = vmatprep.subr.bf16.mxu0 0
        %2528 = vmatpush2.bf16.msra.mxu0 0
        %2529 = vmatprep.subr.bf16.mxu0 0
        %2530 = vmatpush2.bf16.msra.mxu0 0
        %2531 = vmatprep.subr.bf16.mxu0 0
        %2532 = vmatpush2.bf16.msra.mxu0 0
        %2533 = vmatprep.subr.bf16.mxu0 0
        %2534 = vmatpush2.bf16.msra.mxu0 0
        %2535 = vmatprep.subr.bf16.mxu0 0
        %2536 = vmatpush2.bf16.msra.mxu0 0
        %2537 = vmatprep.subr.bf16.mxu0 0
        %2538 = vmatpush2.bf16.msra.mxu0 0
        %2539 = vmatprep.mubr.bf16.mxu0 0
        %2540 = vmatmul.mubr.bf16.gmra.mxu0 %v2502
        %v2541 = vpop.f32.mrf.mxu0
        %v2542 = vadd.f32 0.0, %v2541
        %v2543 = vpop.f32.mrf.mxu0
        %v2544 = vpop.f32.mrf.mxu0
        %v2545 = vpop.f32.mrf.mxu0
        %2546 = vdwg.mxu0
        %v2548 = vsel %vm1471, %v2389, 0
        %v2551 = vsel %vm1535, %v2280, 0
        %2553 = vmatprep.subr.bf16.mxu0 0
        %2554 = vmatpush1.bf16.msra.mxu0 0
        %2555 = vmatprep.subr.bf16.mxu0 0
        %2556 = vmatpush1.bf16.msra.mxu0 0
        %2557 = vmatprep.subr.bf16.mxu0 0
        %2558 = vmatpush1.bf16.msra.mxu0 0
        %2559 = vmatprep.subr.bf16.mxu0 0
        %2560 = vmatpush1.bf16.msra.mxu0 0
        %2561 = vmatprep.subr.bf16.mxu0 0
        %2562 = vmatpush1.bf16.msra.mxu0 0
        %2563 = vmatprep.subr.bf16.mxu0 0
        %2564 = vmatpush1.bf16.msra.mxu0 0
        %2565 = vmatprep.subr.bf16.mxu0 0
        %2566 = vmatpush1.bf16.msra.mxu0 0
        %2567 = vmatprep.subr.bf16.mxu0 0
        %2568 = vmatpush1.bf16.msra.mxu0 %v2551
        %2569 = vmatprep.subr.bf16.mxu0 0
        %2570 = vmatpush2.bf16.msra.mxu0 0
        %2571 = vmatprep.subr.bf16.mxu0 0
        %2572 = vmatpush2.bf16.msra.mxu0 0
        %2573 = vmatprep.subr.bf16.mxu0 0
        %2574 = vmatpush2.bf16.msra.mxu0 0
        %2575 = vmatprep.subr.bf16.mxu0 0
        %2576 = vmatpush2.bf16.msra.mxu0 0
        %2577 = vmatprep.subr.bf16.mxu0 0
        %2578 = vmatpush2.bf16.msra.mxu0 0
        %2579 = vmatprep.subr.bf16.mxu0 0
        %2580 = vmatpush2.bf16.msra.mxu0 0
        %2581 = vmatprep.subr.bf16.mxu0 0
        %2582 = vmatpush2.bf16.msra.mxu0 0
        %2583 = vmatprep.subr.bf16.mxu0 0
        %2584 = vmatpush2.bf16.msra.mxu0 0
        %2585 = vmatprep.mubr.bf16.mxu0 0
        %2586 = vmatmul.mubr.bf16.gmra.mxu0 %v2548
        %v2587 = vpop.f32.mrf.mxu0
        %v2588 = vadd.f32 %v2542, %v2587
        %v2589 = vpop.f32.mrf.mxu0
        %v2590 = vpop.f32.mrf.mxu0
        %v2591 = vpop.f32.mrf.mxu0
        %2592 = vdwg.mxu0
        %v2593 = vld [vmem:[%s1121 + $0x8] sm:$0xf]
        %2594 = vrot.lane.b32.xlu0 %v2281, 112
        %v2595 = vpop.permute.xlu0 %2594
        %2596 = vrot.lane.b32.xlu0 %v2282, 112
        %v2597 = vpop.permute.xlu0 %2596
        %v2599 = vsel %vm1471, %v2595, 0
        %v2602 = vsel %vm1471, %v2597, 0
        %2604 = vmatprep.subr.bf16.mxu0 0
        %2605 = vmatpush1.bf16.xpose.msra.mxu0 0
        %2606 = vmatprep.subr.bf16.mxu0 0
        %2607 = vmatpush1.bf16.xpose.msra.mxu0 0
        %2608 = vmatprep.subr.bf16.mxu0 0
        %2609 = vmatpush1.bf16.xpose.msra.mxu0 0
        %2610 = vmatprep.subr.bf16.mxu0 0
        %2611 = vmatpush1.bf16.xpose.msra.mxu0 0
        %2612 = vmatprep.subr.bf16.mxu0 0
        %2613 = vmatpush1.bf16.xpose.msra.mxu0 0
        %2614 = vmatprep.subr.bf16.mxu0 0
        %2615 = vmatpush1.bf16.xpose.msra.mxu0 0
        %2616 = vmatprep.subr.bf16.mxu0 0
        %2617 = vmatpush1.bf16.xpose.msra.mxu0 0
        %2618 = vmatprep.subr.bf16.mxu0 0
        %2619 = vmatpush1.bf16.xpose.msra.mxu0 %v2602
        %2620 = vmatprep.subr.bf16.mxu0 0
        %2621 = vmatpush2.bf16.xpose.msra.mxu0 0
        %2622 = vmatprep.subr.bf16.mxu0 0
        %2623 = vmatpush2.bf16.xpose.msra.mxu0 0
        %2624 = vmatprep.subr.bf16.mxu0 0
        %2625 = vmatpush2.bf16.xpose.msra.mxu0 0
        %2626 = vmatprep.subr.bf16.mxu0 0
        %2627 = vmatpush2.bf16.xpose.msra.mxu0 0
        %2628 = vmatprep.subr.bf16.mxu0 0
        %2629 = vmatpush2.bf16.xpose.msra.mxu0 0
        %2630 = vmatprep.subr.bf16.mxu0 0
        %2631 = vmatpush2.bf16.xpose.msra.mxu0 0
        %2632 = vmatprep.subr.bf16.mxu0 0
        %2633 = vmatpush2.bf16.xpose.msra.mxu0 0
        %2634 = vmatprep.subr.bf16.mxu0 0
        %2635 = vmatpush2.bf16.xpose.msra.mxu0 0
        %2636 = vmatprep.mubr.bf16.mxu0 0
        %2637 = vmatmul.mubr.bf16.gmra.mxu0 %v2599
        %v2638 = vpop.f32.mrf.mxu0
        %v2639 = vadd.f32 0.0, %v2638
        %v2640 = vpop.f32.mrf.mxu0
        %v2641 = vpop.f32.mrf.mxu0
        %v2642 = vpop.f32.mrf.mxu0
        %2643 = vdwg.mxu0
        %v2644 = vsel %vm2329, %v2639, -inf
        %2645 = vmax.xlane.f32.xlu0 %v2644
        %v2646 = vpop.xlane.xlu0 %2645
        %v2647 = vsub.f32 %v2639, %v2646
        %v2648 = vmul.f32 %v2647, 1.442695
        %v2649 = vpow.pop %v2648
        %v2650 = vsel %vm2329, %v2649, 0.0
        %2651 = vadd.xlane.f32.xlu0 %v2650
        %v2652 = vpop.xlane.xlu0 %2651
        %v2653 = vrcp.pop %v2652
        %v2654 = vmul.f32 %v2649, %v2653
        %v2655 = vpack.c.bf16 %v2654, %v2654
        %2656 = vrot.lane.b32.xlu0 %v2282, 80
        %v2657 = vpop.permute.xlu0 %2656
        %v2660 = vsel %vm2329, %v2655, 0
        %2662 = vmatprep.subr.bf16.mxu0 0
        %2663 = vmatpush1.bf16.msra.mxu0 0
        %2664 = vmatprep.subr.bf16.mxu0 0
        %2665 = vmatpush1.bf16.msra.mxu0 0
        %2666 = vmatprep.subr.bf16.mxu0 0
        %2667 = vmatpush1.bf16.msra.mxu0 0
        %2668 = vmatprep.subr.bf16.mxu0 0
        %2669 = vmatpush1.bf16.msra.mxu0 0
        %2670 = vmatprep.subr.bf16.mxu0 0
        %2671 = vmatpush1.bf16.msra.mxu0 0
        %2672 = vmatprep.subr.bf16.mxu0 0
        %2673 = vmatpush1.bf16.msra.mxu0 0
        %2674 = vmatprep.subr.bf16.mxu0 0
        %2675 = vmatpush1.bf16.msra.mxu0 0
        %2676 = vmatprep.subr.bf16.mxu0 0
        %2677 = vmatpush1.bf16.msra.mxu0 %v2657
        %2678 = vmatprep.subr.bf16.mxu0 0
        %2679 = vmatpush2.bf16.msra.mxu0 0
        %2680 = vmatprep.subr.bf16.mxu0 0
        %2681 = vmatpush2.bf16.msra.mxu0 0
        %2682 = vmatprep.subr.bf16.mxu0 0
        %2683 = vmatpush2.bf16.msra.mxu0 0
        %2684 = vmatprep.subr.bf16.mxu0 0
        %2685 = vmatpush2.bf16.msra.mxu0 0
        %2686 = vmatprep.subr.bf16.mxu0 0
        %2687 = vmatpush2.bf16.msra.mxu0 0
        %2688 = vmatprep.subr.bf16.mxu0 0
        %2689 = vmatpush2.bf16.msra.mxu0 0
        %2690 = vmatprep.subr.bf16.mxu0 0
        %2691 = vmatpush2.bf16.msra.mxu0 0
        %2692 = vmatprep.subr.bf16.mxu0 0
        %2693 = vmatpush2.bf16.msra.mxu0 0
        %2694 = vmatprep.mubr.bf16.mxu0 0
        %2695 = vmatmul.mubr.bf16.gmra.mxu0 %v2660
        %v2696 = vpop.f32.mrf.mxu0
        %v2697 = vadd.f32 0.0, %v2696
        %v2698 = vpop.f32.mrf.mxu0
        %v2699 = vpop.f32.mrf.mxu0
        %v2700 = vpop.f32.mrf.mxu0
        %2701 = vdwg.mxu0
        %v2702 = vpack.c.bf16 %v2697, %v2697
        %v2704 = vsel %vm1471, %v2702, 0
        %v2707 = vsel %vm1535, %v2593, 0
        %2709 = vmatprep.subr.bf16.mxu0 0
        %2710 = vmatpush1.bf16.msra.mxu0 0
        %2711 = vmatprep.subr.bf16.mxu0 0
        %2712 = vmatpush1.bf16.msra.mxu0 0
        %2713 = vmatprep.subr.bf16.mxu0 0
        %2714 = vmatpush1.bf16.msra.mxu0 0
        %2715 = vmatprep.subr.bf16.mxu0 0
        %2716 = vmatpush1.bf16.msra.mxu0 0
        %2717 = vmatprep.subr.bf16.mxu0 0
        %2718 = vmatpush1.bf16.msra.mxu0 0
        %2719 = vmatprep.subr.bf16.mxu0 0
        %2720 = vmatpush1.bf16.msra.mxu0 0
        %2721 = vmatprep.subr.bf16.mxu0 0
        %2722 = vmatpush1.bf16.msra.mxu0 0
        %2723 = vmatprep.subr.bf16.mxu0 0
        %2724 = vmatpush1.bf16.msra.mxu0 %v2707
        %2725 = vmatprep.subr.bf16.mxu0 0
        %2726 = vmatpush2.bf16.msra.mxu0 0
        %2727 = vmatprep.subr.bf16.mxu0 0
        %2728 = vmatpush2.bf16.msra.mxu0 0
        %2729 = vmatprep.subr.bf16.mxu0 0
        %2730 = vmatpush2.bf16.msra.mxu0 0
        %2731 = vmatprep.subr.bf16.mxu0 0
        %2732 = vmatpush2.bf16.msra.mxu0 0
        %2733 = vmatprep.subr.bf16.mxu0 0
        %2734 = vmatpush2.bf16.msra.mxu0 0
        %2735 = vmatprep.subr.bf16.mxu0 0
        %2736 = vmatpush2.bf16.msra.mxu0 0
        %2737 = vmatprep.subr.bf16.mxu0 0
        %2738 = vmatpush2.bf16.msra.mxu0 0
        %2739 = vmatprep.subr.bf16.mxu0 0
        %2740 = vmatpush2.bf16.msra.mxu0 0
        %2741 = vmatprep.mubr.bf16.mxu0 0
        %2742 = vmatmul.mubr.bf16.gmra.mxu0 %v2704
        %v2743 = vpop.f32.mrf.mxu0
        %v2744 = vadd.f32 0.0, %v2743
        %v2745 = vpop.f32.mrf.mxu0
        %v2746 = vpop.f32.mrf.mxu0
        %v2747 = vpop.f32.mrf.mxu0
        %2748 = vdwg.mxu0
        %v2749 = vadd.f32 %v2588, %v2744
        %v2750 = vld [vmem:[%s1121 + $0xc] sm:$0xf]
        %2751 = vrot.lane.b32.xlu0 %v2281, 104
        %v2752 = vpop.permute.xlu0 %2751
        %2753 = vrot.lane.b32.xlu0 %v2282, 104
        %v2754 = vpop.permute.xlu0 %2753
        %v2756 = vsel %vm1471, %v2752, 0
        %v2759 = vsel %vm1471, %v2754, 0
        %2761 = vmatprep.subr.bf16.mxu0 0
        %2762 = vmatpush1.bf16.xpose.msra.mxu0 0
        %2763 = vmatprep.subr.bf16.mxu0 0
        %2764 = vmatpush1.bf16.xpose.msra.mxu0 0
        %2765 = vmatprep.subr.bf16.mxu0 0
        %2766 = vmatpush1.bf16.xpose.msra.mxu0 0
        %2767 = vmatprep.subr.bf16.mxu0 0
        %2768 = vmatpush1.bf16.xpose.msra.mxu0 0
        %2769 = vmatprep.subr.bf16.mxu0 0
        %2770 = vmatpush1.bf16.xpose.msra.mxu0 0
        %2771 = vmatprep.subr.bf16.mxu0 0
        %2772 = vmatpush1.bf16.xpose.msra.mxu0 0
        %2773 = vmatprep.subr.bf16.mxu0 0
        %2774 = vmatpush1.bf16.xpose.msra.mxu0 0
        %2775 = vmatprep.subr.bf16.mxu0 0
        %2776 = vmatpush1.bf16.xpose.msra.mxu0 %v2759
        %2777 = vmatprep.subr.bf16.mxu0 0
        %2778 = vmatpush2.bf16.xpose.msra.mxu0 0
        %2779 = vmatprep.subr.bf16.mxu0 0
        %2780 = vmatpush2.bf16.xpose.msra.mxu0 0
        %2781 = vmatprep.subr.bf16.mxu0 0
        %2782 = vmatpush2.bf16.xpose.msra.mxu0 0
        %2783 = vmatprep.subr.bf16.mxu0 0
        %2784 = vmatpush2.bf16.xpose.msra.mxu0 0
        %2785 = vmatprep.subr.bf16.mxu0 0
        %2786 = vmatpush2.bf16.xpose.msra.mxu0 0
        %2787 = vmatprep.subr.bf16.mxu0 0
        %2788 = vmatpush2.bf16.xpose.msra.mxu0 0
        %2789 = vmatprep.subr.bf16.mxu0 0
        %2790 = vmatpush2.bf16.xpose.msra.mxu0 0
        %2791 = vmatprep.subr.bf16.mxu0 0
        %2792 = vmatpush2.bf16.xpose.msra.mxu0 0
        %2793 = vmatprep.mubr.bf16.mxu0 0
        %2794 = vmatmul.mubr.bf16.gmra.mxu0 %v2756
        %v2795 = vpop.f32.mrf.mxu0
        %v2796 = vadd.f32 0.0, %v2795
        %v2797 = vpop.f32.mrf.mxu0
        %v2798 = vpop.f32.mrf.mxu0
        %v2799 = vpop.f32.mrf.mxu0
        %2800 = vdwg.mxu0
        %v2801 = vsel %vm2329, %v2796, -inf
        %2802 = vmax.xlane.f32.xlu0 %v2801
        %v2803 = vpop.xlane.xlu0 %2802
        %v2804 = vsub.f32 %v2796, %v2803
        %v2805 = vmul.f32 %v2804, 1.442695
        %v2806 = vpow.pop %v2805
        %v2807 = vsel %vm2329, %v2806, 0.0
        %2808 = vadd.xlane.f32.xlu0 %v2807
        %v2809 = vpop.xlane.xlu0 %2808
        %v2810 = vrcp.pop %v2809
        %v2811 = vmul.f32 %v2806, %v2810
        %v2812 = vpack.c.bf16 %v2811, %v2811
        %2813 = vrot.lane.b32.xlu0 %v2282, 72
        %v2814 = vpop.permute.xlu0 %2813
        %v2817 = vsel %vm2329, %v2812, 0
        %2819 = vmatprep.subr.bf16.mxu0 0
        %2820 = vmatpush1.bf16.msra.mxu0 0
        %2821 = vmatprep.subr.bf16.mxu0 0
        %2822 = vmatpush1.bf16.msra.mxu0 0
        %2823 = vmatprep.subr.bf16.mxu0 0
        %2824 = vmatpush1.bf16.msra.mxu0 0
        %2825 = vmatprep.subr.bf16.mxu0 0
        %2826 = vmatpush1.bf16.msra.mxu0 0
        %2827 = vmatprep.subr.bf16.mxu0 0
        %2828 = vmatpush1.bf16.msra.mxu0 0
        %2829 = vmatprep.subr.bf16.mxu0 0
        %2830 = vmatpush1.bf16.msra.mxu0 0
        %2831 = vmatprep.subr.bf16.mxu0 0
        %2832 = vmatpush1.bf16.msra.mxu0 0
        %2833 = vmatprep.subr.bf16.mxu0 0
        %2834 = vmatpush1.bf16.msra.mxu0 %v2814
        %2835 = vmatprep.subr.bf16.mxu0 0
        %2836 = vmatpush2.bf16.msra.mxu0 0
        %2837 = vmatprep.subr.bf16.mxu0 0
        %2838 = vmatpush2.bf16.msra.mxu0 0
        %2839 = vmatprep.subr.bf16.mxu0 0
        %2840 = vmatpush2.bf16.msra.mxu0 0
        %2841 = vmatprep.subr.bf16.mxu0 0
        %2842 = vmatpush2.bf16.msra.mxu0 0
        %2843 = vmatprep.subr.bf16.mxu0 0
        %2844 = vmatpush2.bf16.msra.mxu0 0
        %2845 = vmatprep.subr.bf16.mxu0 0
        %2846 = vmatpush2.bf16.msra.mxu0 0
        %2847 = vmatprep.subr.bf16.mxu0 0
        %2848 = vmatpush2.bf16.msra.mxu0 0
        %2849 = vmatprep.subr.bf16.mxu0 0
        %2850 = vmatpush2.bf16.msra.mxu0 0
        %2851 = vmatprep.mubr.bf16.mxu0 0
        %2852 = vmatmul.mubr.bf16.gmra.mxu0 %v2817
        %v2853 = vpop.f32.mrf.mxu0
        %v2854 = vadd.f32 0.0, %v2853
        %v2855 = vpop.f32.mrf.mxu0
        %v2856 = vpop.f32.mrf.mxu0
        %v2857 = vpop.f32.mrf.mxu0
        %2858 = vdwg.mxu0
        %v2859 = vpack.c.bf16 %v2854, %v2854
        %v2861 = vsel %vm1471, %v2859, 0
        %v2864 = vsel %vm1535, %v2750, 0
        %2866 = vmatprep.subr.bf16.mxu0 0
        %2867 = vmatpush1.bf16.msra.mxu0 0
        %2868 = vmatprep.subr.bf16.mxu0 0
        %2869 = vmatpush1.bf16.msra.mxu0 0
        %2870 = vmatprep.subr.bf16.mxu0 0
        %2871 = vmatpush1.bf16.msra.mxu0 0
        %2872 = vmatprep.subr.bf16.mxu0 0
        %2873 = vmatpush1.bf16.msra.mxu0 0
        %2874 = vmatprep.subr.bf16.mxu0 0
        %2875 = vmatpush1.bf16.msra.mxu0 0
        %2876 = vmatprep.subr.bf16.mxu0 0
        %2877 = vmatpush1.bf16.msra.mxu0 0
        %2878 = vmatprep.subr.bf16.mxu0 0
        %2879 = vmatpush1.bf16.msra.mxu0 0
        %2880 = vmatprep.subr.bf16.mxu0 0
        %2881 = vmatpush1.bf16.msra.mxu0 %v2864
        %2882 = vmatprep.subr.bf16.mxu0 0
        %2883 = vmatpush2.bf16.msra.mxu0 0
        %2884 = vmatprep.subr.bf16.mxu0 0
        %2885 = vmatpush2.bf16.msra.mxu0 0
        %2886 = vmatprep.subr.bf16.mxu0 0
        %2887 = vmatpush2.bf16.msra.mxu0 0
        %2888 = vmatprep.subr.bf16.mxu0 0
        %2889 = vmatpush2.bf16.msra.mxu0 0
        %2890 = vmatprep.subr.bf16.mxu0 0
        %2891 = vmatpush2.bf16.msra.mxu0 0
        %2892 = vmatprep.subr.bf16.mxu0 0
        %2893 = vmatpush2.bf16.msra.mxu0 0
        %2894 = vmatprep.subr.bf16.mxu0 0
        %2895 = vmatpush2.bf16.msra.mxu0 0
        %2896 = vmatprep.subr.bf16.mxu0 0
        %2897 = vmatpush2.bf16.msra.mxu0 0
        %2898 = vmatprep.mubr.bf16.mxu0 0
        %2899 = vmatmul.mubr.bf16.gmra.mxu0 %v2861
        %v2900 = vpop.f32.mrf.mxu0
        %v2901 = vadd.f32 0.0, %v2900
        %v2902 = vpop.f32.mrf.mxu0
        %v2903 = vpop.f32.mrf.mxu0
        %v2904 = vpop.f32.mrf.mxu0
        %2905 = vdwg.mxu0
        %v2906 = vadd.f32 %v2749, %v2901
        %v2907 = vld [vmem:[%s1129] sm:$0x1]
        %v2909 = vlaneseq
        %v2910 = vshrl.u32 %v2909, 7
        %v2911 = vsub.s32 0, %v2910
        %v2912 = vrot.slane %v2907, %v2911
        %v2914 = vadd.f32 %v2906, %v2912
        %v2915 = vadd.f32 %v2140, %v2914
        %v2916 = vsel %vm1416, %v2915, 0.0
        %2917 = vadd.xlane.f32.xlu0 %v2916
        %v2918 = vpop.xlane.xlu0 %2917
        %v2919 = vmul.f32 %v2918, %v2114
        %v2920 = vsub.f32 %v2915, %v2919
        %v2921 = vmul.f32 %v2920, %v2920
        %v2922 = vsel %vm1416, %v2921, 0.0
        %2923 = vadd.xlane.f32.xlu0 %v2922
        %v2924 = vpop.xlane.xlu0 %2923
        %v2925 = vmul.f32 %v2924, %v2114
        %v2926 = vadd.f32 %v2925, 1e-05
        %v2927 = vrsqrt.pop %v2926
        %v2928 = vmul.f32 %v2920, %v2927
        %v2929 = vld [vmem:[%s1153] sm:$0x1]
        %v2931 = vlaneseq
        %v2932 = vshrl.u32 %v2931, 7
        %v2933 = vsub.s32 0, %v2932
        %v2934 = vrot.slane %v2929, %v2933
        %v2936 = vmul.f32 %v2928, %v2934
        %v2937 = vld [vmem:[%s1161] sm:$0x1]
        %v2939 = vlaneseq
        %v2940 = vshrl.u32 %v2939, 7
        %v2941 = vsub.s32 0, %v2940
        %v2942 = vrot.slane %v2937, %v2941
        %v2944 = vadd.f32 %v2936, %v2942
        %v2945 = vpack.c.bf16 %v2944, %v2944
        %v2946 = vld [vmem:[%s1186] sm:$0xf]
        %v2947 = vld [vmem:[%s1186 + $0x4] sm:$0xf]
        %v2948 = vld [vmem:[%s1186 + $0x8] sm:$0xf]
        %v2949 = vld [vmem:[%s1186 + $0xc] sm:$0xf]
        %v2950 = vld [vmem:[%s1194] sm:$0x1]
        %v2952 = vlaneseq
        %v2953 = vshrl.u32 %v2952, 7
        %v2954 = vsub.s32 0, %v2953
        %v2955 = vrot.slane %v2950, %v2954
        %v2961 = vunpack.c.l.b16 %v2946
        %v2962 = vunpack.c.l.b16 %v2947
        %v2963 = vunpack.c.l.b16 %v2948
        %v2964 = vunpack.c.l.b16 %v2949
        %v2965 = vpack.c.b16 %v2962, %v2961
        %v2966 = vpack.c.b16 %v2964, %v2963
        %v2970 = vsel %vm1416, %v2945, 0
        %2972 = vmatprep.subr.bf16.mxu0 0
        %2973 = vmatpush1.bf16.msra.mxu0 0
        %2974 = vmatprep.subr.bf16.mxu0 0
        %2975 = vmatpush1.bf16.msra.mxu0 0
        %2976 = vmatprep.subr.bf16.mxu0 0
        %2977 = vmatpush1.bf16.msra.mxu0 0
        %2978 = vmatprep.subr.bf16.mxu0 0
        %2979 = vmatpush1.bf16.msra.mxu0 0
        %2980 = vmatprep.subr.bf16.mxu0 0
        %2981 = vmatpush1.bf16.msra.mxu0 0
        %2982 = vmatprep.subr.bf16.mxu0 0
        %2983 = vmatpush1.bf16.msra.mxu0 0
        %2984 = vmatprep.subr.bf16.mxu0 0
        %2985 = vmatpush1.bf16.msra.mxu0 %v2966
        %2986 = vmatprep.subr.bf16.mxu0 0
        %2987 = vmatpush1.bf16.msra.mxu0 %v2965
        %2988 = vmatprep.subr.bf16.mxu0 0
        %2989 = vmatpush2.bf16.msra.mxu0 0
        %2990 = vmatprep.subr.bf16.mxu0 0
        %2991 = vmatpush2.bf16.msra.mxu0 0
        %2992 = vmatprep.subr.bf16.mxu0 0
        %2993 = vmatpush2.bf16.msra.mxu0 0
        %2994 = vmatprep.subr.bf16.mxu0 0
        %2995 = vmatpush2.bf16.msra.mxu0 0
        %2996 = vmatprep.subr.bf16.mxu0 0
        %2997 = vmatpush2.bf16.msra.mxu0 0
        %2998 = vmatprep.subr.bf16.mxu0 0
        %2999 = vmatpush2.bf16.msra.mxu0 0
        %3000 = vmatprep.subr.bf16.mxu0 0
        %3001 = vmatpush2.bf16.msra.mxu0 0
        %3002 = vmatprep.subr.bf16.mxu0 0
        %3003 = vmatpush2.bf16.msra.mxu0 0
        %3004 = vmatprep.mubr.bf16.mxu0 0
        %3005 = vmatmul.mubr.bf16.gmra.mxu0 %v2970
        %v3006 = vpop.f32.mrf.mxu0
        %v3007 = vadd.f32 %v2955, %v3006
        %v3008 = vpop.f32.mrf.mxu0
        %v3009 = vpop.f32.mrf.mxu0
        %v3010 = vpop.f32.mrf.mxu0
        %3011 = vdwg.mxu0
        %v3012 = vmax.f32 %v3007, 0.0
        %v3013 = vpack.c.bf16 %v3012, %v3012
        %v3014 = vld [vmem:[%s1377] sm:$0xf]
        %v3015 = vld [vmem:[%s1377 + $0x4] sm:$0xf]
        %v3016 = vld [vmem:[%s1377 + $0x8] sm:$0xf]
        %v3017 = vld [vmem:[%s1377 + $0xc] sm:$0xf]
        %v3018 = vld [vmem:[%s1377 + $0x10] sm:$0xf]
        %v3019 = vld [vmem:[%s1377 + $0x14] sm:$0xf]
        %v3020 = vld [vmem:[%s1377 + $0x18] sm:$0xf]
        %v3021 = vld [vmem:[%s1377 + $0x1c] sm:$0xf]
        %v3022 = vld [vmem:[%s1380] sm:$0x1]
        %v3024 = vlaneseq
        %v3025 = vshrl.u32 %v3024, 7
        %v3026 = vsub.s32 0, %v3025
        %v3027 = vrot.slane %v3022, %v3026
        %v3037 = vunpack.c.l.b16 %v3014
        %v3038 = vunpack.c.l.b16 %v3015
        %v3039 = vunpack.c.l.b16 %v3016
        %v3040 = vunpack.c.l.b16 %v3017
        %v3041 = vunpack.c.l.b16 %v3018
        %v3042 = vunpack.c.l.b16 %v3019
        %v3043 = vunpack.c.l.b16 %v3020
        %v3044 = vunpack.c.l.b16 %v3021
        %v3045 = vpack.c.b16 %v3038, %v3037
        %v3046 = vpack.c.b16 %v3040, %v3039
        %v3047 = vpack.c.b16 %v3042, %v3041
        %v3048 = vpack.c.b16 %v3044, %v3043
        %vm3053 = vcmask 523264
        %v3055 = vsel %vm3053, %v3013, 0
        %3057 = vmatprep.subr.bf16.mxu0 0
        %3058 = vmatpush1.bf16.msra.mxu0 0
        %3059 = vmatprep.subr.bf16.mxu0 0
        %3060 = vmatpush1.bf16.msra.mxu0 0
        %3061 = vmatprep.subr.bf16.mxu0 0
        %3062 = vmatpush1.bf16.msra.mxu0 0
        %3063 = vmatprep.subr.bf16.mxu0 0
        %3064 = vmatpush1.bf16.msra.mxu0 0
        %3065 = vmatprep.subr.bf16.mxu0 0
        %3066 = vmatpush1.bf16.msra.mxu0 %v3048
        %3067 = vmatprep.subr.bf16.mxu0 0
        %3068 = vmatpush1.bf16.msra.mxu0 %v3047
        %3069 = vmatprep.subr.bf16.mxu0 0
        %3070 = vmatpush1.bf16.msra.mxu0 %v3046
        %3071 = vmatprep.subr.bf16.mxu0 0
        %3072 = vmatpush1.bf16.msra.mxu0 %v3045
        %3073 = vmatprep.subr.bf16.mxu0 0
        %3074 = vmatpush2.bf16.msra.mxu0 0
        %3075 = vmatprep.subr.bf16.mxu0 0
        %3076 = vmatpush2.bf16.msra.mxu0 0
        %3077 = vmatprep.subr.bf16.mxu0 0
        %3078 = vmatpush2.bf16.msra.mxu0 0
        %3079 = vmatprep.subr.bf16.mxu0 0
        %3080 = vmatpush2.bf16.msra.mxu0 0
        %3081 = vmatprep.subr.bf16.mxu0 0
        %3082 = vmatpush2.bf16.msra.mxu0 0
        %3083 = vmatprep.subr.bf16.mxu0 0
        %3084 = vmatpush2.bf16.msra.mxu0 0
        %3085 = vmatprep.subr.bf16.mxu0 0
        %3086 = vmatpush2.bf16.msra.mxu0 0
        %3087 = vmatprep.subr.bf16.mxu0 0
        %3088 = vmatpush2.bf16.msra.mxu0 0
        %3089 = vmatprep.mubr.bf16.mxu0 0
        %3090 = vmatmul.mubr.bf16.gmra.mxu0 %v3055
        %v3091 = vpop.f32.mrf.mxu0
        %v3092 = vadd.f32 %v3027, %v3091
        %v3093 = vpop.f32.mrf.mxu0
        %v3094 = vpop.f32.mrf.mxu0
        %v3095 = vpop.f32.mrf.mxu0
        %3096 = vdwg.mxu0
        %v3097 = vadd.f32 %v2944, %v3092
        %v3098 = vsel %vm1416, %v3097, 0.0
        %3099 = vadd.xlane.f32.xlu0 %v3098
        %v3100 = vpop.xlane.xlu0 %3099
        %v3101 = vmul.f32 %v3100, %v2114
        %v3102 = vsub.f32 %v3097, %v3101
        %v3103 = vmul.f32 %v3102, %v3102
        %v3104 = vsel %vm1416, %v3103, 0.0
        %3105 = vadd.xlane.f32.xlu0 %v3104
        %v3106 = vpop.xlane.xlu0 %3105
        %v3107 = vmul.f32 %v3106, %v2114
        %v3108 = vadd.f32 %v3107, 1e-05
        %v3109 = vrsqrt.pop %v3108
        %v3110 = vmul.f32 %v3102, %v3109
        %v3111 = vld [vmem:[%s1169] sm:$0x1]
        %v3113 = vlaneseq
        %v3114 = vshrl.u32 %v3113, 7
        %v3115 = vsub.s32 0, %v3114
        %v3116 = vrot.slane %v3111, %v3115
        %v3118 = vmul.f32 %v3110, %v3116
        %v3119 = vld [vmem:[%s1177] sm:$0x1]
        %v3121 = vlaneseq
        %v3122 = vshrl.u32 %v3121, 7
        %v3123 = vsub.s32 0, %v3122
        %v3124 = vrot.slane %v3119, %v3123
        %v3126 = vadd.f32 %v3118, %v3124
        %3127 = vst.msk [vmem:[#allocation2] sm:$0xff] %vm1416, %v3126
        %p3128 = scmp.eq.s32.totalorder %s68, 1
        // Predicated region
        $region185: #{tpu_custom_call.1} parent=115 // pred_check
          %p3129 = pneg %p3128
        $region186: #{tpu_custom_call.1} parent=115 // pred_check_branch
          %3131 = sbr.rel (%p3129) target = $region188
        $region187: #{tpu_custom_call.1} parent=115 // pred_region
          %v3132 = vpack.c.bf16 %v3126, %v3126
          %v3133 = vld [vmem:[#allocation27] sm:$0xf]
          %v3134 = vld [vmem:[#allocation27 + $0x4] sm:$0xf]
          %v3135 = vld [vmem:[#allocation27 + $0x8] sm:$0xf]
          %v3136 = vld [vmem:[#allocation27 + $0xc] sm:$0xf]
          %v3137 = vld [vmem:[%s23] sm:$0x1]
          %v3139 = vlaneseq
          %v3140 = vshrl.u32 %v3139, 7
          %v3141 = vsub.s32 0, %v3140
          %v3142 = vrot.slane %v3137, %v3141
          %v3148 = vunpack.c.l.b16 %v3133
          %v3149 = vunpack.c.l.b16 %v3134
          %v3150 = vunpack.c.l.b16 %v3135
          %v3151 = vunpack.c.l.b16 %v3136
          %v3152 = vpack.c.b16 %v3149, %v3148
          %v3153 = vpack.c.b16 %v3151, %v3150
          %v3157 = vsel %vm1416, %v3132, 0
          %3159 = vmatprep.subr.bf16.mxu0 0
          %3160 = vmatpush1.bf16.msra.mxu0 0
          %3161 = vmatprep.subr.bf16.mxu0 0
          %3162 = vmatpush1.bf16.msra.mxu0 0
          %3163 = vmatprep.subr.bf16.mxu0 0
          %3164 = vmatpush1.bf16.msra.mxu0 0
          %3165 = vmatprep.subr.bf16.mxu0 0
          %3166 = vmatpush1.bf16.msra.mxu0 0
          %3167 = vmatprep.subr.bf16.mxu0 0
          %3168 = vmatpush1.bf16.msra.mxu0 0
          %3169 = vmatprep.subr.bf16.mxu0 0
          %3170 = vmatpush1.bf16.msra.mxu0 0
          %3171 = vmatprep.subr.bf16.mxu0 0
          %3172 = vmatpush1.bf16.msra.mxu0 %v3153
          %3173 = vmatprep.subr.bf16.mxu0 0
          %3174 = vmatpush1.bf16.msra.mxu0 %v3152
          %3175 = vmatprep.subr.bf16.mxu0 0
          %3176 = vmatpush2.bf16.msra.mxu0 0
          %3177 = vmatprep.subr.bf16.mxu0 0
          %3178 = vmatpush2.bf16.msra.mxu0 0
          %3179 = vmatprep.subr.bf16.mxu0 0
          %3180 = vmatpush2.bf16.msra.mxu0 0
          %3181 = vmatprep.subr.bf16.mxu0 0
          %3182 = vmatpush2.bf16.msra.mxu0 0
          %3183 = vmatprep.subr.bf16.mxu0 0
          %3184 = vmatpush2.bf16.msra.mxu0 0
          %3185 = vmatprep.subr.bf16.mxu0 0
          %3186 = vmatpush2.bf16.msra.mxu0 0
          %3187 = vmatprep.subr.bf16.mxu0 0
          %3188 = vmatpush2.bf16.msra.mxu0 0
          %3189 = vmatprep.subr.bf16.mxu0 0
          %3190 = vmatpush2.bf16.msra.mxu0 0
          %3191 = vmatprep.mubr.bf16.mxu0 0
          %3192 = vmatmul.mubr.bf16.gmra.mxu0 %v3157
          %v3193 = vpop.f32.mrf.mxu0
          %v3194 = vadd.f32 %v3142, %v3193
          %v3195 = vpop.f32.mrf.mxu0
          %v3196 = vpop.f32.mrf.mxu0
          %v3197 = vpop.f32.mrf.mxu0
          %3198 = vdwg.mxu0
          %3199 = vst [vmem:[%s1351] sm:$0xff] %v3194
        $region188: #{tpu_custom_call.1} parent=115 // pred_fallthru
          _
        %s3200 = sand.u32 %s697, 1
        %s3201 = scalar_lea.sflag [#allocation5], %s3200
        %s3202 = sand.u32 %s697, 1
        %s3203 = smul.addr %s3202, 8
        %s3204 = scalar_lea.vmem [#allocation29], %s3203
        // Predicated region
        $region189: #{tpu_custom_call.1} parent=115 // pred_check
          %p3205 = pneg %p707
        $region190: #{tpu_custom_call.1} parent=115 // pred_check_branch
          %3207 = sbr.rel (%p3205) target = $region192
        $region191: #{tpu_custom_call.1} parent=115 // pred_region
          %s3209 = ssub.s32 128, 128
          %3210 = vsyncadd %s3201, %s3209
          %s3211 = smul.addr %s67, 128
          %s3212 = scalar_lea.hbm %s24, %s3211
          %s3214 = sshll.u32 %s3204, 4
          %s3215 = int_to_ptr.vmem [resolvable:$true] %s3214
          %3217 = dma.vmem_to_hbm [thread:$0]  %s3215, 128, %s3212, %s3201
        $region192: #{tpu_custom_call.1} parent=115 // pred_fallthru
          _
      $region116: #{tpu_custom_call.1} parent=5 // pred_fallthru
        _
      %p3218 = scmp.le.s32.totalorder 2, %s58
      // Predicated region
      $region193: #{tpu_custom_call.1} parent=5 // pred_check
        %p3219 = pneg %p3218
      $region194: #{tpu_custom_call.1} parent=5 // pred_check_branch
        %3221 = sbr.rel (%p3219) target = $region196
      $region195: #{tpu_custom_call.1} parent=5 // pred_region
        %s3222 = ssub.s32 %s58, 2
        // Predicated region
        $region197: #{tpu_custom_call.1} parent=195 // pred_check
          %p3223 = pneg %p713
        $region198: #{tpu_custom_call.1} parent=195 // pred_check_branch
          %3225 = sbr.rel (%p3223) target = $region200
        $region199: #{tpu_custom_call.1} parent=195 // pred_region
          %s3226 = sand.u32 %s698, 1
          %s3227 = scalar_lea.sflag [#allocation5], %s3226
          %s3228 = sand.u32 %s698, 1
          %s3229 = smul.addr %s3228, 8
          %s3230 = scalar_lea.vmem [#allocation29], %s3229
          %3231 = dma.done %s3227, 128
        $region200: #{tpu_custom_call.1} parent=195 // pred_fallthru
          _
      $region196: #{tpu_custom_call.1} parent=5 // pred_fallthru
        _
    $region6: #{tpu_custom_call.1} parent=1 // loop_footer
      %s62 = sadd.s32 1, %s58
    $region7: #{tpu_custom_call.1} parent=1 // loop_footer_branch
      %57 = sbr.rel target = $region3
    $region8: #{tpu_custom_call.1} parent=1 // loop_exit
      _
    %3232 = vsyncpa [#allocation4], 1
    %s3233 = scalar_lea.sflag [#allocation4], 1
    %3234 = vsyncpa %s3233, 1
    %3235 = vsyncpa [#allocation7], 1
    %s3236 = scalar_lea.sflag [#allocation7], 1
    %3237 = vsyncpa %s3236, 1
    %3238 = vsyncpa [#allocation10], 1
    %s3239 = scalar_lea.sflag [#allocation10], 1
    %3240 = vsyncpa %s3239, 1
    %3241 = vsyncpa [#allocation13], 1
    %s3242 = scalar_lea.sflag [#allocation13], 1
    %3243 = vsyncpa %s3242, 1
    %3244 = vsyncpa [#allocation16], 1
    %s3245 = scalar_lea.sflag [#allocation16], 1
    %3246 = vsyncpa %s3245, 1
    %3247 = vsyncpa [#allocation19], 1
    %s3248 = scalar_lea.sflag [#allocation19], 1
    %3249 = vsyncpa %s3248, 1
    %3250 = vsyncpa [#allocation22], 1
    %s3251 = scalar_lea.sflag [#allocation22], 1
    %3252 = vsyncpa %s3251, 1
    %3253 = vsyncpa [#allocation25], 1
    %s3254 = scalar_lea.sflag [#allocation25], 1
    %3255 = vsyncpa %s3254, 1
    %3256 = vsyncpa [#allocation28], 1
    %3257 = vsyncpa [#allocation5], 1
    %s3258 = scalar_lea.sflag [#allocation5], 1
    %3259 = vsyncpa %s3258, 1

</llo_original>
